<compile_context>
chip_gen: v7x
topology: tpu7x:2x2x1
jax: 0.10.0
libtpu: 0.0.40
codegen_flags: <defaults>
</compile_context>

<pallas_src>
import jax
import jax.numpy as jnp
from jax import lax
from jax.experimental import pallas as pl
from jax.experimental.pallas import tpu as pltpu


# ----------------------------- Pallas kernel ------------------------------ #
def gru_layer_kernel(x_ref, w_ih_ref, w_hh_ref, b_ref, bhn_ref, out_ref):
    """One full (bi)directional GRU layer in a single kernel invocation.

    x_ref    : [T, B, E]       layer input (f32)
    w_ih_ref : [D, E, 3H]      input weights, gate order (r, z, n)   (bf16)
    w_hh_ref : [D, H, 3H]      hidden weights                        (bf16)
    b_ref    : [D, 1, 3H]      b_ih + [b_hr, b_hz, 0]  (folded bias) (f32)
    bhn_ref  : [D, 1, H]       n-gate hidden bias (must stay in r*(.)) (f32)
    out_ref  : [T, B, D*H]     per-timestep hidden states, fwd | bwd (f32)
    """
    T, B, _ = x_ref.shape
    D, H, H3 = w_hh_ref.shape
    H2 = 2 * H

    # ---- Hoisted input projection (in-kernel, off the serial h-chain) ----
    # One small [B,E]x[E,3H] bf16 dot per timestep per direction; these only
    # depend on x so the scheduler can run them ahead of / under the recurrence.
    xb = [x_ref[t].astype(jnp.bfloat16) for t in range(T)]

    w_ih_f = w_ih_ref[0]
    b_f = b_ref[0]
    gi_f = [jnp.dot(xb[t], w_ih_f, preferred_element_type=jnp.float32) + b_f
            for t in range(T)]                                   # T x [B, 3H]

    w_hh_f = w_hh_ref[0]                                         # [H, 3H] bf16
    bhn_f = bhn_ref[0]                                           # [1, H]  f32

    if D == 2:
        w_ih_b = w_ih_ref[1]
        b_b = b_ref[1]
        gi_b = [jnp.dot(xb[t], w_ih_b, preferred_element_type=jnp.float32) + b_b
                for t in range(T)]
        w_hh_b = w_hh_ref[1]
        bhn_b = bhn_ref[1]

    def gru_step(h, gi_t, w_hh, bhn):
        # Single fused [H,3H] hidden matmul; bf16 operands, f32 accumulate.
        gh = jnp.dot(h.astype(jnp.bfloat16), w_hh,
                     preferred_element_type=jnp.float32)         # [B, 3H]
        # One wide sigmoid over the fused (r|z) slice (halves EUP pushes).
        rz = jax.nn.sigmoid(gi_t[:, :H2] + gh[:, :H2])           # [B, 2H]
        r = rz[:, :H]
        z = rz[:, H:]
        n = jnp.tanh(gi_t[:, H2:] + r * (gh[:, H2:] + bhn))      # [B, H]
        return n + z * (h - n)                                   # (1-z)n + zh

    # hidden_state=None -> zero init
    h_f = jnp.zeros((B, H), jnp.float32)
    if D == 2:
        h_b = jnp.zeros((B, H), jnp.float32)

    # T is small and static: full Python unroll gives static VMEM addresses and
    # lets the two independent direction chains interleave.
    # TODO(synk): for long sequences switch to lax.fori_loop(unroll=4..8) plus a
    #             time-chunk grid axis with h carried in VMEM scratch (VMEM
    #             budget: 32 MiB scoped / 64 MiB physical on v7x).
    # TODO(synk): on v7x, splitting the two directions across the 2 TensorCores
    #             (pl.core_map / CORE_PARALLEL) would halve the recurrent phase.
    for t in range(T):
        h_f = gru_step(h_f, gi_f[t], w_hh_f, bhn_f)
        out_ref[t, :, 0:H] = h_f
        if D == 2:
            tb = T - 1 - t                       # reverse direction, static idx
            h_b = gru_step(h_b, gi_b[tb], w_hh_b, bhn_b)
            out_ref[tb, :, H:H2] = h_b


# ------------------------------ Layer wrapper ------------------------------ #
def gru_layer(x, layer_params):
    """x: [T, B, E_in] -> [T, B, D*H] (already the next layer's input layout)."""
    w_ih, w_hh, b, bhn = layer_params
    T, B, _ = x.shape
    D, H, _ = w_hh.shape
    vmem = pl.BlockSpec(memory_space=pltpu.MemorySpace.VMEM)
    return pl.pallas_call(
        gru_layer_kernel,
        out_shape=jax.ShapeDtypeStruct((T, B, D * H), jnp.float32),
        in_specs=[vmem, vmem, vmem, vmem, vmem],
        out_specs=vmem,
    )(x, w_ih, w_hh, b, bhn)


# -------------------------- Parameter construction ------------------------ #
def init_gru_params(key, embedding_size, hidden_size_cfg, num_layers,
                    bidirectional):
    """Gate order (r, z, n); weights stored pre-transposed and gate-fused:
    w_ih[d] : [E_in, 3H],  w_hh[d] : [H, 3H]  (PyTorch-equivalent layout)."""
    num_dirs = 2 if bidirectional else 1
    H = hidden_size_cfg // num_dirs
    bound = 1.0 / float(H) ** 0.5
    params = []
    for layer in range(num_layers):
        E_in = embedding_size if layer == 0 else H * num_dirs
        key, k1, k2, k3, k4 = jax.random.split(key, 5)
        w_ih = jax.random.uniform(k1, (num_dirs, E_in, 3 * H), jnp.float32,
                                  -bound, bound)
        w_hh = jax.random.uniform(k2, (num_dirs, H, 3 * H), jnp.float32,
                                  -bound, bound)
        b_ih = jax.random.uniform(k3, (num_dirs, 1, 3 * H), jnp.float32,
                                  -bound, bound)
        b_hh = jax.random.uniform(k4, (num_dirs, 1, 3 * H), jnp.float32,
                                  -bound, bound)
        params.append((w_ih, w_hh, b_ih, b_hh))
    return params


def pack_layer_params(w_ih, w_hh, b_ih, b_hh):
    """Repack once (outside jit) into the kernel's operand layout:
    bf16 weights; b_ih + r/z parts of b_hh folded into one bias; n-gate hidden
    bias kept separate (it must stay inside r*(.))."""
    D, _, H3 = w_ih.shape
    H = H3 // 3
    w_ih_p = w_ih.astype(jnp.bfloat16)                       # [D, E, 3H]
    w_hh_p = w_hh.astype(jnp.bfloat16)                       # [D, H, 3H]
    b_hh_rz = jnp.concatenate(
        [b_hh[:, :, :2 * H], jnp.zeros((D, 1, H), jnp.float32)], axis=-1)
    b_p = b_ih + b_hh_rz                                      # [D, 1, 3H]
    bhn_p = b_hh[:, :, 2 * H:]                                # [D, 1, H]
    return w_ih_p, w_hh_p, b_p, bhn_p


# ------------------------------ Encoder forward ---------------------------- #
def rnn_encoder_forward(embedded, packed_params):
    """embedded: [T, B, E] -> outputs: [T, B, hidden_size]."""
    x = embedded
    for layer_params in packed_params:
        x = gru_layer(x, layer_params)
        # TODO(synk): training-mode inter-layer dropout omitted (eval semantics).
    return x
    # TODO(synk): pack_padded_sequence / pad_packed_sequence (lengths path) not
    # implemented; module is exercised with lengths=None.


# ------------------------------ Pure-JAX reference ------------------------- #
def gru_ref_direction(x, w_ih, w_hh, b_ih, b_hh):
    H = w_hh.shape[0]

    def step(h, x_t):
        gi = x_t @ w_ih + b_ih
        gh = h @ w_hh + b_hh
        r = jax.nn.sigmoid(gi[:, :H] + gh[:, :H])
        z = jax.nn.sigmoid(gi[:, H:2 * H] + gh[:, H:2 * H])
        n = jnp.tanh(gi[:, 2 * H:] + r * gh[:, 2 * H:])
        h_new = (1.0 - z) * n + z * h
        return h_new, h_new

    h0 = jnp.zeros((x.shape[1], H), jnp.float32)
    _, ys = lax.scan(step, h0, x)
    return ys


def rnn_encoder_ref(embedded, params):
    x = embedded
    for (w_ih, w_hh, b_ih, b_hh) in params:
        D = w_hh.shape[0]
        outs = []
        for d in range(D):
            xin = jnp.flip(x, axis=0) if d == 1 else x
            y = gru_ref_direction(xin, w_ih[d], w_hh[d], b_ih[d], b_hh[d])
            if d == 1:
                y = jnp.flip(y, axis=0)
            outs.append(y)
        x = jnp.concatenate(outs, axis=-1) if D > 1 else outs[0]
    return x


# ------------------------------------ main ---------------------------------- #
if __name__ == "__main__":
    # config: embedding_size=32, hidden_size=64, num_layers=2, bidirectional=True
    SEQ, BATCH, EMB = 8, 8, 32
    HIDDEN_CFG, NUM_LAYERS, BIDIRECTIONAL = 64, 2, True

    key = jax.random.PRNGKey(0)
    key, k_x, k_p = jax.random.split(key, 3)
    embedded = jax.random.normal(k_x, (SEQ, BATCH, EMB), jnp.float32)
    params = init_gru_params(k_p, EMB, HIDDEN_CFG, NUM_LAYERS, BIDIRECTIONAL)
    packed_params = [pack_layer_params(*p) for p in params]   # once, outside jit

    fwd = jax.jit(rnn_encoder_forward)
    out = jax.block_until_ready(fwd(embedded, packed_params))

    ref = rnn_encoder_ref(embedded, params)                   # f32 reference
    assert out.shape == (SEQ, BATCH, HIDDEN_CFG), out.shape
    max_err = float(jnp.max(jnp.abs(out - ref)))
    # bf16 MXU operands vs pure-f32 reference over a 2-layer, 8-step recurrence.
    assert max_err < 5e-2, f"max abs err {max_err}"
    print("KERNEL_OK")
</pallas_src>

<mosaic_0001>
module attributes {stable_mosaic.version = 11 : i64} {
  func.func @gru_layer_kernel(%arg0: memref<8x8x32xf32, #tpu.memory_space<vmem>>, %arg1: memref<2x32x96xbf16, #tpu.memory_space<vmem>>, %arg2: memref<2x32x96xbf16, #tpu.memory_space<vmem>>, %arg3: memref<2x1x96xf32, #tpu.memory_space<vmem>>, %arg4: memref<2x1x32xf32, #tpu.memory_space<vmem>>, %arg5: memref<8x8x64xf32, #tpu.memory_space<vmem>>) attributes {dimension_semantics = [], scalar_prefetch = 0 : i64, scratch_operands = 0 : i64, tpu.core_type = #tpu.core_type<tc>} {
    %c0 = arith.constant 0 : index
    %c0_0 = arith.constant 0 : index
    %c0_1 = arith.constant 0 : index
    %0 = vector.load %arg0[%c0, %c0_0, %c0_1] : memref<8x8x32xf32, #tpu.memory_space<vmem>>, vector<1x8x32xf32>
    %1 = vector.shape_cast %0 : vector<1x8x32xf32> to vector<8x32xf32>
    %2 = arith.truncf %1 : vector<8x32xf32> to vector<8x32xbf16>
    %c1 = arith.constant 1 : index
    %c0_2 = arith.constant 0 : index
    %c0_3 = arith.constant 0 : index
    %3 = vector.load %arg0[%c1, %c0_2, %c0_3] : memref<8x8x32xf32, #tpu.memory_space<vmem>>, vector<1x8x32xf32>
    %4 = vector.shape_cast %3 : vector<1x8x32xf32> to vector<8x32xf32>
    %5 = arith.truncf %4 : vector<8x32xf32> to vector<8x32xbf16>
    %c2 = arith.constant 2 : index
    %c0_4 = arith.constant 0 : index
    %c0_5 = arith.constant 0 : index
    %6 = vector.load %arg0[%c2, %c0_4, %c0_5] : memref<8x8x32xf32, #tpu.memory_space<vmem>>, vector<1x8x32xf32>
    %7 = vector.shape_cast %6 : vector<1x8x32xf32> to vector<8x32xf32>
    %8 = arith.truncf %7 : vector<8x32xf32> to vector<8x32xbf16>
    %c3 = arith.constant 3 : index
    %c0_6 = arith.constant 0 : index
    %c0_7 = arith.constant 0 : index
    %9 = vector.load %arg0[%c3, %c0_6, %c0_7] : memref<8x8x32xf32, #tpu.memory_space<vmem>>, vector<1x8x32xf32>
    %10 = vector.shape_cast %9 : vector<1x8x32xf32> to vector<8x32xf32>
    %11 = arith.truncf %10 : vector<8x32xf32> to vector<8x32xbf16>
    %c4 = arith.constant 4 : index
    %c0_8 = arith.constant 0 : index
    %c0_9 = arith.constant 0 : index
    %12 = vector.load %arg0[%c4, %c0_8, %c0_9] : memref<8x8x32xf32, #tpu.memory_space<vmem>>, vector<1x8x32xf32>
    %13 = vector.shape_cast %12 : vector<1x8x32xf32> to vector<8x32xf32>
    %14 = arith.truncf %13 : vector<8x32xf32> to vector<8x32xbf16>
    %c5 = arith.constant 5 : index
    %c0_10 = arith.constant 0 : index
    %c0_11 = arith.constant 0 : index
    %15 = vector.load %arg0[%c5, %c0_10, %c0_11] : memref<8x8x32xf32, #tpu.memory_space<vmem>>, vector<1x8x32xf32>
    %16 = vector.shape_cast %15 : vector<1x8x32xf32> to vector<8x32xf32>
    %17 = arith.truncf %16 : vector<8x32xf32> to vector<8x32xbf16>
    %c6 = arith.constant 6 : index
    %c0_12 = arith.constant 0 : index
    %c0_13 = arith.constant 0 : index
    %18 = vector.load %arg0[%c6, %c0_12, %c0_13] : memref<8x8x32xf32, #tpu.memory_space<vmem>>, vector<1x8x32xf32>
    %19 = vector.shape_cast %18 : vector<1x8x32xf32> to vector<8x32xf32>
    %20 = arith.truncf %19 : vector<8x32xf32> to vector<8x32xbf16>
    %c7 = arith.constant 7 : index
    %c0_14 = arith.constant 0 : index
    %c0_15 = arith.constant 0 : index
    %21 = vector.load %arg0[%c7, %c0_14, %c0_15] : memref<8x8x32xf32, #tpu.memory_space<vmem>>, vector<1x8x32xf32>
    %22 = vector.shape_cast %21 : vector<1x8x32xf32> to vector<8x32xf32>
    %23 = arith.truncf %22 : vector<8x32xf32> to vector<8x32xbf16>
    %c0_16 = arith.constant 0 : index
    %c0_17 = arith.constant 0 : index
    %c0_18 = arith.constant 0 : index
    %24 = vector.load %arg1[%c0_16, %c0_17, %c0_18] : memref<2x32x96xbf16, #tpu.memory_space<vmem>>, vector<1x32x96xbf16>
    %25 = vector.shape_cast %24 : vector<1x32x96xbf16> to vector<32x96xbf16>
    %c0_19 = arith.constant 0 : index
    %c0_20 = arith.constant 0 : index
    %c0_21 = arith.constant 0 : index
    %26 = vector.load %arg3[%c0_19, %c0_20, %c0_21] : memref<2x1x96xf32, #tpu.memory_space<vmem>>, vector<1x1x96xf32>
    %27 = vector.shape_cast %26 : vector<1x1x96xf32> to vector<1x96xf32>
    %cst = arith.constant dense<0.000000e+00> : vector<8x96xf32>
    %28 = tpu.matmul %2, %25, %cst {dimension_numbers = #tpu.dot_dimension_numbers<[1], [0], [0], [1], [0, 0, 1, 1], [], []>} : vector<8x32xbf16>, vector<32x96xbf16>, vector<8x96xf32> -> vector<8x96xf32>
    %29 = vector.broadcast %27 : vector<1x96xf32> to vector<8x96xf32>
    %30 = arith.addf %28, %29 : vector<8x96xf32>
    %cst_22 = arith.constant dense<0.000000e+00> : vector<8x96xf32>
    %31 = tpu.matmul %5, %25, %cst_22 {dimension_numbers = #tpu.dot_dimension_numbers<[1], [0], [0], [1], [0, 0, 1, 1], [], []>} : vector<8x32xbf16>, vector<32x96xbf16>, vector<8x96xf32> -> vector<8x96xf32>
    %32 = vector.broadcast %27 : vector<1x96xf32> to vector<8x96xf32>
    %33 = arith.addf %31, %32 : vector<8x96xf32>
    %cst_23 = arith.constant dense<0.000000e+00> : vector<8x96xf32>
    %34 = tpu.matmul %8, %25, %cst_23 {dimension_numbers = #tpu.dot_dimension_numbers<[1], [0], [0], [1], [0, 0, 1, 1], [], []>} : vector<8x32xbf16>, vector<32x96xbf16>, vector<8x96xf32> -> vector<8x96xf32>
    %35 = vector.broadcast %27 : vector<1x96xf32> to vector<8x96xf32>
    %36 = arith.addf %34, %35 : vector<8x96xf32>
    %cst_24 = arith.constant dense<0.000000e+00> : vector<8x96xf32>
    %37 = tpu.matmul %11, %25, %cst_24 {dimension_numbers = #tpu.dot_dimension_numbers<[1], [0], [0], [1], [0, 0, 1, 1], [], []>} : vector<8x32xbf16>, vector<32x96xbf16>, vector<8x96xf32> -> vector<8x96xf32>
    %38 = vector.broadcast %27 : vector<1x96xf32> to vector<8x96xf32>
    %39 = arith.addf %37, %38 : vector<8x96xf32>
    %cst_25 = arith.constant dense<0.000000e+00> : vector<8x96xf32>
    %40 = tpu.matmul %14, %25, %cst_25 {dimension_numbers = #tpu.dot_dimension_numbers<[1], [0], [0], [1], [0, 0, 1, 1], [], []>} : vector<8x32xbf16>, vector<32x96xbf16>, vector<8x96xf32> -> vector<8x96xf32>
    %41 = vector.broadcast %27 : vector<1x96xf32> to vector<8x96xf32>
    %42 = arith.addf %40, %41 : vector<8x96xf32>
    %cst_26 = arith.constant dense<0.000000e+00> : vector<8x96xf32>
    %43 = tpu.matmul %17, %25, %cst_26 {dimension_numbers = #tpu.dot_dimension_numbers<[1], [0], [0], [1], [0, 0, 1, 1], [], []>} : vector<8x32xbf16>, vector<32x96xbf16>, vector<8x96xf32> -> vector<8x96xf32>
    %44 = vector.broadcast %27 : vector<1x96xf32> to vector<8x96xf32>
    %45 = arith.addf %43, %44 : vector<8x96xf32>
    %cst_27 = arith.constant dense<0.000000e+00> : vector<8x96xf32>
    %46 = tpu.matmul %20, %25, %cst_27 {dimension_numbers = #tpu.dot_dimension_numbers<[1], [0], [0], [1], [0, 0, 1, 1], [], []>} : vector<8x32xbf16>, vector<32x96xbf16>, vector<8x96xf32> -> vector<8x96xf32>
    %47 = vector.broadcast %27 : vector<1x96xf32> to vector<8x96xf32>
    %48 = arith.addf %46, %47 : vector<8x96xf32>
    %cst_28 = arith.constant dense<0.000000e+00> : vector<8x96xf32>
    %49 = tpu.matmul %23, %25, %cst_28 {dimension_numbers = #tpu.dot_dimension_numbers<[1], [0], [0], [1], [0, 0, 1, 1], [], []>} : vector<8x32xbf16>, vector<32x96xbf16>, vector<8x96xf32> -> vector<8x96xf32>
    %50 = vector.broadcast %27 : vector<1x96xf32> to vector<8x96xf32>
    %51 = arith.addf %49, %50 : vector<8x96xf32>
    %c0_29 = arith.constant 0 : index
    %c0_30 = arith.constant 0 : index
    %c0_31 = arith.constant 0 : index
    %52 = vector.load %arg2[%c0_29, %c0_30, %c0_31] : memref<2x32x96xbf16, #tpu.memory_space<vmem>>, vector<1x32x96xbf16>
    %53 = vector.shape_cast %52 : vector<1x32x96xbf16> to vector<32x96xbf16>
    %c0_32 = arith.constant 0 : index
    %c0_33 = arith.constant 0 : index
    %c0_34 = arith.constant 0 : index
    %54 = vector.load %arg4[%c0_32, %c0_33, %c0_34] : memref<2x1x32xf32, #tpu.memory_space<vmem>>, vector<1x1x32xf32>
    %55 = vector.shape_cast %54 : vector<1x1x32xf32> to vector<1x32xf32>
    %c1_35 = arith.constant 1 : index
    %c0_36 = arith.constant 0 : index
    %c0_37 = arith.constant 0 : index
    %56 = vector.load %arg1[%c1_35, %c0_36, %c0_37] : memref<2x32x96xbf16, #tpu.memory_space<vmem>>, vector<1x32x96xbf16>
    %57 = vector.shape_cast %56 : vector<1x32x96xbf16> to vector<32x96xbf16>
    %c1_38 = arith.constant 1 : index
    %c0_39 = arith.constant 0 : index
    %c0_40 = arith.constant 0 : index
    %58 = vector.load %arg3[%c1_38, %c0_39, %c0_40] : memref<2x1x96xf32, #tpu.memory_space<vmem>>, vector<1x1x96xf32>
    %59 = vector.shape_cast %58 : vector<1x1x96xf32> to vector<1x96xf32>
    %cst_41 = arith.constant dense<0.000000e+00> : vector<8x96xf32>
    %60 = tpu.matmul %2, %57, %cst_41 {dimension_numbers = #tpu.dot_dimension_numbers<[1], [0], [0], [1], [0, 0, 1, 1], [], []>} : vector<8x32xbf16>, vector<32x96xbf16>, vector<8x96xf32> -> vector<8x96xf32>
    %61 = vector.broadcast %59 : vector<1x96xf32> to vector<8x96xf32>
    %62 = arith.addf %60, %61 : vector<8x96xf32>
    %cst_42 = arith.constant dense<0.000000e+00> : vector<8x96xf32>
    %63 = tpu.matmul %5, %57, %cst_42 {dimension_numbers = #tpu.dot_dimension_numbers<[1], [0], [0], [1], [0, 0, 1, 1], [], []>} : vector<8x32xbf16>, vector<32x96xbf16>, vector<8x96xf32> -> vector<8x96xf32>
    %64 = vector.broadcast %59 : vector<1x96xf32> to vector<8x96xf32>
    %65 = arith.addf %63, %64 : vector<8x96xf32>
    %cst_43 = arith.constant dense<0.000000e+00> : vector<8x96xf32>
    %66 = tpu.matmul %8, %57, %cst_43 {dimension_numbers = #tpu.dot_dimension_numbers<[1], [0], [0], [1], [0, 0, 1, 1], [], []>} : vector<8x32xbf16>, vector<32x96xbf16>, vector<8x96xf32> -> vector<8x96xf32>
    %67 = vector.broadcast %59 : vector<1x96xf32> to vector<8x96xf32>
    %68 = arith.addf %66, %67 : vector<8x96xf32>
    %cst_44 = arith.constant dense<0.000000e+00> : vector<8x96xf32>
    %69 = tpu.matmul %11, %57, %cst_44 {dimension_numbers = #tpu.dot_dimension_numbers<[1], [0], [0], [1], [0, 0, 1, 1], [], []>} : vector<8x32xbf16>, vector<32x96xbf16>, vector<8x96xf32> -> vector<8x96xf32>
    %70 = vector.broadcast %59 : vector<1x96xf32> to vector<8x96xf32>
    %71 = arith.addf %69, %70 : vector<8x96xf32>
    %cst_45 = arith.constant dense<0.000000e+00> : vector<8x96xf32>
    %72 = tpu.matmul %14, %57, %cst_45 {dimension_numbers = #tpu.dot_dimension_numbers<[1], [0], [0], [1], [0, 0, 1, 1], [], []>} : vector<8x32xbf16>, vector<32x96xbf16>, vector<8x96xf32> -> vector<8x96xf32>
    %73 = vector.broadcast %59 : vector<1x96xf32> to vector<8x96xf32>
    %74 = arith.addf %72, %73 : vector<8x96xf32>
    %cst_46 = arith.constant dense<0.000000e+00> : vector<8x96xf32>
    %75 = tpu.matmul %17, %57, %cst_46 {dimension_numbers = #tpu.dot_dimension_numbers<[1], [0], [0], [1], [0, 0, 1, 1], [], []>} : vector<8x32xbf16>, vector<32x96xbf16>, vector<8x96xf32> -> vector<8x96xf32>
    %76 = vector.broadcast %59 : vector<1x96xf32> to vector<8x96xf32>
    %77 = arith.addf %75, %76 : vector<8x96xf32>
    %cst_47 = arith.constant dense<0.000000e+00> : vector<8x96xf32>
    %78 = tpu.matmul %20, %57, %cst_47 {dimension_numbers = #tpu.dot_dimension_numbers<[1], [0], [0], [1], [0, 0, 1, 1], [], []>} : vector<8x32xbf16>, vector<32x96xbf16>, vector<8x96xf32> -> vector<8x96xf32>
    %79 = vector.broadcast %59 : vector<1x96xf32> to vector<8x96xf32>
    %80 = arith.addf %78, %79 : vector<8x96xf32>
    %cst_48 = arith.constant dense<0.000000e+00> : vector<8x96xf32>
    %81 = tpu.matmul %23, %57, %cst_48 {dimension_numbers = #tpu.dot_dimension_numbers<[1], [0], [0], [1], [0, 0, 1, 1], [], []>} : vector<8x32xbf16>, vector<32x96xbf16>, vector<8x96xf32> -> vector<8x96xf32>
    %82 = vector.broadcast %59 : vector<1x96xf32> to vector<8x96xf32>
    %83 = arith.addf %81, %82 : vector<8x96xf32>
    %c1_49 = arith.constant 1 : index
    %c0_50 = arith.constant 0 : index
    %c0_51 = arith.constant 0 : index
    %84 = vector.load %arg2[%c1_49, %c0_50, %c0_51] : memref<2x32x96xbf16, #tpu.memory_space<vmem>>, vector<1x32x96xbf16>
    %85 = vector.shape_cast %84 : vector<1x32x96xbf16> to vector<32x96xbf16>
    %c1_52 = arith.constant 1 : index
    %c0_53 = arith.constant 0 : index
    %c0_54 = arith.constant 0 : index
    %86 = vector.load %arg4[%c1_52, %c0_53, %c0_54] : memref<2x1x32xf32, #tpu.memory_space<vmem>>, vector<1x1x32xf32>
    %87 = vector.shape_cast %86 : vector<1x1x32xf32> to vector<1x32xf32>
    %cst_55 = arith.constant 0.000000e+00 : f32
    %88 = vector.broadcast %cst_55 : f32 to vector<8x32xf32>
    %cst_56 = arith.constant 0.000000e+00 : f32
    %89 = vector.broadcast %cst_56 : f32 to vector<8x32xf32>
    %90 = arith.truncf %88 : vector<8x32xf32> to vector<8x32xbf16>
    %cst_57 = arith.constant dense<0.000000e+00> : vector<8x96xf32>
    %91 = tpu.matmul %90, %53, %cst_57 {dimension_numbers = #tpu.dot_dimension_numbers<[1], [0], [0], [1], [0, 0, 1, 1], [], []>} : vector<8x32xbf16>, vector<32x96xbf16>, vector<8x96xf32> -> vector<8x96xf32>
    %92 = vector.extract_strided_slice %30 {offsets = [0, 0], sizes = [8, 64], strides = [1, 1]} : vector<8x96xf32> to vector<8x64xf32>
    %93 = vector.extract_strided_slice %91 {offsets = [0, 0], sizes = [8, 64], strides = [1, 1]} : vector<8x96xf32> to vector<8x64xf32>
    %94 = arith.addf %92, %93 : vector<8x64xf32>
    %95 = arith.negf %94 : vector<8x64xf32>
    %96 = math.exp %95 : vector<8x64xf32>
    %cst_58 = arith.constant 1.000000e+00 : f32
    %97 = vector.broadcast %cst_58 : f32 to vector<8x64xf32>
    %98 = arith.addf %97, %96 : vector<8x64xf32>
    %99 = arith.divf %97, %98 : vector<8x64xf32>
    %100 = vector.extract_strided_slice %99 {offsets = [0, 0], sizes = [8, 32], strides = [1, 1]} : vector<8x64xf32> to vector<8x32xf32>
    %101 = vector.extract_strided_slice %99 {offsets = [0, 32], sizes = [8, 32], strides = [1, 1]} : vector<8x64xf32> to vector<8x32xf32>
    %102 = vector.extract_strided_slice %30 {offsets = [0, 64], sizes = [8, 32], strides = [1, 1]} : vector<8x96xf32> to vector<8x32xf32>
    %103 = vector.extract_strided_slice %91 {offsets = [0, 64], sizes = [8, 32], strides = [1, 1]} : vector<8x96xf32> to vector<8x32xf32>
    %104 = vector.broadcast %55 : vector<1x32xf32> to vector<8x32xf32>
    %105 = arith.addf %103, %104 : vector<8x32xf32>
    %106 = arith.mulf %100, %105 : vector<8x32xf32>
    %107 = arith.addf %102, %106 : vector<8x32xf32>
    %108 = math.tanh %107 : vector<8x32xf32>
    %109 = arith.subf %88, %108 : vector<8x32xf32>
    %110 = arith.mulf %101, %109 : vector<8x32xf32>
    %111 = arith.addf %108, %110 : vector<8x32xf32>
    %c0_59 = arith.constant 0 : index
    %c0_60 = arith.constant 0 : index
    %c0_61 = arith.constant 0 : index
    %112 = vector.load %arg5[%c0_59, %c0_60, %c0_61] : memref<8x8x64xf32, #tpu.memory_space<vmem>>, vector<1x8x32xf32>
    %113 = vector.shape_cast %112 : vector<1x8x32xf32> to vector<8x32xf32>
    %114 = vector.shape_cast %111 : vector<8x32xf32> to vector<1x8x32xf32>
    tpu.vector_store %arg5[%c0_59, %c0_60, %c0_61], %114 {strides = array<i32>} : memref<8x8x64xf32, #tpu.memory_space<vmem>>, vector<1x8x32xf32>,
    %115 = arith.truncf %89 : vector<8x32xf32> to vector<8x32xbf16>
    %cst_62 = arith.constant dense<0.000000e+00> : vector<8x96xf32>
    %116 = tpu.matmul %115, %85, %cst_62 {dimension_numbers = #tpu.dot_dimension_numbers<[1], [0], [0], [1], [0, 0, 1, 1], [], []>} : vector<8x32xbf16>, vector<32x96xbf16>, vector<8x96xf32> -> vector<8x96xf32>
    %117 = vector.extract_strided_slice %83 {offsets = [0, 0], sizes = [8, 64], strides = [1, 1]} : vector<8x96xf32> to vector<8x64xf32>
    %118 = vector.extract_strided_slice %116 {offsets = [0, 0], sizes = [8, 64], strides = [1, 1]} : vector<8x96xf32> to vector<8x64xf32>
    %119 = arith.addf %117, %118 : vector<8x64xf32>
    %120 = arith.negf %119 : vector<8x64xf32>
    %121 = math.exp %120 : vector<8x64xf32>
    %cst_63 = arith.constant 1.000000e+00 : f32
    %122 = vector.broadcast %cst_63 : f32 to vector<8x64xf32>
    %123 = arith.addf %122, %121 : vector<8x64xf32>
    %124 = arith.divf %122, %123 : vector<8x64xf32>
    %125 = vector.extract_strided_slice %124 {offsets = [0, 0], sizes = [8, 32], strides = [1, 1]} : vector<8x64xf32> to vector<8x32xf32>
    %126 = vector.extract_strided_slice %124 {offsets = [0, 32], sizes = [8, 32], strides = [1, 1]} : vector<8x64xf32> to vector<8x32xf32>
    %127 = vector.extract_strided_slice %83 {offsets = [0, 64], sizes = [8, 32], strides = [1, 1]} : vector<8x96xf32> to vector<8x32xf32>
    %128 = vector.extract_strided_slice %116 {offsets = [0, 64], sizes = [8, 32], strides = [1, 1]} : vector<8x96xf32> to vector<8x32xf32>
    %129 = vector.broadcast %87 : vector<1x32xf32> to vector<8x32xf32>
    %130 = arith.addf %128, %129 : vector<8x32xf32>
    %131 = arith.mulf %125, %130 : vector<8x32xf32>
    %132 = arith.addf %127, %131 : vector<8x32xf32>
    %133 = math.tanh %132 : vector<8x32xf32>
    %134 = arith.subf %89, %133 : vector<8x32xf32>
    %135 = arith.mulf %126, %134 : vector<8x32xf32>
    %136 = arith.addf %133, %135 : vector<8x32xf32>
    %c7_64 = arith.constant 7 : index
    %c0_65 = arith.constant 0 : index
    %c32 = arith.constant 32 : index
    %137 = vector.load %arg5[%c7_64, %c0_65, %c32] : memref<8x8x64xf32, #tpu.memory_space<vmem>>, vector<1x8x32xf32>
    %138 = vector.shape_cast %137 : vector<1x8x32xf32> to vector<8x32xf32>
    %139 = vector.shape_cast %136 : vector<8x32xf32> to vector<1x8x32xf32>
    tpu.vector_store %arg5[%c7_64, %c0_65, %c32], %139 {strides = array<i32>} : memref<8x8x64xf32, #tpu.memory_space<vmem>>, vector<1x8x32xf32>,
    %140 = arith.truncf %111 : vector<8x32xf32> to vector<8x32xbf16>
    %cst_66 = arith.constant dense<0.000000e+00> : vector<8x96xf32>
    %141 = tpu.matmul %140, %53, %cst_66 {dimension_numbers = #tpu.dot_dimension_numbers<[1], [0], [0], [1], [0, 0, 1, 1], [], []>} : vector<8x32xbf16>, vector<32x96xbf16>, vector<8x96xf32> -> vector<8x96xf32>
    %142 = vector.extract_strided_slice %33 {offsets = [0, 0], sizes = [8, 64], strides = [1, 1]} : vector<8x96xf32> to vector<8x64xf32>
    %143 = vector.extract_strided_slice %141 {offsets = [0, 0], sizes = [8, 64], strides = [1, 1]} : vector<8x96xf32> to vector<8x64xf32>
    %144 = arith.addf %142, %143 : vector<8x64xf32>
    %145 = arith.negf %144 : vector<8x64xf32>
    %146 = math.exp %145 : vector<8x64xf32>
    %cst_67 = arith.constant 1.000000e+00 : f32
    %147 = vector.broadcast %cst_67 : f32 to vector<8x64xf32>
    %148 = arith.addf %147, %146 : vector<8x64xf32>
    %149 = arith.divf %147, %148 : vector<8x64xf32>
    %150 = vector.extract_strided_slice %149 {offsets = [0, 0], sizes = [8, 32], strides = [1, 1]} : vector<8x64xf32> to vector<8x32xf32>
    %151 = vector.extract_strided_slice %149 {offsets = [0, 32], sizes = [8, 32], strides = [1, 1]} : vector<8x64xf32> to vector<8x32xf32>
    %152 = vector.extract_strided_slice %33 {offsets = [0, 64], sizes = [8, 32], strides = [1, 1]} : vector<8x96xf32> to vector<8x32xf32>
    %153 = vector.extract_strided_slice %141 {offsets = [0, 64], sizes = [8, 32], strides = [1, 1]} : vector<8x96xf32> to vector<8x32xf32>
    %154 = vector.broadcast %55 : vector<1x32xf32> to vector<8x32xf32>
    %155 = arith.addf %153, %154 : vector<8x32xf32>
    %156 = arith.mulf %150, %155 : vector<8x32xf32>
    %157 = arith.addf %152, %156 : vector<8x32xf32>
    %158 = math.tanh %157 : vector<8x32xf32>
    %159 = arith.subf %111, %158 : vector<8x32xf32>
    %160 = arith.mulf %151, %159 : vector<8x32xf32>
    %161 = arith.addf %158, %160 : vector<8x32xf32>
    %c1_68 = arith.constant 1 : index
    %c0_69 = arith.constant 0 : index
    %c0_70 = arith.constant 0 : index
    %162 = vector.load %arg5[%c1_68, %c0_69, %c0_70] : memref<8x8x64xf32, #tpu.memory_space<vmem>>, vector<1x8x32xf32>
    %163 = vector.shape_cast %162 : vector<1x8x32xf32> to vector<8x32xf32>
    %164 = vector.shape_cast %161 : vector<8x32xf32> to vector<1x8x32xf32>
    tpu.vector_store %arg5[%c1_68, %c0_69, %c0_70], %164 {strides = array<i32>} : memref<8x8x64xf32, #tpu.memory_space<vmem>>, vector<1x8x32xf32>,
    %165 = arith.truncf %136 : vector<8x32xf32> to vector<8x32xbf16>
    %cst_71 = arith.constant dense<0.000000e+00> : vector<8x96xf32>
    %166 = tpu.matmul %165, %85, %cst_71 {dimension_numbers = #tpu.dot_dimension_numbers<[1], [0], [0], [1], [0, 0, 1, 1], [], []>} : vector<8x32xbf16>, vector<32x96xbf16>, vector<8x96xf32> -> vector<8x96xf32>
    %167 = vector.extract_strided_slice %80 {offsets = [0, 0], sizes = [8, 64], strides = [1, 1]} : vector<8x96xf32> to vector<8x64xf32>
    %168 = vector.extract_strided_slice %166 {offsets = [0, 0], sizes = [8, 64], strides = [1, 1]} : vector<8x96xf32> to vector<8x64xf32>
    %169 = arith.addf %167, %168 : vector<8x64xf32>
    %170 = arith.negf %169 : vector<8x64xf32>
    %171 = math.exp %170 : vector<8x64xf32>
    %cst_72 = arith.constant 1.000000e+00 : f32
    %172 = vector.broadcast %cst_72 : f32 to vector<8x64xf32>
    %173 = arith.addf %172, %171 : vector<8x64xf32>
    %174 = arith.divf %172, %173 : vector<8x64xf32>
    %175 = vector.extract_strided_slice %174 {offsets = [0, 0], sizes = [8, 32], strides = [1, 1]} : vector<8x64xf32> to vector<8x32xf32>
    %176 = vector.extract_strided_slice %174 {offsets = [0, 32], sizes = [8, 32], strides = [1, 1]} : vector<8x64xf32> to vector<8x32xf32>
    %177 = vector.extract_strided_slice %80 {offsets = [0, 64], sizes = [8, 32], strides = [1, 1]} : vector<8x96xf32> to vector<8x32xf32>
    %178 = vector.extract_strided_slice %166 {offsets = [0, 64], sizes = [8, 32], strides = [1, 1]} : vector<8x96xf32> to vector<8x32xf32>
    %179 = vector.broadcast %87 : vector<1x32xf32> to vector<8x32xf32>
    %180 = arith.addf %178, %179 : vector<8x32xf32>
    %181 = arith.mulf %175, %180 : vector<8x32xf32>
    %182 = arith.addf %177, %181 : vector<8x32xf32>
    %183 = math.tanh %182 : vector<8x32xf32>
    %184 = arith.subf %136, %183 : vector<8x32xf32>
    %185 = arith.mulf %176, %184 : vector<8x32xf32>
    %186 = arith.addf %183, %185 : vector<8x32xf32>
    %c6_73 = arith.constant 6 : index
    %c0_74 = arith.constant 0 : index
    %c32_75 = arith.constant 32 : index
    %187 = vector.load %arg5[%c6_73, %c0_74, %c32_75] : memref<8x8x64xf32, #tpu.memory_space<vmem>>, vector<1x8x32xf32>
    %188 = vector.shape_cast %187 : vector<1x8x32xf32> to vector<8x32xf32>
    %189 = vector.shape_cast %186 : vector<8x32xf32> to vector<1x8x32xf32>
    tpu.vector_store %arg5[%c6_73, %c0_74, %c32_75], %189 {strides = array<i32>} : memref<8x8x64xf32, #tpu.memory_space<vmem>>, vector<1x8x32xf32>,
    %190 = arith.truncf %161 : vector<8x32xf32> to vector<8x32xbf16>
    %cst_76 = arith.constant dense<0.000000e+00> : vector<8x96xf32>
    %191 = tpu.matmul %190, %53, %cst_76 {dimension_numbers = #tpu.dot_dimension_numbers<[1], [0], [0], [1], [0, 0, 1, 1], [], []>} : vector<8x32xbf16>, vector<32x96xbf16>, vector<8x96xf32> -> vector<8x96xf32>
    %192 = vector.extract_strided_slice %36 {offsets = [0, 0], sizes = [8, 64], strides = [1, 1]} : vector<8x96xf32> to vector<8x64xf32>
    %193 = vector.extract_strided_slice %191 {offsets = [0, 0], sizes = [8, 64], strides = [1, 1]} : vector<8x96xf32> to vector<8x64xf32>
    %194 = arith.addf %192, %193 : vector<8x64xf32>
    %195 = arith.negf %194 : vector<8x64xf32>
    %196 = math.exp %195 : vector<8x64xf32>
    %cst_77 = arith.constant 1.000000e+00 : f32
    %197 = vector.broadcast %cst_77 : f32 to vector<8x64xf32>
    %198 = arith.addf %197, %196 : vector<8x64xf32>
    %199 = arith.divf %197, %198 : vector<8x64xf32>
    %200 = vector.extract_strided_slice %199 {offsets = [0, 0], sizes = [8, 32], strides = [1, 1]} : vector<8x64xf32> to vector<8x32xf32>
    %201 = vector.extract_strided_slice %199 {offsets = [0, 32], sizes = [8, 32], strides = [1, 1]} : vector<8x64xf32> to vector<8x32xf32>
    %202 = vector.extract_strided_slice %36 {offsets = [0, 64], sizes = [8, 32], strides = [1, 1]} : vector<8x96xf32> to vector<8x32xf32>
    %203 = vector.extract_strided_slice %191 {offsets = [0, 64], sizes = [8, 32], strides = [1, 1]} : vector<8x96xf32> to vector<8x32xf32>
    %204 = vector.broadcast %55 : vector<1x32xf32> to vector<8x32xf32>
    %205 = arith.addf %203, %204 : vector<8x32xf32>
    %206 = arith.mulf %200, %205 : vector<8x32xf32>
    %207 = arith.addf %202, %206 : vector<8x32xf32>
    %208 = math.tanh %207 : vector<8x32xf32>
    %209 = arith.subf %161, %208 : vector<8x32xf32>
    %210 = arith.mulf %201, %209 : vector<8x32xf32>
    %211 = arith.addf %208, %210 : vector<8x32xf32>
    %c2_78 = arith.constant 2 : index
    %c0_79 = arith.constant 0 : index
    %c0_80 = arith.constant 0 : index
    %212 = vector.load %arg5[%c2_78, %c0_79, %c0_80] : memref<8x8x64xf32, #tpu.memory_space<vmem>>, vector<1x8x32xf32>
    %213 = vector.shape_cast %212 : vector<1x8x32xf32> to vector<8x32xf32>
    %214 = vector.shape_cast %211 : vector<8x32xf32> to vector<1x8x32xf32>
    tpu.vector_store %arg5[%c2_78, %c0_79, %c0_80], %214 {strides = array<i32>} : memref<8x8x64xf32, #tpu.memory_space<vmem>>, vector<1x8x32xf32>,
    %215 = arith.truncf %186 : vector<8x32xf32> to vector<8x32xbf16>
    %cst_81 = arith.constant dense<0.000000e+00> : vector<8x96xf32>
    %216 = tpu.matmul %215, %85, %cst_81 {dimension_numbers = #tpu.dot_dimension_numbers<[1], [0], [0], [1], [0, 0, 1, 1], [], []>} : vector<8x32xbf16>, vector<32x96xbf16>, vector<8x96xf32> -> vector<8x96xf32>
    %217 = vector.extract_strided_slice %77 {offsets = [0, 0], sizes = [8, 64], strides = [1, 1]} : vector<8x96xf32> to vector<8x64xf32>
    %218 = vector.extract_strided_slice %216 {offsets = [0, 0], sizes = [8, 64], strides = [1, 1]} : vector<8x96xf32> to vector<8x64xf32>
    %219 = arith.addf %217, %218 : vector<8x64xf32>
    %220 = arith.negf %219 : vector<8x64xf32>
    %221 = math.exp %220 : vector<8x64xf32>
    %cst_82 = arith.constant 1.000000e+00 : f32
    %222 = vector.broadcast %cst_82 : f32 to vector<8x64xf32>
    %223 = arith.addf %222, %221 : vector<8x64xf32>
    %224 = arith.divf %222, %223 : vector<8x64xf32>
    %225 = vector.extract_strided_slice %224 {offsets = [0, 0], sizes = [8, 32], strides = [1, 1]} : vector<8x64xf32> to vector<8x32xf32>
    %226 = vector.extract_strided_slice %224 {offsets = [0, 32], sizes = [8, 32], strides = [1, 1]} : vector<8x64xf32> to vector<8x32xf32>
    %227 = vector.extract_strided_slice %77 {offsets = [0, 64], sizes = [8, 32], strides = [1, 1]} : vector<8x96xf32> to vector<8x32xf32>
    %228 = vector.extract_strided_slice %216 {offsets = [0, 64], sizes = [8, 32], strides = [1, 1]} : vector<8x96xf32> to vector<8x32xf32>
    %229 = vector.broadcast %87 : vector<1x32xf32> to vector<8x32xf32>
    %230 = arith.addf %228, %229 : vector<8x32xf32>
    %231 = arith.mulf %225, %230 : vector<8x32xf32>
    %232 = arith.addf %227, %231 : vector<8x32xf32>
    %233 = math.tanh %232 : vector<8x32xf32>
    %234 = arith.subf %186, %233 : vector<8x32xf32>
    %235 = arith.mulf %226, %234 : vector<8x32xf32>
    %236 = arith.addf %233, %235 : vector<8x32xf32>
    %c5_83 = arith.constant 5 : index
    %c0_84 = arith.constant 0 : index
    %c32_85 = arith.constant 32 : index
    %237 = vector.load %arg5[%c5_83, %c0_84, %c32_85] : memref<8x8x64xf32, #tpu.memory_space<vmem>>, vector<1x8x32xf32>
    %238 = vector.shape_cast %237 : vector<1x8x32xf32> to vector<8x32xf32>
    %239 = vector.shape_cast %236 : vector<8x32xf32> to vector<1x8x32xf32>
    tpu.vector_store %arg5[%c5_83, %c0_84, %c32_85], %239 {strides = array<i32>} : memref<8x8x64xf32, #tpu.memory_space<vmem>>, vector<1x8x32xf32>,
    %240 = arith.truncf %211 : vector<8x32xf32> to vector<8x32xbf16>
    %cst_86 = arith.constant dense<0.000000e+00> : vector<8x96xf32>
    %241 = tpu.matmul %240, %53, %cst_86 {dimension_numbers = #tpu.dot_dimension_numbers<[1], [0], [0], [1], [0, 0, 1, 1], [], []>} : vector<8x32xbf16>, vector<32x96xbf16>, vector<8x96xf32> -> vector<8x96xf32>
    %242 = vector.extract_strided_slice %39 {offsets = [0, 0], sizes = [8, 64], strides = [1, 1]} : vector<8x96xf32> to vector<8x64xf32>
    %243 = vector.extract_strided_slice %241 {offsets = [0, 0], sizes = [8, 64], strides = [1, 1]} : vector<8x96xf32> to vector<8x64xf32>
    %244 = arith.addf %242, %243 : vector<8x64xf32>
    %245 = arith.negf %244 : vector<8x64xf32>
    %246 = math.exp %245 : vector<8x64xf32>
    %cst_87 = arith.constant 1.000000e+00 : f32
    %247 = vector.broadcast %cst_87 : f32 to vector<8x64xf32>
    %248 = arith.addf %247, %246 : vector<8x64xf32>
    %249 = arith.divf %247, %248 : vector<8x64xf32>
    %250 = vector.extract_strided_slice %249 {offsets = [0, 0], sizes = [8, 32], strides = [1, 1]} : vector<8x64xf32> to vector<8x32xf32>
    %251 = vector.extract_strided_slice %249 {offsets = [0, 32], sizes = [8, 32], strides = [1, 1]} : vector<8x64xf32> to vector<8x32xf32>
    %252 = vector.extract_strided_slice %39 {offsets = [0, 64], sizes = [8, 32], strides = [1, 1]} : vector<8x96xf32> to vector<8x32xf32>
    %253 = vector.extract_strided_slice %241 {offsets = [0, 64], sizes = [8, 32], strides = [1, 1]} : vector<8x96xf32> to vector<8x32xf32>
    %254 = vector.broadcast %55 : vector<1x32xf32> to vector<8x32xf32>
    %255 = arith.addf %253, %254 : vector<8x32xf32>
    %256 = arith.mulf %250, %255 : vector<8x32xf32>
    %257 = arith.addf %252, %256 : vector<8x32xf32>
    %258 = math.tanh %257 : vector<8x32xf32>
    %259 = arith.subf %211, %258 : vector<8x32xf32>
    %260 = arith.mulf %251, %259 : vector<8x32xf32>
    %261 = arith.addf %258, %260 : vector<8x32xf32>
    %c3_88 = arith.constant 3 : index
    %c0_89 = arith.constant 0 : index
    %c0_90 = arith.constant 0 : index
    %262 = vector.load %arg5[%c3_88, %c0_89, %c0_90] : memref<8x8x64xf32, #tpu.memory_space<vmem>>, vector<1x8x32xf32>
    %263 = vector.shape_cast %262 : vector<1x8x32xf32> to vector<8x32xf32>
    %264 = vector.shape_cast %261 : vector<8x32xf32> to vector<1x8x32xf32>
    tpu.vector_store %arg5[%c3_88, %c0_89, %c0_90], %264 {strides = array<i32>} : memref<8x8x64xf32, #tpu.memory_space<vmem>>, vector<1x8x32xf32>,
    %265 = arith.truncf %236 : vector<8x32xf32> to vector<8x32xbf16>
    %cst_91 = arith.constant dense<0.000000e+00> : vector<8x96xf32>
    %266 = tpu.matmul %265, %85, %cst_91 {dimension_numbers = #tpu.dot_dimension_numbers<[1], [0], [0], [1], [0, 0, 1, 1], [], []>} : vector<8x32xbf16>, vector<32x96xbf16>, vector<8x96xf32> -> vector<8x96xf32>
    %267 = vector.extract_strided_slice %74 {offsets = [0, 0], sizes = [8, 64], strides = [1, 1]} : vector<8x96xf32> to vector<8x64xf32>
    %268 = vector.extract_strided_slice %266 {offsets = [0, 0], sizes = [8, 64], strides = [1, 1]} : vector<8x96xf32> to vector<8x64xf32>
    %269 = arith.addf %267, %268 : vector<8x64xf32>
    %270 = arith.negf %269 : vector<8x64xf32>
    %271 = math.exp %270 : vector<8x64xf32>
    %cst_92 = arith.constant 1.000000e+00 : f32
    %272 = vector.broadcast %cst_92 : f32 to vector<8x64xf32>
    %273 = arith.addf %272, %271 : vector<8x64xf32>
    %274 = arith.divf %272, %273 : vector<8x64xf32>
    %275 = vector.extract_strided_slice %274 {offsets = [0, 0], sizes = [8, 32], strides = [1, 1]} : vector<8x64xf32> to vector<8x32xf32>
    %276 = vector.extract_strided_slice %274 {offsets = [0, 32], sizes = [8, 32], strides = [1, 1]} : vector<8x64xf32> to vector<8x32xf32>
    %277 = vector.extract_strided_slice %74 {offsets = [0, 64], sizes = [8, 32], strides = [1, 1]} : vector<8x96xf32> to vector<8x32xf32>
    %278 = vector.extract_strided_slice %266 {offsets = [0, 64], sizes = [8, 32], strides = [1, 1]} : vector<8x96xf32> to vector<8x32xf32>
    %279 = vector.broadcast %87 : vector<1x32xf32> to vector<8x32xf32>
    %280 = arith.addf %278, %279 : vector<8x32xf32>
    %281 = arith.mulf %275, %280 : vector<8x32xf32>
    %282 = arith.addf %277, %281 : vector<8x32xf32>
    %283 = math.tanh %282 : vector<8x32xf32>
    %284 = arith.subf %236, %283 : vector<8x32xf32>
    %285 = arith.mulf %276, %284 : vector<8x32xf32>
    %286 = arith.addf %283, %285 : vector<8x32xf32>
    %c4_93 = arith.constant 4 : index
    %c0_94 = arith.constant 0 : index
    %c32_95 = arith.constant 32 : index
    %287 = vector.load %arg5[%c4_93, %c0_94, %c32_95] : memref<8x8x64xf32, #tpu.memory_space<vmem>>, vector<1x8x32xf32>
    %288 = vector.shape_cast %287 : vector<1x8x32xf32> to vector<8x32xf32>
    %289 = vector.shape_cast %286 : vector<8x32xf32> to vector<1x8x32xf32>
    tpu.vector_store %arg5[%c4_93, %c0_94, %c32_95], %289 {strides = array<i32>} : memref<8x8x64xf32, #tpu.memory_space<vmem>>, vector<1x8x32xf32>,
    %290 = arith.truncf %261 : vector<8x32xf32> to vector<8x32xbf16>
    %cst_96 = arith.constant dense<0.000000e+00> : vector<8x96xf32>
    %291 = tpu.matmul %290, %53, %cst_96 {dimension_numbers = #tpu.dot_dimension_numbers<[1], [0], [0], [1], [0, 0, 1, 1], [], []>} : vector<8x32xbf16>, vector<32x96xbf16>, vector<8x96xf32> -> vector<8x96xf32>
    %292 = vector.extract_strided_slice %42 {offsets = [0, 0], sizes = [8, 64], strides = [1, 1]} : vector<8x96xf32> to vector<8x64xf32>
    %293 = vector.extract_strided_slice %291 {offsets = [0, 0], sizes = [8, 64], strides = [1, 1]} : vector<8x96xf32> to vector<8x64xf32>
    %294 = arith.addf %292, %293 : vector<8x64xf32>
    %295 = arith.negf %294 : vector<8x64xf32>
    %296 = math.exp %295 : vector<8x64xf32>
    %cst_97 = arith.constant 1.000000e+00 : f32
    %297 = vector.broadcast %cst_97 : f32 to vector<8x64xf32>
    %298 = arith.addf %297, %296 : vector<8x64xf32>
    %299 = arith.divf %297, %298 : vector<8x64xf32>
    %300 = vector.extract_strided_slice %299 {offsets = [0, 0], sizes = [8, 32], strides = [1, 1]} : vector<8x64xf32> to vector<8x32xf32>
    %301 = vector.extract_strided_slice %299 {offsets = [0, 32], sizes = [8, 32], strides = [1, 1]} : vector<8x64xf32> to vector<8x32xf32>
    %302 = vector.extract_strided_slice %42 {offsets = [0, 64], sizes = [8, 32], strides = [1, 1]} : vector<8x96xf32> to vector<8x32xf32>
    %303 = vector.extract_strided_slice %291 {offsets = [0, 64], sizes = [8, 32], strides = [1, 1]} : vector<8x96xf32> to vector<8x32xf32>
    %304 = vector.broadcast %55 : vector<1x32xf32> to vector<8x32xf32>
    %305 = arith.addf %303, %304 : vector<8x32xf32>
    %306 = arith.mulf %300, %305 : vector<8x32xf32>
    %307 = arith.addf %302, %306 : vector<8x32xf32>
    %308 = math.tanh %307 : vector<8x32xf32>
    %309 = arith.subf %261, %308 : vector<8x32xf32>
    %310 = arith.mulf %301, %309 : vector<8x32xf32>
    %311 = arith.addf %308, %310 : vector<8x32xf32>
    %c4_98 = arith.constant 4 : index
    %c0_99 = arith.constant 0 : index
    %c0_100 = arith.constant 0 : index
    %312 = vector.load %arg5[%c4_98, %c0_99, %c0_100] : memref<8x8x64xf32, #tpu.memory_space<vmem>>, vector<1x8x32xf32>
    %313 = vector.shape_cast %312 : vector<1x8x32xf32> to vector<8x32xf32>
    %314 = vector.shape_cast %311 : vector<8x32xf32> to vector<1x8x32xf32>
    tpu.vector_store %arg5[%c4_98, %c0_99, %c0_100], %314 {strides = array<i32>} : memref<8x8x64xf32, #tpu.memory_space<vmem>>, vector<1x8x32xf32>,
    %315 = arith.truncf %286 : vector<8x32xf32> to vector<8x32xbf16>
    %cst_101 = arith.constant dense<0.000000e+00> : vector<8x96xf32>
    %316 = tpu.matmul %315, %85, %cst_101 {dimension_numbers = #tpu.dot_dimension_numbers<[1], [0], [0], [1], [0, 0, 1, 1], [], []>} : vector<8x32xbf16>, vector<32x96xbf16>, vector<8x96xf32> -> vector<8x96xf32>
    %317 = vector.extract_strided_slice %71 {offsets = [0, 0], sizes = [8, 64], strides = [1, 1]} : vector<8x96xf32> to vector<8x64xf32>
    %318 = vector.extract_strided_slice %316 {offsets = [0, 0], sizes = [8, 64], strides = [1, 1]} : vector<8x96xf32> to vector<8x64xf32>
    %319 = arith.addf %317, %318 : vector<8x64xf32>
    %320 = arith.negf %319 : vector<8x64xf32>
    %321 = math.exp %320 : vector<8x64xf32>
    %cst_102 = arith.constant 1.000000e+00 : f32
    %322 = vector.broadcast %cst_102 : f32 to vector<8x64xf32>
    %323 = arith.addf %322, %321 : vector<8x64xf32>
    %324 = arith.divf %322, %323 : vector<8x64xf32>
    %325 = vector.extract_strided_slice %324 {offsets = [0, 0], sizes = [8, 32], strides = [1, 1]} : vector<8x64xf32> to vector<8x32xf32>
    %326 = vector.extract_strided_slice %324 {offsets = [0, 32], sizes = [8, 32], strides = [1, 1]} : vector<8x64xf32> to vector<8x32xf32>
    %327 = vector.extract_strided_slice %71 {offsets = [0, 64], sizes = [8, 32], strides = [1, 1]} : vector<8x96xf32> to vector<8x32xf32>
    %328 = vector.extract_strided_slice %316 {offsets = [0, 64], sizes = [8, 32], strides = [1, 1]} : vector<8x96xf32> to vector<8x32xf32>
    %329 = vector.broadcast %87 : vector<1x32xf32> to vector<8x32xf32>
    %330 = arith.addf %328, %329 : vector<8x32xf32>
    %331 = arith.mulf %325, %330 : vector<8x32xf32>
    %332 = arith.addf %327, %331 : vector<8x32xf32>
    %333 = math.tanh %332 : vector<8x32xf32>
    %334 = arith.subf %286, %333 : vector<8x32xf32>
    %335 = arith.mulf %326, %334 : vector<8x32xf32>
    %336 = arith.addf %333, %335 : vector<8x32xf32>
    %c3_103 = arith.constant 3 : index
    %c0_104 = arith.constant 0 : index
    %c32_105 = arith.constant 32 : index
    %337 = vector.load %arg5[%c3_103, %c0_104, %c32_105] : memref<8x8x64xf32, #tpu.memory_space<vmem>>, vector<1x8x32xf32>
    %338 = vector.shape_cast %337 : vector<1x8x32xf32> to vector<8x32xf32>
    %339 = vector.shape_cast %336 : vector<8x32xf32> to vector<1x8x32xf32>
    tpu.vector_store %arg5[%c3_103, %c0_104, %c32_105], %339 {strides = array<i32>} : memref<8x8x64xf32, #tpu.memory_space<vmem>>, vector<1x8x32xf32>,
    %340 = arith.truncf %311 : vector<8x32xf32> to vector<8x32xbf16>
    %cst_106 = arith.constant dense<0.000000e+00> : vector<8x96xf32>
    %341 = tpu.matmul %340, %53, %cst_106 {dimension_numbers = #tpu.dot_dimension_numbers<[1], [0], [0], [1], [0, 0, 1, 1], [], []>} : vector<8x32xbf16>, vector<32x96xbf16>, vector<8x96xf32> -> vector<8x96xf32>
    %342 = vector.extract_strided_slice %45 {offsets = [0, 0], sizes = [8, 64], strides = [1, 1]} : vector<8x96xf32> to vector<8x64xf32>
    %343 = vector.extract_strided_slice %341 {offsets = [0, 0], sizes = [8, 64], strides = [1, 1]} : vector<8x96xf32> to vector<8x64xf32>
    %344 = arith.addf %342, %343 : vector<8x64xf32>
    %345 = arith.negf %344 : vector<8x64xf32>
    %346 = math.exp %345 : vector<8x64xf32>
    %cst_107 = arith.constant 1.000000e+00 : f32
    %347 = vector.broadcast %cst_107 : f32 to vector<8x64xf32>
    %348 = arith.addf %347, %346 : vector<8x64xf32>
    %349 = arith.divf %347, %348 : vector<8x64xf32>
    %350 = vector.extract_strided_slice %349 {offsets = [0, 0], sizes = [8, 32], strides = [1, 1]} : vector<8x64xf32> to vector<8x32xf32>
    %351 = vector.extract_strided_slice %349 {offsets = [0, 32], sizes = [8, 32], strides = [1, 1]} : vector<8x64xf32> to vector<8x32xf32>
    %352 = vector.extract_strided_slice %45 {offsets = [0, 64], sizes = [8, 32], strides = [1, 1]} : vector<8x96xf32> to vector<8x32xf32>
    %353 = vector.extract_strided_slice %341 {offsets = [0, 64], sizes = [8, 32], strides = [1, 1]} : vector<8x96xf32> to vector<8x32xf32>
    %354 = vector.broadcast %55 : vector<1x32xf32> to vector<8x32xf32>
    %355 = arith.addf %353, %354 : vector<8x32xf32>
    %356 = arith.mulf %350, %355 : vector<8x32xf32>
    %357 = arith.addf %352, %356 : vector<8x32xf32>
    %358 = math.tanh %357 : vector<8x32xf32>
    %359 = arith.subf %311, %358 : vector<8x32xf32>
    %360 = arith.mulf %351, %359 : vector<8x32xf32>
    %361 = arith.addf %358, %360 : vector<8x32xf32>
    %c5_108 = arith.constant 5 : index
    %c0_109 = arith.constant 0 : index
    %c0_110 = arith.constant 0 : index
    %362 = vector.load %arg5[%c5_108, %c0_109, %c0_110] : memref<8x8x64xf32, #tpu.memory_space<vmem>>, vector<1x8x32xf32>
    %363 = vector.shape_cast %362 : vector<1x8x32xf32> to vector<8x32xf32>
    %364 = vector.shape_cast %361 : vector<8x32xf32> to vector<1x8x32xf32>
    tpu.vector_store %arg5[%c5_108, %c0_109, %c0_110], %364 {strides = array<i32>} : memref<8x8x64xf32, #tpu.memory_space<vmem>>, vector<1x8x32xf32>,
    %365 = arith.truncf %336 : vector<8x32xf32> to vector<8x32xbf16>
    %cst_111 = arith.constant dense<0.000000e+00> : vector<8x96xf32>
    %366 = tpu.matmul %365, %85, %cst_111 {dimension_numbers = #tpu.dot_dimension_numbers<[1], [0], [0], [1], [0, 0, 1, 1], [], []>} : vector<8x32xbf16>, vector<32x96xbf16>, vector<8x96xf32> -> vector<8x96xf32>
    %367 = vector.extract_strided_slice %68 {offsets = [0, 0], sizes = [8, 64], strides = [1, 1]} : vector<8x96xf32> to vector<8x64xf32>
    %368 = vector.extract_strided_slice %366 {offsets = [0, 0], sizes = [8, 64], strides = [1, 1]} : vector<8x96xf32> to vector<8x64xf32>
    %369 = arith.addf %367, %368 : vector<8x64xf32>
    %370 = arith.negf %369 : vector<8x64xf32>
    %371 = math.exp %370 : vector<8x64xf32>
    %cst_112 = arith.constant 1.000000e+00 : f32
    %372 = vector.broadcast %cst_112 : f32 to vector<8x64xf32>
    %373 = arith.addf %372, %371 : vector<8x64xf32>
    %374 = arith.divf %372, %373 : vector<8x64xf32>
    %375 = vector.extract_strided_slice %374 {offsets = [0, 0], sizes = [8, 32], strides = [1, 1]} : vector<8x64xf32> to vector<8x32xf32>
    %376 = vector.extract_strided_slice %374 {offsets = [0, 32], sizes = [8, 32], strides = [1, 1]} : vector<8x64xf32> to vector<8x32xf32>
    %377 = vector.extract_strided_slice %68 {offsets = [0, 64], sizes = [8, 32], strides = [1, 1]} : vector<8x96xf32> to vector<8x32xf32>
    %378 = vector.extract_strided_slice %366 {offsets = [0, 64], sizes = [8, 32], strides = [1, 1]} : vector<8x96xf32> to vector<8x32xf32>
    %379 = vector.broadcast %87 : vector<1x32xf32> to vector<8x32xf32>
    %380 = arith.addf %378, %379 : vector<8x32xf32>
    %381 = arith.mulf %375, %380 : vector<8x32xf32>
    %382 = arith.addf %377, %381 : vector<8x32xf32>
    %383 = math.tanh %382 : vector<8x32xf32>
    %384 = arith.subf %336, %383 : vector<8x32xf32>
    %385 = arith.mulf %376, %384 : vector<8x32xf32>
    %386 = arith.addf %383, %385 : vector<8x32xf32>
    %c2_113 = arith.constant 2 : index
    %c0_114 = arith.constant 0 : index
    %c32_115 = arith.constant 32 : index
    %387 = vector.load %arg5[%c2_113, %c0_114, %c32_115] : memref<8x8x64xf32, #tpu.memory_space<vmem>>, vector<1x8x32xf32>
    %388 = vector.shape_cast %387 : vector<1x8x32xf32> to vector<8x32xf32>
    %389 = vector.shape_cast %386 : vector<8x32xf32> to vector<1x8x32xf32>
    tpu.vector_store %arg5[%c2_113, %c0_114, %c32_115], %389 {strides = array<i32>} : memref<8x8x64xf32, #tpu.memory_space<vmem>>, vector<1x8x32xf32>,
    %390 = arith.truncf %361 : vector<8x32xf32> to vector<8x32xbf16>
    %cst_116 = arith.constant dense<0.000000e+00> : vector<8x96xf32>
    %391 = tpu.matmul %390, %53, %cst_116 {dimension_numbers = #tpu.dot_dimension_numbers<[1], [0], [0], [1], [0, 0, 1, 1], [], []>} : vector<8x32xbf16>, vector<32x96xbf16>, vector<8x96xf32> -> vector<8x96xf32>
    %392 = vector.extract_strided_slice %48 {offsets = [0, 0], sizes = [8, 64], strides = [1, 1]} : vector<8x96xf32> to vector<8x64xf32>
    %393 = vector.extract_strided_slice %391 {offsets = [0, 0], sizes = [8, 64], strides = [1, 1]} : vector<8x96xf32> to vector<8x64xf32>
    %394 = arith.addf %392, %393 : vector<8x64xf32>
    %395 = arith.negf %394 : vector<8x64xf32>
    %396 = math.exp %395 : vector<8x64xf32>
    %cst_117 = arith.constant 1.000000e+00 : f32
    %397 = vector.broadcast %cst_117 : f32 to vector<8x64xf32>
    %398 = arith.addf %397, %396 : vector<8x64xf32>
    %399 = arith.divf %397, %398 : vector<8x64xf32>
    %400 = vector.extract_strided_slice %399 {offsets = [0, 0], sizes = [8, 32], strides = [1, 1]} : vector<8x64xf32> to vector<8x32xf32>
    %401 = vector.extract_strided_slice %399 {offsets = [0, 32], sizes = [8, 32], strides = [1, 1]} : vector<8x64xf32> to vector<8x32xf32>
    %402 = vector.extract_strided_slice %48 {offsets = [0, 64], sizes = [8, 32], strides = [1, 1]} : vector<8x96xf32> to vector<8x32xf32>
    %403 = vector.extract_strided_slice %391 {offsets = [0, 64], sizes = [8, 32], strides = [1, 1]} : vector<8x96xf32> to vector<8x32xf32>
    %404 = vector.broadcast %55 : vector<1x32xf32> to vector<8x32xf32>
    %405 = arith.addf %403, %404 : vector<8x32xf32>
    %406 = arith.mulf %400, %405 : vector<8x32xf32>
    %407 = arith.addf %402, %406 : vector<8x32xf32>
    %408 = math.tanh %407 : vector<8x32xf32>
    %409 = arith.subf %361, %408 : vector<8x32xf32>
    %410 = arith.mulf %401, %409 : vector<8x32xf32>
    %411 = arith.addf %408, %410 : vector<8x32xf32>
    %c6_118 = arith.constant 6 : index
    %c0_119 = arith.constant 0 : index
    %c0_120 = arith.constant 0 : index
    %412 = vector.load %arg5[%c6_118, %c0_119, %c0_120] : memref<8x8x64xf32, #tpu.memory_space<vmem>>, vector<1x8x32xf32>
    %413 = vector.shape_cast %412 : vector<1x8x32xf32> to vector<8x32xf32>
    %414 = vector.shape_cast %411 : vector<8x32xf32> to vector<1x8x32xf32>
    tpu.vector_store %arg5[%c6_118, %c0_119, %c0_120], %414 {strides = array<i32>} : memref<8x8x64xf32, #tpu.memory_space<vmem>>, vector<1x8x32xf32>,
    %415 = arith.truncf %386 : vector<8x32xf32> to vector<8x32xbf16>
    %cst_121 = arith.constant dense<0.000000e+00> : vector<8x96xf32>
    %416 = tpu.matmul %415, %85, %cst_121 {dimension_numbers = #tpu.dot_dimension_numbers<[1], [0], [0], [1], [0, 0, 1, 1], [], []>} : vector<8x32xbf16>, vector<32x96xbf16>, vector<8x96xf32> -> vector<8x96xf32>
    %417 = vector.extract_strided_slice %65 {offsets = [0, 0], sizes = [8, 64], strides = [1, 1]} : vector<8x96xf32> to vector<8x64xf32>
    %418 = vector.extract_strided_slice %416 {offsets = [0, 0], sizes = [8, 64], strides = [1, 1]} : vector<8x96xf32> to vector<8x64xf32>
    %419 = arith.addf %417, %418 : vector<8x64xf32>
    %420 = arith.negf %419 : vector<8x64xf32>
    %421 = math.exp %420 : vector<8x64xf32>
    %cst_122 = arith.constant 1.000000e+00 : f32
    %422 = vector.broadcast %cst_122 : f32 to vector<8x64xf32>
    %423 = arith.addf %422, %421 : vector<8x64xf32>
    %424 = arith.divf %422, %423 : vector<8x64xf32>
    %425 = vector.extract_strided_slice %424 {offsets = [0, 0], sizes = [8, 32], strides = [1, 1]} : vector<8x64xf32> to vector<8x32xf32>
    %426 = vector.extract_strided_slice %424 {offsets = [0, 32], sizes = [8, 32], strides = [1, 1]} : vector<8x64xf32> to vector<8x32xf32>
    %427 = vector.extract_strided_slice %65 {offsets = [0, 64], sizes = [8, 32], strides = [1, 1]} : vector<8x96xf32> to vector<8x32xf32>
    %428 = vector.extract_strided_slice %416 {offsets = [0, 64], sizes = [8, 32], strides = [1, 1]} : vector<8x96xf32> to vector<8x32xf32>
    %429 = vector.broadcast %87 : vector<1x32xf32> to vector<8x32xf32>
    %430 = arith.addf %428, %429 : vector<8x32xf32>
    %431 = arith.mulf %425, %430 : vector<8x32xf32>
    %432 = arith.addf %427, %431 : vector<8x32xf32>
    %433 = math.tanh %432 : vector<8x32xf32>
    %434 = arith.subf %386, %433 : vector<8x32xf32>
    %435 = arith.mulf %426, %434 : vector<8x32xf32>
    %436 = arith.addf %433, %435 : vector<8x32xf32>
    %c1_123 = arith.constant 1 : index
    %c0_124 = arith.constant 0 : index
    %c32_125 = arith.constant 32 : index
    %437 = vector.load %arg5[%c1_123, %c0_124, %c32_125] : memref<8x8x64xf32, #tpu.memory_space<vmem>>, vector<1x8x32xf32>
    %438 = vector.shape_cast %437 : vector<1x8x32xf32> to vector<8x32xf32>
    %439 = vector.shape_cast %436 : vector<8x32xf32> to vector<1x8x32xf32>
    tpu.vector_store %arg5[%c1_123, %c0_124, %c32_125], %439 {strides = array<i32>} : memref<8x8x64xf32, #tpu.memory_space<vmem>>, vector<1x8x32xf32>,
    %440 = arith.truncf %411 : vector<8x32xf32> to vector<8x32xbf16>
    %cst_126 = arith.constant dense<0.000000e+00> : vector<8x96xf32>
    %441 = tpu.matmul %440, %53, %cst_126 {dimension_numbers = #tpu.dot_dimension_numbers<[1], [0], [0], [1], [0, 0, 1, 1], [], []>} : vector<8x32xbf16>, vector<32x96xbf16>, vector<8x96xf32> -> vector<8x96xf32>
    %442 = vector.extract_strided_slice %51 {offsets = [0, 0], sizes = [8, 64], strides = [1, 1]} : vector<8x96xf32> to vector<8x64xf32>
    %443 = vector.extract_strided_slice %441 {offsets = [0, 0], sizes = [8, 64], strides = [1, 1]} : vector<8x96xf32> to vector<8x64xf32>
    %444 = arith.addf %442, %443 : vector<8x64xf32>
    %445 = arith.negf %444 : vector<8x64xf32>
    %446 = math.exp %445 : vector<8x64xf32>
    %cst_127 = arith.constant 1.000000e+00 : f32
    %447 = vector.broadcast %cst_127 : f32 to vector<8x64xf32>
    %448 = arith.addf %447, %446 : vector<8x64xf32>
    %449 = arith.divf %447, %448 : vector<8x64xf32>
    %450 = vector.extract_strided_slice %449 {offsets = [0, 0], sizes = [8, 32], strides = [1, 1]} : vector<8x64xf32> to vector<8x32xf32>
    %451 = vector.extract_strided_slice %449 {offsets = [0, 32], sizes = [8, 32], strides = [1, 1]} : vector<8x64xf32> to vector<8x32xf32>
    %452 = vector.extract_strided_slice %51 {offsets = [0, 64], sizes = [8, 32], strides = [1, 1]} : vector<8x96xf32> to vector<8x32xf32>
    %453 = vector.extract_strided_slice %441 {offsets = [0, 64], sizes = [8, 32], strides = [1, 1]} : vector<8x96xf32> to vector<8x32xf32>
    %454 = vector.broadcast %55 : vector<1x32xf32> to vector<8x32xf32>
    %455 = arith.addf %453, %454 : vector<8x32xf32>
    %456 = arith.mulf %450, %455 : vector<8x32xf32>
    %457 = arith.addf %452, %456 : vector<8x32xf32>
    %458 = math.tanh %457 : vector<8x32xf32>
    %459 = arith.subf %411, %458 : vector<8x32xf32>
    %460 = arith.mulf %451, %459 : vector<8x32xf32>
    %461 = arith.addf %458, %460 : vector<8x32xf32>
    %c7_128 = arith.constant 7 : index
    %c0_129 = arith.constant 0 : index
    %c0_130 = arith.constant 0 : index
    %462 = vector.load %arg5[%c7_128, %c0_129, %c0_130] : memref<8x8x64xf32, #tpu.memory_space<vmem>>, vector<1x8x32xf32>
    %463 = vector.shape_cast %462 : vector<1x8x32xf32> to vector<8x32xf32>
    %464 = vector.shape_cast %461 : vector<8x32xf32> to vector<1x8x32xf32>
    tpu.vector_store %arg5[%c7_128, %c0_129, %c0_130], %464 {strides = array<i32>} : memref<8x8x64xf32, #tpu.memory_space<vmem>>, vector<1x8x32xf32>,
    %465 = arith.truncf %436 : vector<8x32xf32> to vector<8x32xbf16>
    %cst_131 = arith.constant dense<0.000000e+00> : vector<8x96xf32>
    %466 = tpu.matmul %465, %85, %cst_131 {dimension_numbers = #tpu.dot_dimension_numbers<[1], [0], [0], [1], [0, 0, 1, 1], [], []>} : vector<8x32xbf16>, vector<32x96xbf16>, vector<8x96xf32> -> vector<8x96xf32>
    %467 = vector.extract_strided_slice %62 {offsets = [0, 0], sizes = [8, 64], strides = [1, 1]} : vector<8x96xf32> to vector<8x64xf32>
    %468 = vector.extract_strided_slice %466 {offsets = [0, 0], sizes = [8, 64], strides = [1, 1]} : vector<8x96xf32> to vector<8x64xf32>
    %469 = arith.addf %467, %468 : vector<8x64xf32>
    %470 = arith.negf %469 : vector<8x64xf32>
    %471 = math.exp %470 : vector<8x64xf32>
    %cst_132 = arith.constant 1.000000e+00 : f32
    %472 = vector.broadcast %cst_132 : f32 to vector<8x64xf32>
    %473 = arith.addf %472, %471 : vector<8x64xf32>
    %474 = arith.divf %472, %473 : vector<8x64xf32>
    %475 = vector.extract_strided_slice %474 {offsets = [0, 0], sizes = [8, 32], strides = [1, 1]} : vector<8x64xf32> to vector<8x32xf32>
    %476 = vector.extract_strided_slice %474 {offsets = [0, 32], sizes = [8, 32], strides = [1, 1]} : vector<8x64xf32> to vector<8x32xf32>
    %477 = vector.extract_strided_slice %62 {offsets = [0, 64], sizes = [8, 32], strides = [1, 1]} : vector<8x96xf32> to vector<8x32xf32>
    %478 = vector.extract_strided_slice %466 {offsets = [0, 64], sizes = [8, 32], strides = [1, 1]} : vector<8x96xf32> to vector<8x32xf32>
    %479 = vector.broadcast %87 : vector<1x32xf32> to vector<8x32xf32>
    %480 = arith.addf %478, %479 : vector<8x32xf32>
    %481 = arith.mulf %475, %480 : vector<8x32xf32>
    %482 = arith.addf %477, %481 : vector<8x32xf32>
    %483 = math.tanh %482 : vector<8x32xf32>
    %484 = arith.subf %436, %483 : vector<8x32xf32>
    %485 = arith.mulf %476, %484 : vector<8x32xf32>
    %486 = arith.addf %483, %485 : vector<8x32xf32>
    %c0_133 = arith.constant 0 : index
    %c0_134 = arith.constant 0 : index
    %c32_135 = arith.constant 32 : index
    %487 = vector.load %arg5[%c0_133, %c0_134, %c32_135] : memref<8x8x64xf32, #tpu.memory_space<vmem>>, vector<1x8x32xf32>
    %488 = vector.shape_cast %487 : vector<1x8x32xf32> to vector<8x32xf32>
    %489 = vector.shape_cast %486 : vector<8x32xf32> to vector<1x8x32xf32>
    tpu.vector_store %arg5[%c0_133, %c0_134, %c32_135], %489 {strides = array<i32>} : memref<8x8x64xf32, #tpu.memory_space<vmem>>, vector<1x8x32xf32>,
    return
  }
}

module attributes {stable_mosaic.version = 11 : i64} {
  func.func @gru_layer_kernel(%arg0: memref<8x8x64xf32, #tpu.memory_space<vmem>>, %arg1: memref<2x64x96xbf16, #tpu.memory_space<vmem>>, %arg2: memref<2x32x96xbf16, #tpu.memory_space<vmem>>, %arg3: memref<2x1x96xf32, #tpu.memory_space<vmem>>, %arg4: memref<2x1x32xf32, #tpu.memory_space<vmem>>, %arg5: memref<8x8x64xf32, #tpu.memory_space<vmem>>) attributes {dimension_semantics = [], scalar_prefetch = 0 : i64, scratch_operands = 0 : i64, tpu.core_type = #tpu.core_type<tc>} {
    %c0 = arith.constant 0 : index
    %c0_0 = arith.constant 0 : index
    %c0_1 = arith.constant 0 : index
    %0 = vector.load %arg0[%c0, %c0_0, %c0_1] : memref<8x8x64xf32, #tpu.memory_space<vmem>>, vector<1x8x64xf32>
    %1 = vector.shape_cast %0 : vector<1x8x64xf32> to vector<8x64xf32>
    %2 = arith.truncf %1 : vector<8x64xf32> to vector<8x64xbf16>
    %c1 = arith.constant 1 : index
    %c0_2 = arith.constant 0 : index
    %c0_3 = arith.constant 0 : index
    %3 = vector.load %arg0[%c1, %c0_2, %c0_3] : memref<8x8x64xf32, #tpu.memory_space<vmem>>, vector<1x8x64xf32>
    %4 = vector.shape_cast %3 : vector<1x8x64xf32> to vector<8x64xf32>
    %5 = arith.truncf %4 : vector<8x64xf32> to vector<8x64xbf16>
    %c2 = arith.constant 2 : index
    %c0_4 = arith.constant 0 : index
    %c0_5 = arith.constant 0 : index
    %6 = vector.load %arg0[%c2, %c0_4, %c0_5] : memref<8x8x64xf32, #tpu.memory_space<vmem>>, vector<1x8x64xf32>
    %7 = vector.shape_cast %6 : vector<1x8x64xf32> to vector<8x64xf32>
    %8 = arith.truncf %7 : vector<8x64xf32> to vector<8x64xbf16>
    %c3 = arith.constant 3 : index
    %c0_6 = arith.constant 0 : index
    %c0_7 = arith.constant 0 : index
    %9 = vector.load %arg0[%c3, %c0_6, %c0_7] : memref<8x8x64xf32, #tpu.memory_space<vmem>>, vector<1x8x64xf32>
    %10 = vector.shape_cast %9 : vector<1x8x64xf32> to vector<8x64xf32>
    %11 = arith.truncf %10 : vector<8x64xf32> to vector<8x64xbf16>
    %c4 = arith.constant 4 : index
    %c0_8 = arith.constant 0 : index
    %c0_9 = arith.constant 0 : index
    %12 = vector.load %arg0[%c4, %c0_8, %c0_9] : memref<8x8x64xf32, #tpu.memory_space<vmem>>, vector<1x8x64xf32>
    %13 = vector.shape_cast %12 : vector<1x8x64xf32> to vector<8x64xf32>
    %14 = arith.truncf %13 : vector<8x64xf32> to vector<8x64xbf16>
    %c5 = arith.constant 5 : index
    %c0_10 = arith.constant 0 : index
    %c0_11 = arith.constant 0 : index
    %15 = vector.load %arg0[%c5, %c0_10, %c0_11] : memref<8x8x64xf32, #tpu.memory_space<vmem>>, vector<1x8x64xf32>
    %16 = vector.shape_cast %15 : vector<1x8x64xf32> to vector<8x64xf32>
    %17 = arith.truncf %16 : vector<8x64xf32> to vector<8x64xbf16>
    %c6 = arith.constant 6 : index
    %c0_12 = arith.constant 0 : index
    %c0_13 = arith.constant 0 : index
    %18 = vector.load %arg0[%c6, %c0_12, %c0_13] : memref<8x8x64xf32, #tpu.memory_space<vmem>>, vector<1x8x64xf32>
    %19 = vector.shape_cast %18 : vector<1x8x64xf32> to vector<8x64xf32>
    %20 = arith.truncf %19 : vector<8x64xf32> to vector<8x64xbf16>
    %c7 = arith.constant 7 : index
    %c0_14 = arith.constant 0 : index
    %c0_15 = arith.constant 0 : index
    %21 = vector.load %arg0[%c7, %c0_14, %c0_15] : memref<8x8x64xf32, #tpu.memory_space<vmem>>, vector<1x8x64xf32>
    %22 = vector.shape_cast %21 : vector<1x8x64xf32> to vector<8x64xf32>
    %23 = arith.truncf %22 : vector<8x64xf32> to vector<8x64xbf16>
    %c0_16 = arith.constant 0 : index
    %c0_17 = arith.constant 0 : index
    %c0_18 = arith.constant 0 : index
    %24 = vector.load %arg1[%c0_16, %c0_17, %c0_18] : memref<2x64x96xbf16, #tpu.memory_space<vmem>>, vector<1x64x96xbf16>
    %25 = vector.shape_cast %24 : vector<1x64x96xbf16> to vector<64x96xbf16>
    %c0_19 = arith.constant 0 : index
    %c0_20 = arith.constant 0 : index
    %c0_21 = arith.constant 0 : index
    %26 = vector.load %arg3[%c0_19, %c0_20, %c0_21] : memref<2x1x96xf32, #tpu.memory_space<vmem>>, vector<1x1x96xf32>
    %27 = vector.shape_cast %26 : vector<1x1x96xf32> to vector<1x96xf32>
    %cst = arith.constant dense<0.000000e+00> : vector<8x96xf32>
    %28 = tpu.matmul %2, %25, %cst {dimension_numbers = #tpu.dot_dimension_numbers<[1], [0], [0], [1], [0, 0, 1, 1], [], []>} : vector<8x64xbf16>, vector<64x96xbf16>, vector<8x96xf32> -> vector<8x96xf32>
    %29 = vector.broadcast %27 : vector<1x96xf32> to vector<8x96xf32>
    %30 = arith.addf %28, %29 : vector<8x96xf32>
    %cst_22 = arith.constant dense<0.000000e+00> : vector<8x96xf32>
    %31 = tpu.matmul %5, %25, %cst_22 {dimension_numbers = #tpu.dot_dimension_numbers<[1], [0], [0], [1], [0, 0, 1, 1], [], []>} : vector<8x64xbf16>, vector<64x96xbf16>, vector<8x96xf32> -> vector<8x96xf32>
    %32 = vector.broadcast %27 : vector<1x96xf32> to vector<8x96xf32>
    %33 = arith.addf %31, %32 : vector<8x96xf32>
    %cst_23 = arith.constant dense<0.000000e+00> : vector<8x96xf32>
    %34 = tpu.matmul %8, %25, %cst_23 {dimension_numbers = #tpu.dot_dimension_numbers<[1], [0], [0], [1], [0, 0, 1, 1], [], []>} : vector<8x64xbf16>, vector<64x96xbf16>, vector<8x96xf32> -> vector<8x96xf32>
    %35 = vector.broadcast %27 : vector<1x96xf32> to vector<8x96xf32>
    %36 = arith.addf %34, %35 : vector<8x96xf32>
    %cst_24 = arith.constant dense<0.000000e+00> : vector<8x96xf32>
    %37 = tpu.matmul %11, %25, %cst_24 {dimension_numbers = #tpu.dot_dimension_numbers<[1], [0], [0], [1], [0, 0, 1, 1], [], []>} : vector<8x64xbf16>, vector<64x96xbf16>, vector<8x96xf32> -> vector<8x96xf32>
    %38 = vector.broadcast %27 : vector<1x96xf32> to vector<8x96xf32>
    %39 = arith.addf %37, %38 : vector<8x96xf32>
    %cst_25 = arith.constant dense<0.000000e+00> : vector<8x96xf32>
    %40 = tpu.matmul %14, %25, %cst_25 {dimension_numbers = #tpu.dot_dimension_numbers<[1], [0], [0], [1], [0, 0, 1, 1], [], []>} : vector<8x64xbf16>, vector<64x96xbf16>, vector<8x96xf32> -> vector<8x96xf32>
    %41 = vector.broadcast %27 : vector<1x96xf32> to vector<8x96xf32>
    %42 = arith.addf %40, %41 : vector<8x96xf32>
    %cst_26 = arith.constant dense<0.000000e+00> : vector<8x96xf32>
    %43 = tpu.matmul %17, %25, %cst_26 {dimension_numbers = #tpu.dot_dimension_numbers<[1], [0], [0], [1], [0, 0, 1, 1], [], []>} : vector<8x64xbf16>, vector<64x96xbf16>, vector<8x96xf32> -> vector<8x96xf32>
    %44 = vector.broadcast %27 : vector<1x96xf32> to vector<8x96xf32>
    %45 = arith.addf %43, %44 : vector<8x96xf32>
    %cst_27 = arith.constant dense<0.000000e+00> : vector<8x96xf32>
    %46 = tpu.matmul %20, %25, %cst_27 {dimension_numbers = #tpu.dot_dimension_numbers<[1], [0], [0], [1], [0, 0, 1, 1], [], []>} : vector<8x64xbf16>, vector<64x96xbf16>, vector<8x96xf32> -> vector<8x96xf32>
    %47 = vector.broadcast %27 : vector<1x96xf32> to vector<8x96xf32>
    %48 = arith.addf %46, %47 : vector<8x96xf32>
    %cst_28 = arith.constant dense<0.000000e+00> : vector<8x96xf32>
    %49 = tpu.matmul %23, %25, %cst_28 {dimension_numbers = #tpu.dot_dimension_numbers<[1], [0], [0], [1], [0, 0, 1, 1], [], []>} : vector<8x64xbf16>, vector<64x96xbf16>, vector<8x96xf32> -> vector<8x96xf32>
    %50 = vector.broadcast %27 : vector<1x96xf32> to vector<8x96xf32>
    %51 = arith.addf %49, %50 : vector<8x96xf32>
    %c0_29 = arith.constant 0 : index
    %c0_30 = arith.constant 0 : index
    %c0_31 = arith.constant 0 : index
    %52 = vector.load %arg2[%c0_29, %c0_30, %c0_31] : memref<2x32x96xbf16, #tpu.memory_space<vmem>>, vector<1x32x96xbf16>
    %53 = vector.shape_cast %52 : vector<1x32x96xbf16> to vector<32x96xbf16>
    %c0_32 = arith.constant 0 : index
    %c0_33 = arith.constant 0 : index
    %c0_34 = arith.constant 0 : index
    %54 = vector.load %arg4[%c0_32, %c0_33, %c0_34] : memref<2x1x32xf32, #tpu.memory_space<vmem>>, vector<1x1x32xf32>
    %55 = vector.shape_cast %54 : vector<1x1x32xf32> to vector<1x32xf32>
    %c1_35 = arith.constant 1 : index
    %c0_36 = arith.constant 0 : index
    %c0_37 = arith.constant 0 : index
    %56 = vector.load %arg1[%c1_35, %c0_36, %c0_37] : memref<2x64x96xbf16, #tpu.memory_space<vmem>>, vector<1x64x96xbf16>
    %57 = vector.shape_cast %56 : vector<1x64x96xbf16> to vector<64x96xbf16>
    %c1_38 = arith.constant 1 : index
    %c0_39 = arith.constant 0 : index
    %c0_40 = arith.constant 0 : index
    %58 = vector.load %arg3[%c1_38, %c0_39, %c0_40] : memref<2x1x96xf32, #tpu.memory_space<vmem>>, vector<1x1x96xf32>
    %59 = vector.shape_cast %58 : vector<1x1x96xf32> to vector<1x96xf32>
    %cst_41 = arith.constant dense<0.000000e+00> : vector<8x96xf32>
    %60 = tpu.matmul %2, %57, %cst_41 {dimension_numbers = #tpu.dot_dimension_numbers<[1], [0], [0], [1], [0, 0, 1, 1], [], []>} : vector<8x64xbf16>, vector<64x96xbf16>, vector<8x96xf32> -> vector<8x96xf32>
    %61 = vector.broadcast %59 : vector<1x96xf32> to vector<8x96xf32>
    %62 = arith.addf %60, %61 : vector<8x96xf32>
    %cst_42 = arith.constant dense<0.000000e+00> : vector<8x96xf32>
    %63 = tpu.matmul %5, %57, %cst_42 {dimension_numbers = #tpu.dot_dimension_numbers<[1], [0], [0], [1], [0, 0, 1, 1], [], []>} : vector<8x64xbf16>, vector<64x96xbf16>, vector<8x96xf32> -> vector<8x96xf32>
    %64 = vector.broadcast %59 : vector<1x96xf32> to vector<8x96xf32>
    %65 = arith.addf %63, %64 : vector<8x96xf32>
    %cst_43 = arith.constant dense<0.000000e+00> : vector<8x96xf32>
    %66 = tpu.matmul %8, %57, %cst_43 {dimension_numbers = #tpu.dot_dimension_numbers<[1], [0], [0], [1], [0, 0, 1, 1], [], []>} : vector<8x64xbf16>, vector<64x96xbf16>, vector<8x96xf32> -> vector<8x96xf32>
    %67 = vector.broadcast %59 : vector<1x96xf32> to vector<8x96xf32>
    %68 = arith.addf %66, %67 : vector<8x96xf32>
    %cst_44 = arith.constant dense<0.000000e+00> : vector<8x96xf32>
    %69 = tpu.matmul %11, %57, %cst_44 {dimension_numbers = #tpu.dot_dimension_numbers<[1], [0], [0], [1], [0, 0, 1, 1], [], []>} : vector<8x64xbf16>, vector<64x96xbf16>, vector<8x96xf32> -> vector<8x96xf32>
    %70 = vector.broadcast %59 : vector<1x96xf32> to vector<8x96xf32>
    %71 = arith.addf %69, %70 : vector<8x96xf32>
    %cst_45 = arith.constant dense<0.000000e+00> : vector<8x96xf32>
    %72 = tpu.matmul %14, %57, %cst_45 {dimension_numbers = #tpu.dot_dimension_numbers<[1], [0], [0], [1], [0, 0, 1, 1], [], []>} : vector<8x64xbf16>, vector<64x96xbf16>, vector<8x96xf32> -> vector<8x96xf32>
    %73 = vector.broadcast %59 : vector<1x96xf32> to vector<8x96xf32>
    %74 = arith.addf %72, %73 : vector<8x96xf32>
    %cst_46 = arith.constant dense<0.000000e+00> : vector<8x96xf32>
    %75 = tpu.matmul %17, %57, %cst_46 {dimension_numbers = #tpu.dot_dimension_numbers<[1], [0], [0], [1], [0, 0, 1, 1], [], []>} : vector<8x64xbf16>, vector<64x96xbf16>, vector<8x96xf32> -> vector<8x96xf32>
    %76 = vector.broadcast %59 : vector<1x96xf32> to vector<8x96xf32>
    %77 = arith.addf %75, %76 : vector<8x96xf32>
    %cst_47 = arith.constant dense<0.000000e+00> : vector<8x96xf32>
    %78 = tpu.matmul %20, %57, %cst_47 {dimension_numbers = #tpu.dot_dimension_numbers<[1], [0], [0], [1], [0, 0, 1, 1], [], []>} : vector<8x64xbf16>, vector<64x96xbf16>, vector<8x96xf32> -> vector<8x96xf32>
    %79 = vector.broadcast %59 : vector<1x96xf32> to vector<8x96xf32>
    %80 = arith.addf %78, %79 : vector<8x96xf32>
    %cst_48 = arith.constant dense<0.000000e+00> : vector<8x96xf32>
    %81 = tpu.matmul %23, %57, %cst_48 {dimension_numbers = #tpu.dot_dimension_numbers<[1], [0], [0], [1], [0, 0, 1, 1], [], []>} : vector<8x64xbf16>, vector<64x96xbf16>, vector<8x96xf32> -> vector<8x96xf32>
    %82 = vector.broadcast %59 : vector<1x96xf32> to vector<8x96xf32>
    %83 = arith.addf %81, %82 : vector<8x96xf32>
    %c1_49 = arith.constant 1 : index
    %c0_50 = arith.constant 0 : index
    %c0_51 = arith.constant 0 : index
    %84 = vector.load %arg2[%c1_49, %c0_50, %c0_51] : memref<2x32x96xbf16, #tpu.memory_space<vmem>>, vector<1x32x96xbf16>
    %85 = vector.shape_cast %84 : vector<1x32x96xbf16> to vector<32x96xbf16>
    %c1_52 = arith.constant 1 : index
    %c0_53 = arith.constant 0 : index
    %c0_54 = arith.constant 0 : index
    %86 = vector.load %arg4[%c1_52, %c0_53, %c0_54] : memref<2x1x32xf32, #tpu.memory_space<vmem>>, vector<1x1x32xf32>
    %87 = vector.shape_cast %86 : vector<1x1x32xf32> to vector<1x32xf32>
    %cst_55 = arith.constant 0.000000e+00 : f32
    %88 = vector.broadcast %cst_55 : f32 to vector<8x32xf32>
    %cst_56 = arith.constant 0.000000e+00 : f32
    %89 = vector.broadcast %cst_56 : f32 to vector<8x32xf32>
    %90 = arith.truncf %88 : vector<8x32xf32> to vector<8x32xbf16>
    %cst_57 = arith.constant dense<0.000000e+00> : vector<8x96xf32>
    %91 = tpu.matmul %90, %53, %cst_57 {dimension_numbers = #tpu.dot_dimension_numbers<[1], [0], [0], [1], [0, 0, 1, 1], [], []>} : vector<8x32xbf16>, vector<32x96xbf16>, vector<8x96xf32> -> vector<8x96xf32>
    %92 = vector.extract_strided_slice %30 {offsets = [0, 0], sizes = [8, 64], strides = [1, 1]} : vector<8x96xf32> to vector<8x64xf32>
    %93 = vector.extract_strided_slice %91 {offsets = [0, 0], sizes = [8, 64], strides = [1, 1]} : vector<8x96xf32> to vector<8x64xf32>
    %94 = arith.addf %92, %93 : vector<8x64xf32>
    %95 = arith.negf %94 : vector<8x64xf32>
    %96 = math.exp %95 : vector<8x64xf32>
    %cst_58 = arith.constant 1.000000e+00 : f32
    %97 = vector.broadcast %cst_58 : f32 to vector<8x64xf32>
    %98 = arith.addf %97, %96 : vector<8x64xf32>
    %99 = arith.divf %97, %98 : vector<8x64xf32>
    %100 = vector.extract_strided_slice %99 {offsets = [0, 0], sizes = [8, 32], strides = [1, 1]} : vector<8x64xf32> to vector<8x32xf32>
    %101 = vector.extract_strided_slice %99 {offsets = [0, 32], sizes = [8, 32], strides = [1, 1]} : vector<8x64xf32> to vector<8x32xf32>
    %102 = vector.extract_strided_slice %30 {offsets = [0, 64], sizes = [8, 32], strides = [1, 1]} : vector<8x96xf32> to vector<8x32xf32>
    %103 = vector.extract_strided_slice %91 {offsets = [0, 64], sizes = [8, 32], strides = [1, 1]} : vector<8x96xf32> to vector<8x32xf32>
    %104 = vector.broadcast %55 : vector<1x32xf32> to vector<8x32xf32>
    %105 = arith.addf %103, %104 : vector<8x32xf32>
    %106 = arith.mulf %100, %105 : vector<8x32xf32>
    %107 = arith.addf %102, %106 : vector<8x32xf32>
    %108 = math.tanh %107 : vector<8x32xf32>
    %109 = arith.subf %88, %108 : vector<8x32xf32>
    %110 = arith.mulf %101, %109 : vector<8x32xf32>
    %111 = arith.addf %108, %110 : vector<8x32xf32>
    %c0_59 = arith.constant 0 : index
    %c0_60 = arith.constant 0 : index
    %c0_61 = arith.constant 0 : index
    %112 = vector.load %arg5[%c0_59, %c0_60, %c0_61] : memref<8x8x64xf32, #tpu.memory_space<vmem>>, vector<1x8x32xf32>
    %113 = vector.shape_cast %112 : vector<1x8x32xf32> to vector<8x32xf32>
    %114 = vector.shape_cast %111 : vector<8x32xf32> to vector<1x8x32xf32>
    tpu.vector_store %arg5[%c0_59, %c0_60, %c0_61], %114 {strides = array<i32>} : memref<8x8x64xf32, #tpu.memory_space<vmem>>, vector<1x8x32xf32>,
    %115 = arith.truncf %89 : vector<8x32xf32> to vector<8x32xbf16>
    %cst_62 = arith.constant dense<0.000000e+00> : vector<8x96xf32>
    %116 = tpu.matmul %115, %85, %cst_62 {dimension_numbers = #tpu.dot_dimension_numbers<[1], [0], [0], [1], [0, 0, 1, 1], [], []>} : vector<8x32xbf16>, vector<32x96xbf16>, vector<8x96xf32> -> vector<8x96xf32>
    %117 = vector.extract_strided_slice %83 {offsets = [0, 0], sizes = [8, 64], strides = [1, 1]} : vector<8x96xf32> to vector<8x64xf32>
    %118 = vector.extract_strided_slice %116 {offsets = [0, 0], sizes = [8, 64], strides = [1, 1]} : vector<8x96xf32> to vector<8x64xf32>
    %119 = arith.addf %117, %118 : vector<8x64xf32>
    %120 = arith.negf %119 : vector<8x64xf32>
    %121 = math.exp %120 : vector<8x64xf32>
    %cst_63 = arith.constant 1.000000e+00 : f32
    %122 = vector.broadcast %cst_63 : f32 to vector<8x64xf32>
    %123 = arith.addf %122, %121 : vector<8x64xf32>
    %124 = arith.divf %122, %123 : vector<8x64xf32>
    %125 = vector.extract_strided_slice %124 {offsets = [0, 0], sizes = [8, 32], strides = [1, 1]} : vector<8x64xf32> to vector<8x32xf32>
    %126 = vector.extract_strided_slice %124 {offsets = [0, 32], sizes = [8, 32], strides = [1, 1]} : vector<8x64xf32> to vector<8x32xf32>
    %127 = vector.extract_strided_slice %83 {offsets = [0, 64], sizes = [8, 32], strides = [1, 1]} : vector<8x96xf32> to vector<8x32xf32>
    %128 = vector.extract_strided_slice %116 {offsets = [0, 64], sizes = [8, 32], strides = [1, 1]} : vector<8x96xf32> to vector<8x32xf32>
    %129 = vector.broadcast %87 : vector<1x32xf32> to vector<8x32xf32>
    %130 = arith.addf %128, %129 : vector<8x32xf32>
    %131 = arith.mulf %125, %130 : vector<8x32xf32>
    %132 = arith.addf %127, %131 : vector<8x32xf32>
    %133 = math.tanh %132 : vector<8x32xf32>
    %134 = arith.subf %89, %133 : vector<8x32xf32>
    %135 = arith.mulf %126, %134 : vector<8x32xf32>
    %136 = arith.addf %133, %135 : vector<8x32xf32>
    %c7_64 = arith.constant 7 : index
    %c0_65 = arith.constant 0 : index
    %c32 = arith.constant 32 : index
    %137 = vector.load %arg5[%c7_64, %c0_65, %c32] : memref<8x8x64xf32, #tpu.memory_space<vmem>>, vector<1x8x32xf32>
    %138 = vector.shape_cast %137 : vector<1x8x32xf32> to vector<8x32xf32>
    %139 = vector.shape_cast %136 : vector<8x32xf32> to vector<1x8x32xf32>
    tpu.vector_store %arg5[%c7_64, %c0_65, %c32], %139 {strides = array<i32>} : memref<8x8x64xf32, #tpu.memory_space<vmem>>, vector<1x8x32xf32>,
    %140 = arith.truncf %111 : vector<8x32xf32> to vector<8x32xbf16>
    %cst_66 = arith.constant dense<0.000000e+00> : vector<8x96xf32>
    %141 = tpu.matmul %140, %53, %cst_66 {dimension_numbers = #tpu.dot_dimension_numbers<[1], [0], [0], [1], [0, 0, 1, 1], [], []>} : vector<8x32xbf16>, vector<32x96xbf16>, vector<8x96xf32> -> vector<8x96xf32>
    %142 = vector.extract_strided_slice %33 {offsets = [0, 0], sizes = [8, 64], strides = [1, 1]} : vector<8x96xf32> to vector<8x64xf32>
    %143 = vector.extract_strided_slice %141 {offsets = [0, 0], sizes = [8, 64], strides = [1, 1]} : vector<8x96xf32> to vector<8x64xf32>
    %144 = arith.addf %142, %143 : vector<8x64xf32>
    %145 = arith.negf %144 : vector<8x64xf32>
    %146 = math.exp %145 : vector<8x64xf32>
    %cst_67 = arith.constant 1.000000e+00 : f32
    %147 = vector.broadcast %cst_67 : f32 to vector<8x64xf32>
    %148 = arith.addf %147, %146 : vector<8x64xf32>
    %149 = arith.divf %147, %148 : vector<8x64xf32>
    %150 = vector.extract_strided_slice %149 {offsets = [0, 0], sizes = [8, 32], strides = [1, 1]} : vector<8x64xf32> to vector<8x32xf32>
    %151 = vector.extract_strided_slice %149 {offsets = [0, 32], sizes = [8, 32], strides = [1, 1]} : vector<8x64xf32> to vector<8x32xf32>
    %152 = vector.extract_strided_slice %33 {offsets = [0, 64], sizes = [8, 32], strides = [1, 1]} : vector<8x96xf32> to vector<8x32xf32>
    %153 = vector.extract_strided_slice %141 {offsets = [0, 64], sizes = [8, 32], strides = [1, 1]} : vector<8x96xf32> to vector<8x32xf32>
    %154 = vector.broadcast %55 : vector<1x32xf32> to vector<8x32xf32>
    %155 = arith.addf %153, %154 : vector<8x32xf32>
    %156 = arith.mulf %150, %155 : vector<8x32xf32>
    %157 = arith.addf %152, %156 : vector<8x32xf32>
    %158 = math.tanh %157 : vector<8x32xf32>
    %159 = arith.subf %111, %158 : vector<8x32xf32>
    %160 = arith.mulf %151, %159 : vector<8x32xf32>
    %161 = arith.addf %158, %160 : vector<8x32xf32>
    %c1_68 = arith.constant 1 : index
    %c0_69 = arith.constant 0 : index
    %c0_70 = arith.constant 0 : index
    %162 = vector.load %arg5[%c1_68, %c0_69, %c0_70] : memref<8x8x64xf32, #tpu.memory_space<vmem>>, vector<1x8x32xf32>
    %163 = vector.shape_cast %162 : vector<1x8x32xf32> to vector<8x32xf32>
    %164 = vector.shape_cast %161 : vector<8x32xf32> to vector<1x8x32xf32>
    tpu.vector_store %arg5[%c1_68, %c0_69, %c0_70], %164 {strides = array<i32>} : memref<8x8x64xf32, #tpu.memory_space<vmem>>, vector<1x8x32xf32>,
    %165 = arith.truncf %136 : vector<8x32xf32> to vector<8x32xbf16>
    %cst_71 = arith.constant dense<0.000000e+00> : vector<8x96xf32>
    %166 = tpu.matmul %165, %85, %cst_71 {dimension_numbers = #tpu.dot_dimension_numbers<[1], [0], [0], [1], [0, 0, 1, 1], [], []>} : vector<8x32xbf16>, vector<32x96xbf16>, vector<8x96xf32> -> vector<8x96xf32>
    %167 = vector.extract_strided_slice %80 {offsets = [0, 0], sizes = [8, 64], strides = [1, 1]} : vector<8x96xf32> to vector<8x64xf32>
    %168 = vector.extract_strided_slice %166 {offsets = [0, 0], sizes = [8, 64], strides = [1, 1]} : vector<8x96xf32> to vector<8x64xf32>
    %169 = arith.addf %167, %168 : vector<8x64xf32>
    %170 = arith.negf %169 : vector<8x64xf32>
    %171 = math.exp %170 : vector<8x64xf32>
    %cst_72 = arith.constant 1.000000e+00 : f32
    %172 = vector.broadcast %cst_72 : f32 to vector<8x64xf32>
    %173 = arith.addf %172, %171 : vector<8x64xf32>
    %174 = arith.divf %172, %173 : vector<8x64xf32>
    %175 = vector.extract_strided_slice %174 {offsets = [0, 0], sizes = [8, 32], strides = [1, 1]} : vector<8x64xf32> to vector<8x32xf32>
    %176 = vector.extract_strided_slice %174 {offsets = [0, 32], sizes = [8, 32], strides = [1, 1]} : vector<8x64xf32> to vector<8x32xf32>
    %177 = vector.extract_strided_slice %80 {offsets = [0, 64], sizes = [8, 32], strides = [1, 1]} : vector<8x96xf32> to vector<8x32xf32>
    %178 = vector.extract_strided_slice %166 {offsets = [0, 64], sizes = [8, 32], strides = [1, 1]} : vector<8x96xf32> to vector<8x32xf32>
    %179 = vector.broadcast %87 : vector<1x32xf32> to vector<8x32xf32>
    %180 = arith.addf %178, %179 : vector<8x32xf32>
    %181 = arith.mulf %175, %180 : vector<8x32xf32>
    %182 = arith.addf %177, %181 : vector<8x32xf32>
    %183 = math.tanh %182 : vector<8x32xf32>
    %184 = arith.subf %136, %183 : vector<8x32xf32>
    %185 = arith.mulf %176, %184 : vector<8x32xf32>
    %186 = arith.addf %183, %185 : vector<8x32xf32>
    %c6_73 = arith.constant 6 : index
    %c0_74 = arith.constant 0 : index
    %c32_75 = arith.constant 32 : index
    %187 = vector.load %arg5[%c6_73, %c0_74, %c32_75] : memref<8x8x64xf32, #tpu.memory_space<vmem>>, vector<1x8x32xf32>
    %188 = vector.shape_cast %187 : vector<1x8x32xf32> to vector<8x32xf32>
    %189 = vector.shape_cast %186 : vector<8x32xf32> to vector<1x8x32xf32>
    tpu.vector_store %arg5[%c6_73, %c0_74, %c32_75], %189 {strides = array<i32>} : memref<8x8x64xf32, #tpu.memory_space<vmem>>, vector<1x8x32xf32>,
    %190 = arith.truncf %161 : vector<8x32xf32> to vector<8x32xbf16>
    %cst_76 = arith.constant dense<0.000000e+00> : vector<8x96xf32>
    %191 = tpu.matmul %190, %53, %cst_76 {dimension_numbers = #tpu.dot_dimension_numbers<[1], [0], [0], [1], [0, 0, 1, 1], [], []>} : vector<8x32xbf16>, vector<32x96xbf16>, vector<8x96xf32> -> vector<8x96xf32>
    %192 = vector.extract_strided_slice %36 {offsets = [0, 0], sizes = [8, 64], strides = [1, 1]} : vector<8x96xf32> to vector<8x64xf32>
    %193 = vector.extract_strided_slice %191 {offsets = [0, 0], sizes = [8, 64], strides = [1, 1]} : vector<8x96xf32> to vector<8x64xf32>
    %194 = arith.addf %192, %193 : vector<8x64xf32>
    %195 = arith.negf %194 : vector<8x64xf32>
    %196 = math.exp %195 : vector<8x64xf32>
    %cst_77 = arith.constant 1.000000e+00 : f32
    %197 = vector.broadcast %cst_77 : f32 to vector<8x64xf32>
    %198 = arith.addf %197, %196 : vector<8x64xf32>
    %199 = arith.divf %197, %198 : vector<8x64xf32>
    %200 = vector.extract_strided_slice %199 {offsets = [0, 0], sizes = [8, 32], strides = [1, 1]} : vector<8x64xf32> to vector<8x32xf32>
    %201 = vector.extract_strided_slice %199 {offsets = [0, 32], sizes = [8, 32], strides = [1, 1]} : vector<8x64xf32> to vector<8x32xf32>
    %202 = vector.extract_strided_slice %36 {offsets = [0, 64], sizes = [8, 32], strides = [1, 1]} : vector<8x96xf32> to vector<8x32xf32>
    %203 = vector.extract_strided_slice %191 {offsets = [0, 64], sizes = [8, 32], strides = [1, 1]} : vector<8x96xf32> to vector<8x32xf32>
    %204 = vector.broadcast %55 : vector<1x32xf32> to vector<8x32xf32>
    %205 = arith.addf %203, %204 : vector<8x32xf32>
    %206 = arith.mulf %200, %205 : vector<8x32xf32>
    %207 = arith.addf %202, %206 : vector<8x32xf32>
    %208 = math.tanh %207 : vector<8x32xf32>
    %209 = arith.subf %161, %208 : vector<8x32xf32>
    %210 = arith.mulf %201, %209 : vector<8x32xf32>
    %211 = arith.addf %208, %210 : vector<8x32xf32>
    %c2_78 = arith.constant 2 : index
    %c0_79 = arith.constant 0 : index
    %c0_80 = arith.constant 0 : index
    %212 = vector.load %arg5[%c2_78, %c0_79, %c0_80] : memref<8x8x64xf32, #tpu.memory_space<vmem>>, vector<1x8x32xf32>
    %213 = vector.shape_cast %212 : vector<1x8x32xf32> to vector<8x32xf32>
    %214 = vector.shape_cast %211 : vector<8x32xf32> to vector<1x8x32xf32>
    tpu.vector_store %arg5[%c2_78, %c0_79, %c0_80], %214 {strides = array<i32>} : memref<8x8x64xf32, #tpu.memory_space<vmem>>, vector<1x8x32xf32>,
    %215 = arith.truncf %186 : vector<8x32xf32> to vector<8x32xbf16>
    %cst_81 = arith.constant dense<0.000000e+00> : vector<8x96xf32>
    %216 = tpu.matmul %215, %85, %cst_81 {dimension_numbers = #tpu.dot_dimension_numbers<[1], [0], [0], [1], [0, 0, 1, 1], [], []>} : vector<8x32xbf16>, vector<32x96xbf16>, vector<8x96xf32> -> vector<8x96xf32>
    %217 = vector.extract_strided_slice %77 {offsets = [0, 0], sizes = [8, 64], strides = [1, 1]} : vector<8x96xf32> to vector<8x64xf32>
    %218 = vector.extract_strided_slice %216 {offsets = [0, 0], sizes = [8, 64], strides = [1, 1]} : vector<8x96xf32> to vector<8x64xf32>
    %219 = arith.addf %217, %218 : vector<8x64xf32>
    %220 = arith.negf %219 : vector<8x64xf32>
    %221 = math.exp %220 : vector<8x64xf32>
    %cst_82 = arith.constant 1.000000e+00 : f32
    %222 = vector.broadcast %cst_82 : f32 to vector<8x64xf32>
    %223 = arith.addf %222, %221 : vector<8x64xf32>
    %224 = arith.divf %222, %223 : vector<8x64xf32>
    %225 = vector.extract_strided_slice %224 {offsets = [0, 0], sizes = [8, 32], strides = [1, 1]} : vector<8x64xf32> to vector<8x32xf32>
    %226 = vector.extract_strided_slice %224 {offsets = [0, 32], sizes = [8, 32], strides = [1, 1]} : vector<8x64xf32> to vector<8x32xf32>
    %227 = vector.extract_strided_slice %77 {offsets = [0, 64], sizes = [8, 32], strides = [1, 1]} : vector<8x96xf32> to vector<8x32xf32>
    %228 = vector.extract_strided_slice %216 {offsets = [0, 64], sizes = [8, 32], strides = [1, 1]} : vector<8x96xf32> to vector<8x32xf32>
    %229 = vector.broadcast %87 : vector<1x32xf32> to vector<8x32xf32>
    %230 = arith.addf %228, %229 : vector<8x32xf32>
    %231 = arith.mulf %225, %230 : vector<8x32xf32>
    %232 = arith.addf %227, %231 : vector<8x32xf32>
    %233 = math.tanh %232 : vector<8x32xf32>
    %234 = arith.subf %186, %233 : vector<8x32xf32>
    %235 = arith.mulf %226, %234 : vector<8x32xf32>
    %236 = arith.addf %233, %235 : vector<8x32xf32>
    %c5_83 = arith.constant 5 : index
    %c0_84 = arith.constant 0 : index
    %c32_85 = arith.constant 32 : index
    %237 = vector.load %arg5[%c5_83, %c0_84, %c32_85] : memref<8x8x64xf32, #tpu.memory_space<vmem>>, vector<1x8x32xf32>
    %238 = vector.shape_cast %237 : vector<1x8x32xf32> to vector<8x32xf32>
    %239 = vector.shape_cast %236 : vector<8x32xf32> to vector<1x8x32xf32>
    tpu.vector_store %arg5[%c5_83, %c0_84, %c32_85], %239 {strides = array<i32>} : memref<8x8x64xf32, #tpu.memory_space<vmem>>, vector<1x8x32xf32>,
    %240 = arith.truncf %211 : vector<8x32xf32> to vector<8x32xbf16>
    %cst_86 = arith.constant dense<0.000000e+00> : vector<8x96xf32>
    %241 = tpu.matmul %240, %53, %cst_86 {dimension_numbers = #tpu.dot_dimension_numbers<[1], [0], [0], [1], [0, 0, 1, 1], [], []>} : vector<8x32xbf16>, vector<32x96xbf16>, vector<8x96xf32> -> vector<8x96xf32>
    %242 = vector.extract_strided_slice %39 {offsets = [0, 0], sizes = [8, 64], strides = [1, 1]} : vector<8x96xf32> to vector<8x64xf32>
    %243 = vector.extract_strided_slice %241 {offsets = [0, 0], sizes = [8, 64], strides = [1, 1]} : vector<8x96xf32> to vector<8x64xf32>
    %244 = arith.addf %242, %243 : vector<8x64xf32>
    %245 = arith.negf %244 : vector<8x64xf32>
    %246 = math.exp %245 : vector<8x64xf32>
    %cst_87 = arith.constant 1.000000e+00 : f32
    %247 = vector.broadcast %cst_87 : f32 to vector<8x64xf32>
    %248 = arith.addf %247, %246 : vector<8x64xf32>
    %249 = arith.divf %247, %248 : vector<8x64xf32>
    %250 = vector.extract_strided_slice %249 {offsets = [0, 0], sizes = [8, 32], strides = [1, 1]} : vector<8x64xf32> to vector<8x32xf32>
    %251 = vector.extract_strided_slice %249 {offsets = [0, 32], sizes = [8, 32], strides = [1, 1]} : vector<8x64xf32> to vector<8x32xf32>
    %252 = vector.extract_strided_slice %39 {offsets = [0, 64], sizes = [8, 32], strides = [1, 1]} : vector<8x96xf32> to vector<8x32xf32>
    %253 = vector.extract_strided_slice %241 {offsets = [0, 64], sizes = [8, 32], strides = [1, 1]} : vector<8x96xf32> to vector<8x32xf32>
    %254 = vector.broadcast %55 : vector<1x32xf32> to vector<8x32xf32>
    %255 = arith.addf %253, %254 : vector<8x32xf32>
    %256 = arith.mulf %250, %255 : vector<8x32xf32>
    %257 = arith.addf %252, %256 : vector<8x32xf32>
    %258 = math.tanh %257 : vector<8x32xf32>
    %259 = arith.subf %211, %258 : vector<8x32xf32>
    %260 = arith.mulf %251, %259 : vector<8x32xf32>
    %261 = arith.addf %258, %260 : vector<8x32xf32>
    %c3_88 = arith.constant 3 : index
    %c0_89 = arith.constant 0 : index
    %c0_90 = arith.constant 0 : index
    %262 = vector.load %arg5[%c3_88, %c0_89, %c0_90] : memref<8x8x64xf32, #tpu.memory_space<vmem>>, vector<1x8x32xf32>
    %263 = vector.shape_cast %262 : vector<1x8x32xf32> to vector<8x32xf32>
    %264 = vector.shape_cast %261 : vector<8x32xf32> to vector<1x8x32xf32>
    tpu.vector_store %arg5[%c3_88, %c0_89, %c0_90], %264 {strides = array<i32>} : memref<8x8x64xf32, #tpu.memory_space<vmem>>, vector<1x8x32xf32>,
    %265 = arith.truncf %236 : vector<8x32xf32> to vector<8x32xbf16>
    %cst_91 = arith.constant dense<0.000000e+00> : vector<8x96xf32>
    %266 = tpu.matmul %265, %85, %cst_91 {dimension_numbers = #tpu.dot_dimension_numbers<[1], [0], [0], [1], [0, 0, 1, 1], [], []>} : vector<8x32xbf16>, vector<32x96xbf16>, vector<8x96xf32> -> vector<8x96xf32>
    %267 = vector.extract_strided_slice %74 {offsets = [0, 0], sizes = [8, 64], strides = [1, 1]} : vector<8x96xf32> to vector<8x64xf32>
    %268 = vector.extract_strided_slice %266 {offsets = [0, 0], sizes = [8, 64], strides = [1, 1]} : vector<8x96xf32> to vector<8x64xf32>
    %269 = arith.addf %267, %268 : vector<8x64xf32>
    %270 = arith.negf %269 : vector<8x64xf32>
    %271 = math.exp %270 : vector<8x64xf32>
    %cst_92 = arith.constant 1.000000e+00 : f32
    %272 = vector.broadcast %cst_92 : f32 to vector<8x64xf32>
    %273 = arith.addf %272, %271 : vector<8x64xf32>
    %274 = arith.divf %272, %273 : vector<8x64xf32>
    %275 = vector.extract_strided_slice %274 {offsets = [0, 0], sizes = [8, 32], strides = [1, 1]} : vector<8x64xf32> to vector<8x32xf32>
    %276 = vector.extract_strided_slice %274 {offsets = [0, 32], sizes = [8, 32], strides = [1, 1]} : vector<8x64xf32> to vector<8x32xf32>
    %277 = vector.extract_strided_slice %74 {offsets = [0, 64], sizes = [8, 32], strides = [1, 1]} : vector<8x96xf32> to vector<8x32xf32>
    %278 = vector.extract_strided_slice %266 {offsets = [0, 64], sizes = [8, 32], strides = [1, 1]} : vector<8x96xf32> to vector<8x32xf32>
    %279 = vector.broadcast %87 : vector<1x32xf32> to vector<8x32xf32>
    %280 = arith.addf %278, %279 : vector<8x32xf32>
    %281 = arith.mulf %275, %280 : vector<8x32xf32>
    %282 = arith.addf %277, %281 : vector<8x32xf32>
    %283 = math.tanh %282 : vector<8x32xf32>
    %284 = arith.subf %236, %283 : vector<8x32xf32>
    %285 = arith.mulf %276, %284 : vector<8x32xf32>
    %286 = arith.addf %283, %285 : vector<8x32xf32>
    %c4_93 = arith.constant 4 : index
    %c0_94 = arith.constant 0 : index
    %c32_95 = arith.constant 32 : index
    %287 = vector.load %arg5[%c4_93, %c0_94, %c32_95] : memref<8x8x64xf32, #tpu.memory_space<vmem>>, vector<1x8x32xf32>
    %288 = vector.shape_cast %287 : vector<1x8x32xf32> to vector<8x32xf32>
    %289 = vector.shape_cast %286 : vector<8x32xf32> to vector<1x8x32xf32>
    tpu.vector_store %arg5[%c4_93, %c0_94, %c32_95], %289 {strides = array<i32>} : memref<8x8x64xf32, #tpu.memory_space<vmem>>, vector<1x8x32xf32>,
    %290 = arith.truncf %261 : vector<8x32xf32> to vector<8x32xbf16>
    %cst_96 = arith.constant dense<0.000000e+00> : vector<8x96xf32>
    %291 = tpu.matmul %290, %53, %cst_96 {dimension_numbers = #tpu.dot_dimension_numbers<[1], [0], [0], [1], [0, 0, 1, 1], [], []>} : vector<8x32xbf16>, vector<32x96xbf16>, vector<8x96xf32> -> vector<8x96xf32>
    %292 = vector.extract_strided_slice %42 {offsets = [0, 0], sizes = [8, 64], strides = [1, 1]} : vector<8x96xf32> to vector<8x64xf32>
    %293 = vector.extract_strided_slice %291 {offsets = [0, 0], sizes = [8, 64], strides = [1, 1]} : vector<8x96xf32> to vector<8x64xf32>
    %294 = arith.addf %292, %293 : vector<8x64xf32>
    %295 = arith.negf %294 : vector<8x64xf32>
    %296 = math.exp %295 : vector<8x64xf32>
    %cst_97 = arith.constant 1.000000e+00 : f32
    %297 = vector.broadcast %cst_97 : f32 to vector<8x64xf32>
    %298 = arith.addf %297, %296 : vector<8x64xf32>
    %299 = arith.divf %297, %298 : vector<8x64xf32>
    %300 = vector.extract_strided_slice %299 {offsets = [0, 0], sizes = [8, 32], strides = [1, 1]} : vector<8x64xf32> to vector<8x32xf32>
    %301 = vector.extract_strided_slice %299 {offsets = [0, 32], sizes = [8, 32], strides = [1, 1]} : vector<8x64xf32> to vector<8x32xf32>
    %302 = vector.extract_strided_slice %42 {offsets = [0, 64], sizes = [8, 32], strides = [1, 1]} : vector<8x96xf32> to vector<8x32xf32>
    %303 = vector.extract_strided_slice %291 {offsets = [0, 64], sizes = [8, 32], strides = [1, 1]} : vector<8x96xf32> to vector<8x32xf32>
    %304 = vector.broadcast %55 : vector<1x32xf32> to vector<8x32xf32>
    %305 = arith.addf %303, %304 : vector<8x32xf32>
    %306 = arith.mulf %300, %305 : vector<8x32xf32>
    %307 = arith.addf %302, %306 : vector<8x32xf32>
    %308 = math.tanh %307 : vector<8x32xf32>
    %309 = arith.subf %261, %308 : vector<8x32xf32>
    %310 = arith.mulf %301, %309 : vector<8x32xf32>
    %311 = arith.addf %308, %310 : vector<8x32xf32>
    %c4_98 = arith.constant 4 : index
    %c0_99 = arith.constant 0 : index
    %c0_100 = arith.constant 0 : index
    %312 = vector.load %arg5[%c4_98, %c0_99, %c0_100] : memref<8x8x64xf32, #tpu.memory_space<vmem>>, vector<1x8x32xf32>
    %313 = vector.shape_cast %312 : vector<1x8x32xf32> to vector<8x32xf32>
    %314 = vector.shape_cast %311 : vector<8x32xf32> to vector<1x8x32xf32>
    tpu.vector_store %arg5[%c4_98, %c0_99, %c0_100], %314 {strides = array<i32>} : memref<8x8x64xf32, #tpu.memory_space<vmem>>, vector<1x8x32xf32>,
    %315 = arith.truncf %286 : vector<8x32xf32> to vector<8x32xbf16>
    %cst_101 = arith.constant dense<0.000000e+00> : vector<8x96xf32>
    %316 = tpu.matmul %315, %85, %cst_101 {dimension_numbers = #tpu.dot_dimension_numbers<[1], [0], [0], [1], [0, 0, 1, 1], [], []>} : vector<8x32xbf16>, vector<32x96xbf16>, vector<8x96xf32> -> vector<8x96xf32>
    %317 = vector.extract_strided_slice %71 {offsets = [0, 0], sizes = [8, 64], strides = [1, 1]} : vector<8x96xf32> to vector<8x64xf32>
    %318 = vector.extract_strided_slice %316 {offsets = [0, 0], sizes = [8, 64], strides = [1, 1]} : vector<8x96xf32> to vector<8x64xf32>
    %319 = arith.addf %317, %318 : vector<8x64xf32>
    %320 = arith.negf %319 : vector<8x64xf32>
    %321 = math.exp %320 : vector<8x64xf32>
    %cst_102 = arith.constant 1.000000e+00 : f32
    %322 = vector.broadcast %cst_102 : f32 to vector<8x64xf32>
    %323 = arith.addf %322, %321 : vector<8x64xf32>
    %324 = arith.divf %322, %323 : vector<8x64xf32>
    %325 = vector.extract_strided_slice %324 {offsets = [0, 0], sizes = [8, 32], strides = [1, 1]} : vector<8x64xf32> to vector<8x32xf32>
    %326 = vector.extract_strided_slice %324 {offsets = [0, 32], sizes = [8, 32], strides = [1, 1]} : vector<8x64xf32> to vector<8x32xf32>
    %327 = vector.extract_strided_slice %71 {offsets = [0, 64], sizes = [8, 32], strides = [1, 1]} : vector<8x96xf32> to vector<8x32xf32>
    %328 = vector.extract_strided_slice %316 {offsets = [0, 64], sizes = [8, 32], strides = [1, 1]} : vector<8x96xf32> to vector<8x32xf32>
    %329 = vector.broadcast %87 : vector<1x32xf32> to vector<8x32xf32>
    %330 = arith.addf %328, %329 : vector<8x32xf32>
    %331 = arith.mulf %325, %330 : vector<8x32xf32>
    %332 = arith.addf %327, %331 : vector<8x32xf32>
    %333 = math.tanh %332 : vector<8x32xf32>
    %334 = arith.subf %286, %333 : vector<8x32xf32>
    %335 = arith.mulf %326, %334 : vector<8x32xf32>
    %336 = arith.addf %333, %335 : vector<8x32xf32>
    %c3_103 = arith.constant 3 : index
    %c0_104 = arith.constant 0 : index
    %c32_105 = arith.constant 32 : index
    %337 = vector.load %arg5[%c3_103, %c0_104, %c32_105] : memref<8x8x64xf32, #tpu.memory_space<vmem>>, vector<1x8x32xf32>
    %338 = vector.shape_cast %337 : vector<1x8x32xf32> to vector<8x32xf32>
    %339 = vector.shape_cast %336 : vector<8x32xf32> to vector<1x8x32xf32>
    tpu.vector_store %arg5[%c3_103, %c0_104, %c32_105], %339 {strides = array<i32>} : memref<8x8x64xf32, #tpu.memory_space<vmem>>, vector<1x8x32xf32>,
    %340 = arith.truncf %311 : vector<8x32xf32> to vector<8x32xbf16>
    %cst_106 = arith.constant dense<0.000000e+00> : vector<8x96xf32>
    %341 = tpu.matmul %340, %53, %cst_106 {dimension_numbers = #tpu.dot_dimension_numbers<[1], [0], [0], [1], [0, 0, 1, 1], [], []>} : vector<8x32xbf16>, vector<32x96xbf16>, vector<8x96xf32> -> vector<8x96xf32>
    %342 = vector.extract_strided_slice %45 {offsets = [0, 0], sizes = [8, 64], strides = [1, 1]} : vector<8x96xf32> to vector<8x64xf32>
    %343 = vector.extract_strided_slice %341 {offsets = [0, 0], sizes = [8, 64], strides = [1, 1]} : vector<8x96xf32> to vector<8x64xf32>
    %344 = arith.addf %342, %343 : vector<8x64xf32>
    %345 = arith.negf %344 : vector<8x64xf32>
    %346 = math.exp %345 : vector<8x64xf32>
    %cst_107 = arith.constant 1.000000e+00 : f32
    %347 = vector.broadcast %cst_107 : f32 to vector<8x64xf32>
    %348 = arith.addf %347, %346 : vector<8x64xf32>
    %349 = arith.divf %347, %348 : vector<8x64xf32>
    %350 = vector.extract_strided_slice %349 {offsets = [0, 0], sizes = [8, 32], strides = [1, 1]} : vector<8x64xf32> to vector<8x32xf32>
    %351 = vector.extract_strided_slice %349 {offsets = [0, 32], sizes = [8, 32], strides = [1, 1]} : vector<8x64xf32> to vector<8x32xf32>
    %352 = vector.extract_strided_slice %45 {offsets = [0, 64], sizes = [8, 32], strides = [1, 1]} : vector<8x96xf32> to vector<8x32xf32>
    %353 = vector.extract_strided_slice %341 {offsets = [0, 64], sizes = [8, 32], strides = [1, 1]} : vector<8x96xf32> to vector<8x32xf32>
    %354 = vector.broadcast %55 : vector<1x32xf32> to vector<8x32xf32>
    %355 = arith.addf %353, %354 : vector<8x32xf32>
    %356 = arith.mulf %350, %355 : vector<8x32xf32>
    %357 = arith.addf %352, %356 : vector<8x32xf32>
    %358 = math.tanh %357 : vector<8x32xf32>
    %359 = arith.subf %311, %358 : vector<8x32xf32>
    %360 = arith.mulf %351, %359 : vector<8x32xf32>
    %361 = arith.addf %358, %360 : vector<8x32xf32>
    %c5_108 = arith.constant 5 : index
    %c0_109 = arith.constant 0 : index
    %c0_110 = arith.constant 0 : index
    %362 = vector.load %arg5[%c5_108, %c0_109, %c0_110] : memref<8x8x64xf32, #tpu.memory_space<vmem>>, vector<1x8x32xf32>
    %363 = vector.shape_cast %362 : vector<1x8x32xf32> to vector<8x32xf32>
    %364 = vector.shape_cast %361 : vector<8x32xf32> to vector<1x8x32xf32>
    tpu.vector_store %arg5[%c5_108, %c0_109, %c0_110], %364 {strides = array<i32>} : memref<8x8x64xf32, #tpu.memory_space<vmem>>, vector<1x8x32xf32>,
    %365 = arith.truncf %336 : vector<8x32xf32> to vector<8x32xbf16>
    %cst_111 = arith.constant dense<0.000000e+00> : vector<8x96xf32>
    %366 = tpu.matmul %365, %85, %cst_111 {dimension_numbers = #tpu.dot_dimension_numbers<[1], [0], [0], [1], [0, 0, 1, 1], [], []>} : vector<8x32xbf16>, vector<32x96xbf16>, vector<8x96xf32> -> vector<8x96xf32>
    %367 = vector.extract_strided_slice %68 {offsets = [0, 0], sizes = [8, 64], strides = [1, 1]} : vector<8x96xf32> to vector<8x64xf32>
    %368 = vector.extract_strided_slice %366 {offsets = [0, 0], sizes = [8, 64], strides = [1, 1]} : vector<8x96xf32> to vector<8x64xf32>
    %369 = arith.addf %367, %368 : vector<8x64xf32>
    %370 = arith.negf %369 : vector<8x64xf32>
    %371 = math.exp %370 : vector<8x64xf32>
    %cst_112 = arith.constant 1.000000e+00 : f32
    %372 = vector.broadcast %cst_112 : f32 to vector<8x64xf32>
    %373 = arith.addf %372, %371 : vector<8x64xf32>
    %374 = arith.divf %372, %373 : vector<8x64xf32>
    %375 = vector.extract_strided_slice %374 {offsets = [0, 0], sizes = [8, 32], strides = [1, 1]} : vector<8x64xf32> to vector<8x32xf32>
    %376 = vector.extract_strided_slice %374 {offsets = [0, 32], sizes = [8, 32], strides = [1, 1]} : vector<8x64xf32> to vector<8x32xf32>
    %377 = vector.extract_strided_slice %68 {offsets = [0, 64], sizes = [8, 32], strides = [1, 1]} : vector<8x96xf32> to vector<8x32xf32>
    %378 = vector.extract_strided_slice %366 {offsets = [0, 64], sizes = [8, 32], strides = [1, 1]} : vector<8x96xf32> to vector<8x32xf32>
    %379 = vector.broadcast %87 : vector<1x32xf32> to vector<8x32xf32>
    %380 = arith.addf %378, %379 : vector<8x32xf32>
    %381 = arith.mulf %375, %380 : vector<8x32xf32>
    %382 = arith.addf %377, %381 : vector<8x32xf32>
    %383 = math.tanh %382 : vector<8x32xf32>
    %384 = arith.subf %336, %383 : vector<8x32xf32>
    %385 = arith.mulf %376, %384 : vector<8x32xf32>
    %386 = arith.addf %383, %385 : vector<8x32xf32>
    %c2_113 = arith.constant 2 : index
    %c0_114 = arith.constant 0 : index
    %c32_115 = arith.constant 32 : index
    %387 = vector.load %arg5[%c2_113, %c0_114, %c32_115] : memref<8x8x64xf32, #tpu.memory_space<vmem>>, vector<1x8x32xf32>
    %388 = vector.shape_cast %387 : vector<1x8x32xf32> to vector<8x32xf32>
    %389 = vector.shape_cast %386 : vector<8x32xf32> to vector<1x8x32xf32>
    tpu.vector_store %arg5[%c2_113, %c0_114, %c32_115], %389 {strides = array<i32>} : memref<8x8x64xf32, #tpu.memory_space<vmem>>, vector<1x8x32xf32>,
    %390 = arith.truncf %361 : vector<8x32xf32> to vector<8x32xbf16>
    %cst_116 = arith.constant dense<0.000000e+00> : vector<8x96xf32>
    %391 = tpu.matmul %390, %53, %cst_116 {dimension_numbers = #tpu.dot_dimension_numbers<[1], [0], [0], [1], [0, 0, 1, 1], [], []>} : vector<8x32xbf16>, vector<32x96xbf16>, vector<8x96xf32> -> vector<8x96xf32>
    %392 = vector.extract_strided_slice %48 {offsets = [0, 0], sizes = [8, 64], strides = [1, 1]} : vector<8x96xf32> to vector<8x64xf32>
    %393 = vector.extract_strided_slice %391 {offsets = [0, 0], sizes = [8, 64], strides = [1, 1]} : vector<8x96xf32> to vector<8x64xf32>
    %394 = arith.addf %392, %393 : vector<8x64xf32>
    %395 = arith.negf %394 : vector<8x64xf32>
    %396 = math.exp %395 : vector<8x64xf32>
    %cst_117 = arith.constant 1.000000e+00 : f32
    %397 = vector.broadcast %cst_117 : f32 to vector<8x64xf32>
    %398 = arith.addf %397, %396 : vector<8x64xf32>
    %399 = arith.divf %397, %398 : vector<8x64xf32>
    %400 = vector.extract_strided_slice %399 {offsets = [0, 0], sizes = [8, 32], strides = [1, 1]} : vector<8x64xf32> to vector<8x32xf32>
    %401 = vector.extract_strided_slice %399 {offsets = [0, 32], sizes = [8, 32], strides = [1, 1]} : vector<8x64xf32> to vector<8x32xf32>
    %402 = vector.extract_strided_slice %48 {offsets = [0, 64], sizes = [8, 32], strides = [1, 1]} : vector<8x96xf32> to vector<8x32xf32>
    %403 = vector.extract_strided_slice %391 {offsets = [0, 64], sizes = [8, 32], strides = [1, 1]} : vector<8x96xf32> to vector<8x32xf32>
    %404 = vector.broadcast %55 : vector<1x32xf32> to vector<8x32xf32>
    %405 = arith.addf %403, %404 : vector<8x32xf32>
    %406 = arith.mulf %400, %405 : vector<8x32xf32>
    %407 = arith.addf %402, %406 : vector<8x32xf32>
    %408 = math.tanh %407 : vector<8x32xf32>
    %409 = arith.subf %361, %408 : vector<8x32xf32>
    %410 = arith.mulf %401, %409 : vector<8x32xf32>
    %411 = arith.addf %408, %410 : vector<8x32xf32>
    %c6_118 = arith.constant 6 : index
    %c0_119 = arith.constant 0 : index
    %c0_120 = arith.constant 0 : index
    %412 = vector.load %arg5[%c6_118, %c0_119, %c0_120] : memref<8x8x64xf32, #tpu.memory_space<vmem>>, vector<1x8x32xf32>
    %413 = vector.shape_cast %412 : vector<1x8x32xf32> to vector<8x32xf32>
    %414 = vector.shape_cast %411 : vector<8x32xf32> to vector<1x8x32xf32>
    tpu.vector_store %arg5[%c6_118, %c0_119, %c0_120], %414 {strides = array<i32>} : memref<8x8x64xf32, #tpu.memory_space<vmem>>, vector<1x8x32xf32>,
    %415 = arith.truncf %386 : vector<8x32xf32> to vector<8x32xbf16>
    %cst_121 = arith.constant dense<0.000000e+00> : vector<8x96xf32>
    %416 = tpu.matmul %415, %85, %cst_121 {dimension_numbers = #tpu.dot_dimension_numbers<[1], [0], [0], [1], [0, 0, 1, 1], [], []>} : vector<8x32xbf16>, vector<32x96xbf16>, vector<8x96xf32> -> vector<8x96xf32>
    %417 = vector.extract_strided_slice %65 {offsets = [0, 0], sizes = [8, 64], strides = [1, 1]} : vector<8x96xf32> to vector<8x64xf32>
    %418 = vector.extract_strided_slice %416 {offsets = [0, 0], sizes = [8, 64], strides = [1, 1]} : vector<8x96xf32> to vector<8x64xf32>
    %419 = arith.addf %417, %418 : vector<8x64xf32>
    %420 = arith.negf %419 : vector<8x64xf32>
    %421 = math.exp %420 : vector<8x64xf32>
    %cst_122 = arith.constant 1.000000e+00 : f32
    %422 = vector.broadcast %cst_122 : f32 to vector<8x64xf32>
    %423 = arith.addf %422, %421 : vector<8x64xf32>
    %424 = arith.divf %422, %423 : vector<8x64xf32>
    %425 = vector.extract_strided_slice %424 {offsets = [0, 0], sizes = [8, 32], strides = [1, 1]} : vector<8x64xf32> to vector<8x32xf32>
    %426 = vector.extract_strided_slice %424 {offsets = [0, 32], sizes = [8, 32], strides = [1, 1]} : vector<8x64xf32> to vector<8x32xf32>
    %427 = vector.extract_strided_slice %65 {offsets = [0, 64], sizes = [8, 32], strides = [1, 1]} : vector<8x96xf32> to vector<8x32xf32>
    %428 = vector.extract_strided_slice %416 {offsets = [0, 64], sizes = [8, 32], strides = [1, 1]} : vector<8x96xf32> to vector<8x32xf32>
    %429 = vector.broadcast %87 : vector<1x32xf32> to vector<8x32xf32>
    %430 = arith.addf %428, %429 : vector<8x32xf32>
    %431 = arith.mulf %425, %430 : vector<8x32xf32>
    %432 = arith.addf %427, %431 : vector<8x32xf32>
    %433 = math.tanh %432 : vector<8x32xf32>
    %434 = arith.subf %386, %433 : vector<8x32xf32>
    %435 = arith.mulf %426, %434 : vector<8x32xf32>
    %436 = arith.addf %433, %435 : vector<8x32xf32>
    %c1_123 = arith.constant 1 : index
    %c0_124 = arith.constant 0 : index
    %c32_125 = arith.constant 32 : index
    %437 = vector.load %arg5[%c1_123, %c0_124, %c32_125] : memref<8x8x64xf32, #tpu.memory_space<vmem>>, vector<1x8x32xf32>
    %438 = vector.shape_cast %437 : vector<1x8x32xf32> to vector<8x32xf32>
    %439 = vector.shape_cast %436 : vector<8x32xf32> to vector<1x8x32xf32>
    tpu.vector_store %arg5[%c1_123, %c0_124, %c32_125], %439 {strides = array<i32>} : memref<8x8x64xf32, #tpu.memory_space<vmem>>, vector<1x8x32xf32>,
    %440 = arith.truncf %411 : vector<8x32xf32> to vector<8x32xbf16>
    %cst_126 = arith.constant dense<0.000000e+00> : vector<8x96xf32>
    %441 = tpu.matmul %440, %53, %cst_126 {dimension_numbers = #tpu.dot_dimension_numbers<[1], [0], [0], [1], [0, 0, 1, 1], [], []>} : vector<8x32xbf16>, vector<32x96xbf16>, vector<8x96xf32> -> vector<8x96xf32>
    %442 = vector.extract_strided_slice %51 {offsets = [0, 0], sizes = [8, 64], strides = [1, 1]} : vector<8x96xf32> to vector<8x64xf32>
    %443 = vector.extract_strided_slice %441 {offsets = [0, 0], sizes = [8, 64], strides = [1, 1]} : vector<8x96xf32> to vector<8x64xf32>
    %444 = arith.addf %442, %443 : vector<8x64xf32>
    %445 = arith.negf %444 : vector<8x64xf32>
    %446 = math.exp %445 : vector<8x64xf32>
    %cst_127 = arith.constant 1.000000e+00 : f32
    %447 = vector.broadcast %cst_127 : f32 to vector<8x64xf32>
    %448 = arith.addf %447, %446 : vector<8x64xf32>
    %449 = arith.divf %447, %448 : vector<8x64xf32>
    %450 = vector.extract_strided_slice %449 {offsets = [0, 0], sizes = [8, 32], strides = [1, 1]} : vector<8x64xf32> to vector<8x32xf32>
    %451 = vector.extract_strided_slice %449 {offsets = [0, 32], sizes = [8, 32], strides = [1, 1]} : vector<8x64xf32> to vector<8x32xf32>
    %452 = vector.extract_strided_slice %51 {offsets = [0, 64], sizes = [8, 32], strides = [1, 1]} : vector<8x96xf32> to vector<8x32xf32>
    %453 = vector.extract_strided_slice %441 {offsets = [0, 64], sizes = [8, 32], strides = [1, 1]} : vector<8x96xf32> to vector<8x32xf32>
    %454 = vector.broadcast %55 : vector<1x32xf32> to vector<8x32xf32>
    %455 = arith.addf %453, %454 : vector<8x32xf32>
    %456 = arith.mulf %450, %455 : vector<8x32xf32>
    %457 = arith.addf %452, %456 : vector<8x32xf32>
    %458 = math.tanh %457 : vector<8x32xf32>
    %459 = arith.subf %411, %458 : vector<8x32xf32>
    %460 = arith.mulf %451, %459 : vector<8x32xf32>
    %461 = arith.addf %458, %460 : vector<8x32xf32>
    %c7_128 = arith.constant 7 : index
    %c0_129 = arith.constant 0 : index
    %c0_130 = arith.constant 0 : index
    %462 = vector.load %arg5[%c7_128, %c0_129, %c0_130] : memref<8x8x64xf32, #tpu.memory_space<vmem>>, vector<1x8x32xf32>
    %463 = vector.shape_cast %462 : vector<1x8x32xf32> to vector<8x32xf32>
    %464 = vector.shape_cast %461 : vector<8x32xf32> to vector<1x8x32xf32>
    tpu.vector_store %arg5[%c7_128, %c0_129, %c0_130], %464 {strides = array<i32>} : memref<8x8x64xf32, #tpu.memory_space<vmem>>, vector<1x8x32xf32>,
    %465 = arith.truncf %436 : vector<8x32xf32> to vector<8x32xbf16>
    %cst_131 = arith.constant dense<0.000000e+00> : vector<8x96xf32>
    %466 = tpu.matmul %465, %85, %cst_131 {dimension_numbers = #tpu.dot_dimension_numbers<[1], [0], [0], [1], [0, 0, 1, 1], [], []>} : vector<8x32xbf16>, vector<32x96xbf16>, vector<8x96xf32> -> vector<8x96xf32>
    %467 = vector.extract_strided_slice %62 {offsets = [0, 0], sizes = [8, 64], strides = [1, 1]} : vector<8x96xf32> to vector<8x64xf32>
    %468 = vector.extract_strided_slice %466 {offsets = [0, 0], sizes = [8, 64], strides = [1, 1]} : vector<8x96xf32> to vector<8x64xf32>
    %469 = arith.addf %467, %468 : vector<8x64xf32>
    %470 = arith.negf %469 : vector<8x64xf32>
    %471 = math.exp %470 : vector<8x64xf32>
    %cst_132 = arith.constant 1.000000e+00 : f32
    %472 = vector.broadcast %cst_132 : f32 to vector<8x64xf32>
    %473 = arith.addf %472, %471 : vector<8x64xf32>
    %474 = arith.divf %472, %473 : vector<8x64xf32>
    %475 = vector.extract_strided_slice %474 {offsets = [0, 0], sizes = [8, 32], strides = [1, 1]} : vector<8x64xf32> to vector<8x32xf32>
    %476 = vector.extract_strided_slice %474 {offsets = [0, 32], sizes = [8, 32], strides = [1, 1]} : vector<8x64xf32> to vector<8x32xf32>
    %477 = vector.extract_strided_slice %62 {offsets = [0, 64], sizes = [8, 32], strides = [1, 1]} : vector<8x96xf32> to vector<8x32xf32>
    %478 = vector.extract_strided_slice %466 {offsets = [0, 64], sizes = [8, 32], strides = [1, 1]} : vector<8x96xf32> to vector<8x32xf32>
    %479 = vector.broadcast %87 : vector<1x32xf32> to vector<8x32xf32>
    %480 = arith.addf %478, %479 : vector<8x32xf32>
    %481 = arith.mulf %475, %480 : vector<8x32xf32>
    %482 = arith.addf %477, %481 : vector<8x32xf32>
    %483 = math.tanh %482 : vector<8x32xf32>
    %484 = arith.subf %436, %483 : vector<8x32xf32>
    %485 = arith.mulf %476, %484 : vector<8x32xf32>
    %486 = arith.addf %483, %485 : vector<8x32xf32>
    %c0_133 = arith.constant 0 : index
    %c0_134 = arith.constant 0 : index
    %c32_135 = arith.constant 32 : index
    %487 = vector.load %arg5[%c0_133, %c0_134, %c32_135] : memref<8x8x64xf32, #tpu.memory_space<vmem>>, vector<1x8x32xf32>
    %488 = vector.shape_cast %487 : vector<1x8x32xf32> to vector<8x32xf32>
    %489 = vector.shape_cast %486 : vector<8x32xf32> to vector<1x8x32xf32>
    tpu.vector_store %arg5[%c0_133, %c0_134, %c32_135], %489 {strides = array<i32>} : memref<8x8x64xf32, #tpu.memory_space<vmem>>, vector<1x8x32xf32>,
    return
  }
}

</mosaic_0001>

<llo_original>
// kernel: rnn_encoder_forward.3
$region0: #{rnn_encoder_forward.3}
  #allocation0 [shape = 'u32[]', space=smem, size = 0x4, offset = 0x4, fixed_abs, tag = 'smem constant byte address 0x4 - core index']
  #allocation1 [shape = 'u32[144,128]{1,0:T(1,128)}', space=vmem, size = 0x12000, scoped, tag = 'internal scratch']
  %s0 = inlined_call_operand.vmem [shape: f32[8,8,64], index: 0, kind: input, shape index: {}]
  %s1 = inlined_call_operand.vmem [shape: bf16[2,64,96], index: 1, kind: input, shape index: {}]
  %s2 = inlined_call_operand.vmem [shape: bf16[2,32,96], index: 2, kind: input, shape index: {}]
  %s3 = inlined_call_operand.vmem [shape: f32[2,1,96], index: 3, kind: input, shape index: {}]
  %s4 = inlined_call_operand.vmem [shape: f32[2,1,32], index: 4, kind: input, shape index: {}]
  %s5 = inlined_call_operand.hbm [shape: f32[8,8,64], index: 5, kind: output, shape index: {}]
  %s6 = sld [smem:[#allocation0]]
  $region30: #{rnn_encoder_forward.3} parent=0
    _
  %s8 = ssub.s32 1, %s6
  %s9 = scalar_select 0, %s8, %s6
  $region1: #{rnn_encoder_forward.3} parent=0
    #allocation2 [shape = 'u8[32768]{0}', space=vmem, size = 0x8000, scoped, tag = 'output window, operand 0, single buffered']
    #allocation3 [shape = 's32[1]{0}', space=sflag, size = 0x4, scoped, tag = 'scoped memory for rnn_encoder_forward.3']
    %10 = vsyncpa [#allocation3], 0
    // Predicated region
    $region2: #{rnn_encoder_forward.3} parent=1 // pred_check
      _
    $region3: #{rnn_encoder_forward.3} parent=1 // pred_check_branch
      %12 = sbr.rel (0) target = $region5
    $region4: #{rnn_encoder_forward.3} parent=1 // pred_region
      _
    $region5: #{rnn_encoder_forward.3} parent=1 // pred_fallthru
      _
    // Predicated region
    $region6: #{rnn_encoder_forward.3} parent=1 // pred_check
      _
    $region7: #{rnn_encoder_forward.3} parent=1 // pred_check_branch
      %14 = sbr.rel (0) target = $region9
    $region8: #{rnn_encoder_forward.3} parent=1 // pred_region
      _
    $region9: #{rnn_encoder_forward.3} parent=1 // pred_fallthru
      _
    // Predicated region
    $region10: #{rnn_encoder_forward.3} parent=1 // pred_check
      _
    $region11: #{rnn_encoder_forward.3} parent=1 // pred_check_branch
      %16 = sbr.rel (0) target = $region13
    $region12: #{rnn_encoder_forward.3} parent=1 // pred_region
      _
    $region13: #{rnn_encoder_forward.3} parent=1 // pred_fallthru
      _
    // Predicated region
    $region14: #{rnn_encoder_forward.3} parent=1 // pred_check
      _
    $region15: #{rnn_encoder_forward.3} parent=1 // pred_check_branch
      %18 = sbr.rel (0) target = $region17
    $region16: #{rnn_encoder_forward.3} parent=1 // pred_region
      _
    $region17: #{rnn_encoder_forward.3} parent=1 // pred_fallthru
      _
    // Predicated region
    $region18: #{rnn_encoder_forward.3} parent=1 // pred_check
      _
    $region19: #{rnn_encoder_forward.3} parent=1 // pred_check_branch
      %20 = sbr.rel (0) target = $region21
    $region20: #{rnn_encoder_forward.3} parent=1 // pred_region
      _
    $region21: #{rnn_encoder_forward.3} parent=1 // pred_fallthru
      _
    %v22 = vld [vmem:[%s0] sm:$0xff]
    %v23 = vpack.c.bf16 %v22, %v22
    %s24 = scalar_lea.vmem %s0, 8
    %v25 = vld [vmem:[%s24] sm:$0xff]
    %v26 = vpack.c.bf16 %v25, %v25
    %s27 = scalar_lea.vmem %s0, 16
    %v28 = vld [vmem:[%s27] sm:$0xff]
    %v29 = vpack.c.bf16 %v28, %v28
    %s30 = scalar_lea.vmem %s0, 24
    %v31 = vld [vmem:[%s30] sm:$0xff]
    %v32 = vpack.c.bf16 %v31, %v31
    %s33 = scalar_lea.vmem %s0, 32
    %v34 = vld [vmem:[%s33] sm:$0xff]
    %v35 = vpack.c.bf16 %v34, %v34
    %s36 = scalar_lea.vmem %s0, 40
    %v37 = vld [vmem:[%s36] sm:$0xff]
    %v38 = vpack.c.bf16 %v37, %v37
    %s39 = scalar_lea.vmem %s0, 48
    %v40 = vld [vmem:[%s39] sm:$0xff]
    %v41 = vpack.c.bf16 %v40, %v40
    %s42 = scalar_lea.vmem %s0, 56
    %v43 = vld [vmem:[%s42] sm:$0xff]
    %v44 = vpack.c.bf16 %v43, %v43
    %v45 = vld [vmem:[%s1] sm:$0xf]
    %v46 = vld [vmem:[%s1 + $0x4] sm:$0xf]
    %v47 = vld [vmem:[%s1 + $0x8] sm:$0xf]
    %v48 = vld [vmem:[%s1 + $0xc] sm:$0xf]
    %v49 = vld [vmem:[%s1 + $0x10] sm:$0xf]
    %v50 = vld [vmem:[%s1 + $0x14] sm:$0xf]
    %v51 = vld [vmem:[%s1 + $0x18] sm:$0xf]
    %v52 = vld [vmem:[%s1 + $0x1c] sm:$0xf]
    %v53 = vld [vmem:[%s3] sm:$0x1]
    %v55 = vlaneseq
    %v56 = vshrl.u32 %v55, 7
    %v57 = vsub.s32 0, %v56
    %v58 = vrot.slane %v53, %v57
    %v68 = vunpack.c.l.b16 %v45
    %v69 = vunpack.c.l.b16 %v46
    %v70 = vunpack.c.l.b16 %v47
    %v71 = vunpack.c.l.b16 %v48
    %v72 = vunpack.c.l.b16 %v49
    %v73 = vunpack.c.l.b16 %v50
    %v74 = vunpack.c.l.b16 %v51
    %v75 = vunpack.c.l.b16 %v52
    %v76 = vpack.c.b16 %v69, %v68
    %v77 = vpack.c.b16 %v71, %v70
    %v78 = vpack.c.b16 %v73, %v72
    %v79 = vpack.c.b16 %v75, %v74
    %vm84 = vcmask 523264
    %v86 = vsel %vm84, %v23, 0
    %88 = vmatprep.subr.bf16.mxu0 0
    %89 = vmatpush1.bf16.msra.mxu0 %v76
    %90 = vmatprep.subr.bf16.mxu0 0
    %91 = vmatpush1.bf16.msra.mxu0 %v77
    %92 = vmatprep.subr.bf16.mxu0 0
    %93 = vmatpush1.bf16.msra.mxu0 %v78
    %94 = vmatprep.subr.bf16.mxu0 0
    %95 = vmatpush1.bf16.msra.mxu0 %v79
    %96 = vmatprep.subr.bf16.mxu0 0
    %97 = vmatpush1.bf16.msra.mxu0 0
    %98 = vmatprep.subr.bf16.mxu0 0
    %99 = vmatpush1.bf16.msra.mxu0 0
    %100 = vmatprep.subr.bf16.mxu0 0
    %101 = vmatpush1.bf16.msra.mxu0 0
    %102 = vmatprep.subr.bf16.mxu0 0
    %103 = vmatpush1.bf16.msra.mxu0 0
    %104 = vmatprep.subr.bf16.mxu0 0
    %105 = vmatpush1.bf16.msra.mxu0 0
    %106 = vmatprep.subr.bf16.mxu0 0
    %107 = vmatpush1.bf16.msra.mxu0 0
    %108 = vmatprep.subr.bf16.mxu0 0
    %109 = vmatpush1.bf16.msra.mxu0 0
    %110 = vmatprep.subr.bf16.mxu0 0
    %111 = vmatpush1.bf16.msra.mxu0 0
    %112 = vmatprep.subr.bf16.mxu0 0
    %113 = vmatpush1.bf16.msra.mxu0 0
    %114 = vmatprep.subr.bf16.mxu0 0
    %115 = vmatpush1.bf16.msra.mxu0 0
    %116 = vmatprep.subr.bf16.mxu0 0
    %117 = vmatpush1.bf16.msra.mxu0 0
    %118 = vmatprep.subr.bf16.mxu0 0
    %119 = vmatpush1.bf16.msra.mxu0 0
    %120 = vmatprep.mubr.bf16.mxu0 0
    %121 = vmatmul.mubr.bf16.gmra.mrb[0].mxu0 %v86
    %v122 = vpop.f32.mrb[0].mxu0
    %v123 = vadd.f32 %v58, %v122
    %v124 = vpop.f32.mrb[0].mxu0
    %v125 = vpop.f32.mrb[0].mxu0
    %v126 = vpop.f32.mrb[0].mxu0
    %127 = vdwg.mxu0
    %v129 = vsel %vm84, %v26, 0
    %131 = vmatprep.subr.bf16.mxu0 0
    %132 = vmatpush1.bf16.msra.mxu0 %v76
    %133 = vmatprep.subr.bf16.mxu0 0
    %134 = vmatpush1.bf16.msra.mxu0 %v77
    %135 = vmatprep.subr.bf16.mxu0 0
    %136 = vmatpush1.bf16.msra.mxu0 %v78
    %137 = vmatprep.subr.bf16.mxu0 0
    %138 = vmatpush1.bf16.msra.mxu0 %v79
    %139 = vmatprep.subr.bf16.mxu0 0
    %140 = vmatpush1.bf16.msra.mxu0 0
    %141 = vmatprep.subr.bf16.mxu0 0
    %142 = vmatpush1.bf16.msra.mxu0 0
    %143 = vmatprep.subr.bf16.mxu0 0
    %144 = vmatpush1.bf16.msra.mxu0 0
    %145 = vmatprep.subr.bf16.mxu0 0
    %146 = vmatpush1.bf16.msra.mxu0 0
    %147 = vmatprep.subr.bf16.mxu0 0
    %148 = vmatpush1.bf16.msra.mxu0 0
    %149 = vmatprep.subr.bf16.mxu0 0
    %150 = vmatpush1.bf16.msra.mxu0 0
    %151 = vmatprep.subr.bf16.mxu0 0
    %152 = vmatpush1.bf16.msra.mxu0 0
    %153 = vmatprep.subr.bf16.mxu0 0
    %154 = vmatpush1.bf16.msra.mxu0 0
    %155 = vmatprep.subr.bf16.mxu0 0
    %156 = vmatpush1.bf16.msra.mxu0 0
    %157 = vmatprep.subr.bf16.mxu0 0
    %158 = vmatpush1.bf16.msra.mxu0 0
    %159 = vmatprep.subr.bf16.mxu0 0
    %160 = vmatpush1.bf16.msra.mxu0 0
    %161 = vmatprep.subr.bf16.mxu0 0
    %162 = vmatpush1.bf16.msra.mxu0 0
    %163 = vmatprep.mubr.bf16.mxu0 0
    %164 = vmatmul.mubr.bf16.gmra.mrb[0].mxu0 %v129
    %v165 = vpop.f32.mrb[0].mxu0
    %v166 = vadd.f32 %v58, %v165
    %v167 = vpop.f32.mrb[0].mxu0
    %v168 = vpop.f32.mrb[0].mxu0
    %v169 = vpop.f32.mrb[0].mxu0
    %170 = vdwg.mxu0
    %v172 = vsel %vm84, %v29, 0
    %174 = vmatprep.subr.bf16.mxu0 0
    %175 = vmatpush1.bf16.msra.mxu0 %v76
    %176 = vmatprep.subr.bf16.mxu0 0
    %177 = vmatpush1.bf16.msra.mxu0 %v77
    %178 = vmatprep.subr.bf16.mxu0 0
    %179 = vmatpush1.bf16.msra.mxu0 %v78
    %180 = vmatprep.subr.bf16.mxu0 0
    %181 = vmatpush1.bf16.msra.mxu0 %v79
    %182 = vmatprep.subr.bf16.mxu0 0
    %183 = vmatpush1.bf16.msra.mxu0 0
    %184 = vmatprep.subr.bf16.mxu0 0
    %185 = vmatpush1.bf16.msra.mxu0 0
    %186 = vmatprep.subr.bf16.mxu0 0
    %187 = vmatpush1.bf16.msra.mxu0 0
    %188 = vmatprep.subr.bf16.mxu0 0
    %189 = vmatpush1.bf16.msra.mxu0 0
    %190 = vmatprep.subr.bf16.mxu0 0
    %191 = vmatpush1.bf16.msra.mxu0 0
    %192 = vmatprep.subr.bf16.mxu0 0
    %193 = vmatpush1.bf16.msra.mxu0 0
    %194 = vmatprep.subr.bf16.mxu0 0
    %195 = vmatpush1.bf16.msra.mxu0 0
    %196 = vmatprep.subr.bf16.mxu0 0
    %197 = vmatpush1.bf16.msra.mxu0 0
    %198 = vmatprep.subr.bf16.mxu0 0
    %199 = vmatpush1.bf16.msra.mxu0 0
    %200 = vmatprep.subr.bf16.mxu0 0
    %201 = vmatpush1.bf16.msra.mxu0 0
    %202 = vmatprep.subr.bf16.mxu0 0
    %203 = vmatpush1.bf16.msra.mxu0 0
    %204 = vmatprep.subr.bf16.mxu0 0
    %205 = vmatpush1.bf16.msra.mxu0 0
    %206 = vmatprep.mubr.bf16.mxu0 0
    %207 = vmatmul.mubr.bf16.gmra.mrb[0].mxu0 %v172
    %v208 = vpop.f32.mrb[0].mxu0
    %v209 = vadd.f32 %v58, %v208
    %v210 = vpop.f32.mrb[0].mxu0
    %v211 = vpop.f32.mrb[0].mxu0
    %v212 = vpop.f32.mrb[0].mxu0
    %213 = vdwg.mxu0
    %v215 = vsel %vm84, %v32, 0
    %217 = vmatprep.subr.bf16.mxu0 0
    %218 = vmatpush1.bf16.msra.mxu0 %v76
    %219 = vmatprep.subr.bf16.mxu0 0
    %220 = vmatpush1.bf16.msra.mxu0 %v77
    %221 = vmatprep.subr.bf16.mxu0 0
    %222 = vmatpush1.bf16.msra.mxu0 %v78
    %223 = vmatprep.subr.bf16.mxu0 0
    %224 = vmatpush1.bf16.msra.mxu0 %v79
    %225 = vmatprep.subr.bf16.mxu0 0
    %226 = vmatpush1.bf16.msra.mxu0 0
    %227 = vmatprep.subr.bf16.mxu0 0
    %228 = vmatpush1.bf16.msra.mxu0 0
    %229 = vmatprep.subr.bf16.mxu0 0
    %230 = vmatpush1.bf16.msra.mxu0 0
    %231 = vmatprep.subr.bf16.mxu0 0
    %232 = vmatpush1.bf16.msra.mxu0 0
    %233 = vmatprep.subr.bf16.mxu0 0
    %234 = vmatpush1.bf16.msra.mxu0 0
    %235 = vmatprep.subr.bf16.mxu0 0
    %236 = vmatpush1.bf16.msra.mxu0 0
    %237 = vmatprep.subr.bf16.mxu0 0
    %238 = vmatpush1.bf16.msra.mxu0 0
    %239 = vmatprep.subr.bf16.mxu0 0
    %240 = vmatpush1.bf16.msra.mxu0 0
    %241 = vmatprep.subr.bf16.mxu0 0
    %242 = vmatpush1.bf16.msra.mxu0 0
    %243 = vmatprep.subr.bf16.mxu0 0
    %244 = vmatpush1.bf16.msra.mxu0 0
    %245 = vmatprep.subr.bf16.mxu0 0
    %246 = vmatpush1.bf16.msra.mxu0 0
    %247 = vmatprep.subr.bf16.mxu0 0
    %248 = vmatpush1.bf16.msra.mxu0 0
    %249 = vmatprep.mubr.bf16.mxu0 0
    %250 = vmatmul.mubr.bf16.gmra.mrb[0].mxu0 %v215
    %v251 = vpop.f32.mrb[0].mxu0
    %v252 = vadd.f32 %v58, %v251
    %v253 = vpop.f32.mrb[0].mxu0
    %v254 = vpop.f32.mrb[0].mxu0
    %v255 = vpop.f32.mrb[0].mxu0
    %256 = vdwg.mxu0
    %v258 = vsel %vm84, %v35, 0
    %260 = vmatprep.subr.bf16.mxu0 0
    %261 = vmatpush1.bf16.msra.mxu0 %v76
    %262 = vmatprep.subr.bf16.mxu0 0
    %263 = vmatpush1.bf16.msra.mxu0 %v77
    %264 = vmatprep.subr.bf16.mxu0 0
    %265 = vmatpush1.bf16.msra.mxu0 %v78
    %266 = vmatprep.subr.bf16.mxu0 0
    %267 = vmatpush1.bf16.msra.mxu0 %v79
    %268 = vmatprep.subr.bf16.mxu0 0
    %269 = vmatpush1.bf16.msra.mxu0 0
    %270 = vmatprep.subr.bf16.mxu0 0
    %271 = vmatpush1.bf16.msra.mxu0 0
    %272 = vmatprep.subr.bf16.mxu0 0
    %273 = vmatpush1.bf16.msra.mxu0 0
    %274 = vmatprep.subr.bf16.mxu0 0
    %275 = vmatpush1.bf16.msra.mxu0 0
    %276 = vmatprep.subr.bf16.mxu0 0
    %277 = vmatpush1.bf16.msra.mxu0 0
    %278 = vmatprep.subr.bf16.mxu0 0
    %279 = vmatpush1.bf16.msra.mxu0 0
    %280 = vmatprep.subr.bf16.mxu0 0
    %281 = vmatpush1.bf16.msra.mxu0 0
    %282 = vmatprep.subr.bf16.mxu0 0
    %283 = vmatpush1.bf16.msra.mxu0 0
    %284 = vmatprep.subr.bf16.mxu0 0
    %285 = vmatpush1.bf16.msra.mxu0 0
    %286 = vmatprep.subr.bf16.mxu0 0
    %287 = vmatpush1.bf16.msra.mxu0 0
    %288 = vmatprep.subr.bf16.mxu0 0
    %289 = vmatpush1.bf16.msra.mxu0 0
    %290 = vmatprep.subr.bf16.mxu0 0
    %291 = vmatpush1.bf16.msra.mxu0 0
    %292 = vmatprep.mubr.bf16.mxu0 0
    %293 = vmatmul.mubr.bf16.gmra.mrb[0].mxu0 %v258
    %v294 = vpop.f32.mrb[0].mxu0
    %v295 = vadd.f32 %v58, %v294
    %v296 = vpop.f32.mrb[0].mxu0
    %v297 = vpop.f32.mrb[0].mxu0
    %v298 = vpop.f32.mrb[0].mxu0
    %299 = vdwg.mxu0
    %v301 = vsel %vm84, %v38, 0
    %303 = vmatprep.subr.bf16.mxu0 0
    %304 = vmatpush1.bf16.msra.mxu0 %v76
    %305 = vmatprep.subr.bf16.mxu0 0
    %306 = vmatpush1.bf16.msra.mxu0 %v77
    %307 = vmatprep.subr.bf16.mxu0 0
    %308 = vmatpush1.bf16.msra.mxu0 %v78
    %309 = vmatprep.subr.bf16.mxu0 0
    %310 = vmatpush1.bf16.msra.mxu0 %v79
    %311 = vmatprep.subr.bf16.mxu0 0
    %312 = vmatpush1.bf16.msra.mxu0 0
    %313 = vmatprep.subr.bf16.mxu0 0
    %314 = vmatpush1.bf16.msra.mxu0 0
    %315 = vmatprep.subr.bf16.mxu0 0
    %316 = vmatpush1.bf16.msra.mxu0 0
    %317 = vmatprep.subr.bf16.mxu0 0
    %318 = vmatpush1.bf16.msra.mxu0 0
    %319 = vmatprep.subr.bf16.mxu0 0
    %320 = vmatpush1.bf16.msra.mxu0 0
    %321 = vmatprep.subr.bf16.mxu0 0
    %322 = vmatpush1.bf16.msra.mxu0 0
    %323 = vmatprep.subr.bf16.mxu0 0
    %324 = vmatpush1.bf16.msra.mxu0 0
    %325 = vmatprep.subr.bf16.mxu0 0
    %326 = vmatpush1.bf16.msra.mxu0 0
    %327 = vmatprep.subr.bf16.mxu0 0
    %328 = vmatpush1.bf16.msra.mxu0 0
    %329 = vmatprep.subr.bf16.mxu0 0
    %330 = vmatpush1.bf16.msra.mxu0 0
    %331 = vmatprep.subr.bf16.mxu0 0
    %332 = vmatpush1.bf16.msra.mxu0 0
    %333 = vmatprep.subr.bf16.mxu0 0
    %334 = vmatpush1.bf16.msra.mxu0 0
    %335 = vmatprep.mubr.bf16.mxu0 0
    %336 = vmatmul.mubr.bf16.gmra.mrb[0].mxu0 %v301
    %v337 = vpop.f32.mrb[0].mxu0
    %v338 = vadd.f32 %v58, %v337
    %v339 = vpop.f32.mrb[0].mxu0
    %v340 = vpop.f32.mrb[0].mxu0
    %v341 = vpop.f32.mrb[0].mxu0
    %342 = vdwg.mxu0
    %v344 = vsel %vm84, %v41, 0
    %346 = vmatprep.subr.bf16.mxu0 0
    %347 = vmatpush1.bf16.msra.mxu0 %v76
    %348 = vmatprep.subr.bf16.mxu0 0
    %349 = vmatpush1.bf16.msra.mxu0 %v77
    %350 = vmatprep.subr.bf16.mxu0 0
    %351 = vmatpush1.bf16.msra.mxu0 %v78
    %352 = vmatprep.subr.bf16.mxu0 0
    %353 = vmatpush1.bf16.msra.mxu0 %v79
    %354 = vmatprep.subr.bf16.mxu0 0
    %355 = vmatpush1.bf16.msra.mxu0 0
    %356 = vmatprep.subr.bf16.mxu0 0
    %357 = vmatpush1.bf16.msra.mxu0 0
    %358 = vmatprep.subr.bf16.mxu0 0
    %359 = vmatpush1.bf16.msra.mxu0 0
    %360 = vmatprep.subr.bf16.mxu0 0
    %361 = vmatpush1.bf16.msra.mxu0 0
    %362 = vmatprep.subr.bf16.mxu0 0
    %363 = vmatpush1.bf16.msra.mxu0 0
    %364 = vmatprep.subr.bf16.mxu0 0
    %365 = vmatpush1.bf16.msra.mxu0 0
    %366 = vmatprep.subr.bf16.mxu0 0
    %367 = vmatpush1.bf16.msra.mxu0 0
    %368 = vmatprep.subr.bf16.mxu0 0
    %369 = vmatpush1.bf16.msra.mxu0 0
    %370 = vmatprep.subr.bf16.mxu0 0
    %371 = vmatpush1.bf16.msra.mxu0 0
    %372 = vmatprep.subr.bf16.mxu0 0
    %373 = vmatpush1.bf16.msra.mxu0 0
    %374 = vmatprep.subr.bf16.mxu0 0
    %375 = vmatpush1.bf16.msra.mxu0 0
    %376 = vmatprep.subr.bf16.mxu0 0
    %377 = vmatpush1.bf16.msra.mxu0 0
    %378 = vmatprep.mubr.bf16.mxu0 0
    %379 = vmatmul.mubr.bf16.gmra.mrb[0].mxu0 %v344
    %v380 = vpop.f32.mrb[0].mxu0
    %v381 = vadd.f32 %v58, %v380
    %v382 = vpop.f32.mrb[0].mxu0
    %v383 = vpop.f32.mrb[0].mxu0
    %v384 = vpop.f32.mrb[0].mxu0
    %385 = vdwg.mxu0
    %v387 = vsel %vm84, %v44, 0
    %389 = vmatprep.subr.bf16.mxu0 0
    %390 = vmatpush1.bf16.msra.mxu0 %v76
    %391 = vmatprep.subr.bf16.mxu0 0
    %392 = vmatpush1.bf16.msra.mxu0 %v77
    %393 = vmatprep.subr.bf16.mxu0 0
    %394 = vmatpush1.bf16.msra.mxu0 %v78
    %395 = vmatprep.subr.bf16.mxu0 0
    %396 = vmatpush1.bf16.msra.mxu0 %v79
    %397 = vmatprep.subr.bf16.mxu0 0
    %398 = vmatpush1.bf16.msra.mxu0 0
    %399 = vmatprep.subr.bf16.mxu0 0
    %400 = vmatpush1.bf16.msra.mxu0 0
    %401 = vmatprep.subr.bf16.mxu0 0
    %402 = vmatpush1.bf16.msra.mxu0 0
    %403 = vmatprep.subr.bf16.mxu0 0
    %404 = vmatpush1.bf16.msra.mxu0 0
    %405 = vmatprep.subr.bf16.mxu0 0
    %406 = vmatpush1.bf16.msra.mxu0 0
    %407 = vmatprep.subr.bf16.mxu0 0
    %408 = vmatpush1.bf16.msra.mxu0 0
    %409 = vmatprep.subr.bf16.mxu0 0
    %410 = vmatpush1.bf16.msra.mxu0 0
    %411 = vmatprep.subr.bf16.mxu0 0
    %412 = vmatpush1.bf16.msra.mxu0 0
    %413 = vmatprep.subr.bf16.mxu0 0
    %414 = vmatpush1.bf16.msra.mxu0 0
    %415 = vmatprep.subr.bf16.mxu0 0
    %416 = vmatpush1.bf16.msra.mxu0 0
    %417 = vmatprep.subr.bf16.mxu0 0
    %418 = vmatpush1.bf16.msra.mxu0 0
    %419 = vmatprep.subr.bf16.mxu0 0
    %420 = vmatpush1.bf16.msra.mxu0 0
    %421 = vmatprep.mubr.bf16.mxu0 0
    %422 = vmatmul.mubr.bf16.gmra.mrb[0].mxu0 %v387
    %v423 = vpop.f32.mrb[0].mxu0
    %v424 = vadd.f32 %v58, %v423
    %v425 = vpop.f32.mrb[0].mxu0
    %v426 = vpop.f32.mrb[0].mxu0
    %v427 = vpop.f32.mrb[0].mxu0
    %428 = vdwg.mxu0
    %v429 = vld [vmem:[%s2] sm:$0xf]
    %v430 = vld [vmem:[%s2 + $0x4] sm:$0xf]
    %v431 = vld [vmem:[%s2 + $0x8] sm:$0xf]
    %v432 = vld [vmem:[%s2 + $0xc] sm:$0xf]
    %v433 = vld [vmem:[%s4] sm:$0x1]
    %s434 = scalar_lea.vmem %s1, 32
    %v435 = vld [vmem:[%s434] sm:$0xf]
    %v436 = vld [vmem:[%s434 + $0x4] sm:$0xf]
    %v437 = vld [vmem:[%s434 + $0x8] sm:$0xf]
    %v438 = vld [vmem:[%s434 + $0xc] sm:$0xf]
    %v439 = vld [vmem:[%s434 + $0x10] sm:$0xf]
    %v440 = vld [vmem:[%s434 + $0x14] sm:$0xf]
    %v441 = vld [vmem:[%s434 + $0x18] sm:$0xf]
    %v442 = vld [vmem:[%s434 + $0x1c] sm:$0xf]
    %s443 = scalar_lea.vmem %s3, 1
    %v444 = vld [vmem:[%s443] sm:$0x1]
    %v446 = vlaneseq
    %v447 = vshrl.u32 %v446, 7
    %v448 = vsub.s32 0, %v447
    %v449 = vrot.slane %v444, %v448
    %v459 = vunpack.c.l.b16 %v435
    %v460 = vunpack.c.l.b16 %v436
    %v461 = vunpack.c.l.b16 %v437
    %v462 = vunpack.c.l.b16 %v438
    %v463 = vunpack.c.l.b16 %v439
    %v464 = vunpack.c.l.b16 %v440
    %v465 = vunpack.c.l.b16 %v441
    %v466 = vunpack.c.l.b16 %v442
    %v467 = vpack.c.b16 %v460, %v459
    %v468 = vpack.c.b16 %v462, %v461
    %v469 = vpack.c.b16 %v464, %v463
    %v470 = vpack.c.b16 %v466, %v465
    %475 = vmatprep.subr.bf16.mxu0 0
    %476 = vmatpush1.bf16.msra.mxu0 %v467
    %477 = vmatprep.subr.bf16.mxu0 0
    %478 = vmatpush1.bf16.msra.mxu0 %v468
    %479 = vmatprep.subr.bf16.mxu0 0
    %480 = vmatpush1.bf16.msra.mxu0 %v469
    %481 = vmatprep.subr.bf16.mxu0 0
    %482 = vmatpush1.bf16.msra.mxu0 %v470
    %483 = vmatprep.subr.bf16.mxu0 0
    %484 = vmatpush1.bf16.msra.mxu0 0
    %485 = vmatprep.subr.bf16.mxu0 0
    %486 = vmatpush1.bf16.msra.mxu0 0
    %487 = vmatprep.subr.bf16.mxu0 0
    %488 = vmatpush1.bf16.msra.mxu0 0
    %489 = vmatprep.subr.bf16.mxu0 0
    %490 = vmatpush1.bf16.msra.mxu0 0
    %491 = vmatprep.subr.bf16.mxu0 0
    %492 = vmatpush1.bf16.msra.mxu0 0
    %493 = vmatprep.subr.bf16.mxu0 0
    %494 = vmatpush1.bf16.msra.mxu0 0
    %495 = vmatprep.subr.bf16.mxu0 0
    %496 = vmatpush1.bf16.msra.mxu0 0
    %497 = vmatprep.subr.bf16.mxu0 0
    %498 = vmatpush1.bf16.msra.mxu0 0
    %499 = vmatprep.subr.bf16.mxu0 0
    %500 = vmatpush1.bf16.msra.mxu0 0
    %501 = vmatprep.subr.bf16.mxu0 0
    %502 = vmatpush1.bf16.msra.mxu0 0
    %503 = vmatprep.subr.bf16.mxu0 0
    %504 = vmatpush1.bf16.msra.mxu0 0
    %505 = vmatprep.subr.bf16.mxu0 0
    %506 = vmatpush1.bf16.msra.mxu0 0
    %507 = vmatprep.mubr.bf16.mxu0 0
    %508 = vmatmul.mubr.bf16.gmra.mrb[0].mxu0 %v86
    %v509 = vpop.f32.mrb[0].mxu0
    %v510 = vadd.f32 %v449, %v509
    %v511 = vpop.f32.mrb[0].mxu0
    %v512 = vpop.f32.mrb[0].mxu0
    %v513 = vpop.f32.mrb[0].mxu0
    %514 = vdwg.mxu0
    %515 = vmatprep.subr.bf16.mxu0 0
    %516 = vmatpush1.bf16.msra.mxu0 %v467
    %517 = vmatprep.subr.bf16.mxu0 0
    %518 = vmatpush1.bf16.msra.mxu0 %v468
    %519 = vmatprep.subr.bf16.mxu0 0
    %520 = vmatpush1.bf16.msra.mxu0 %v469
    %521 = vmatprep.subr.bf16.mxu0 0
    %522 = vmatpush1.bf16.msra.mxu0 %v470
    %523 = vmatprep.subr.bf16.mxu0 0
    %524 = vmatpush1.bf16.msra.mxu0 0
    %525 = vmatprep.subr.bf16.mxu0 0
    %526 = vmatpush1.bf16.msra.mxu0 0
    %527 = vmatprep.subr.bf16.mxu0 0
    %528 = vmatpush1.bf16.msra.mxu0 0
    %529 = vmatprep.subr.bf16.mxu0 0
    %530 = vmatpush1.bf16.msra.mxu0 0
    %531 = vmatprep.subr.bf16.mxu0 0
    %532 = vmatpush1.bf16.msra.mxu0 0
    %533 = vmatprep.subr.bf16.mxu0 0
    %534 = vmatpush1.bf16.msra.mxu0 0
    %535 = vmatprep.subr.bf16.mxu0 0
    %536 = vmatpush1.bf16.msra.mxu0 0
    %537 = vmatprep.subr.bf16.mxu0 0
    %538 = vmatpush1.bf16.msra.mxu0 0
    %539 = vmatprep.subr.bf16.mxu0 0
    %540 = vmatpush1.bf16.msra.mxu0 0
    %541 = vmatprep.subr.bf16.mxu0 0
    %542 = vmatpush1.bf16.msra.mxu0 0
    %543 = vmatprep.subr.bf16.mxu0 0
    %544 = vmatpush1.bf16.msra.mxu0 0
    %545 = vmatprep.subr.bf16.mxu0 0
    %546 = vmatpush1.bf16.msra.mxu0 0
    %547 = vmatprep.mubr.bf16.mxu0 0
    %548 = vmatmul.mubr.bf16.gmra.mrb[0].mxu0 %v129
    %v549 = vpop.f32.mrb[0].mxu0
    %v550 = vadd.f32 %v449, %v549
    %v551 = vpop.f32.mrb[0].mxu0
    %v552 = vpop.f32.mrb[0].mxu0
    %v553 = vpop.f32.mrb[0].mxu0
    %554 = vdwg.mxu0
    %555 = vmatprep.subr.bf16.mxu0 0
    %556 = vmatpush1.bf16.msra.mxu0 %v467
    %557 = vmatprep.subr.bf16.mxu0 0
    %558 = vmatpush1.bf16.msra.mxu0 %v468
    %559 = vmatprep.subr.bf16.mxu0 0
    %560 = vmatpush1.bf16.msra.mxu0 %v469
    %561 = vmatprep.subr.bf16.mxu0 0
    %562 = vmatpush1.bf16.msra.mxu0 %v470
    %563 = vmatprep.subr.bf16.mxu0 0
    %564 = vmatpush1.bf16.msra.mxu0 0
    %565 = vmatprep.subr.bf16.mxu0 0
    %566 = vmatpush1.bf16.msra.mxu0 0
    %567 = vmatprep.subr.bf16.mxu0 0
    %568 = vmatpush1.bf16.msra.mxu0 0
    %569 = vmatprep.subr.bf16.mxu0 0
    %570 = vmatpush1.bf16.msra.mxu0 0
    %571 = vmatprep.subr.bf16.mxu0 0
    %572 = vmatpush1.bf16.msra.mxu0 0
    %573 = vmatprep.subr.bf16.mxu0 0
    %574 = vmatpush1.bf16.msra.mxu0 0
    %575 = vmatprep.subr.bf16.mxu0 0
    %576 = vmatpush1.bf16.msra.mxu0 0
    %577 = vmatprep.subr.bf16.mxu0 0
    %578 = vmatpush1.bf16.msra.mxu0 0
    %579 = vmatprep.subr.bf16.mxu0 0
    %580 = vmatpush1.bf16.msra.mxu0 0
    %581 = vmatprep.subr.bf16.mxu0 0
    %582 = vmatpush1.bf16.msra.mxu0 0
    %583 = vmatprep.subr.bf16.mxu0 0
    %584 = vmatpush1.bf16.msra.mxu0 0
    %585 = vmatprep.subr.bf16.mxu0 0
    %586 = vmatpush1.bf16.msra.mxu0 0
    %587 = vmatprep.mubr.bf16.mxu0 0
    %588 = vmatmul.mubr.bf16.gmra.mrb[0].mxu0 %v172
    %v589 = vpop.f32.mrb[0].mxu0
    %v590 = vadd.f32 %v449, %v589
    %v591 = vpop.f32.mrb[0].mxu0
    %v592 = vpop.f32.mrb[0].mxu0
    %v593 = vpop.f32.mrb[0].mxu0
    %594 = vdwg.mxu0
    %595 = vmatprep.subr.bf16.mxu0 0
    %596 = vmatpush1.bf16.msra.mxu0 %v467
    %597 = vmatprep.subr.bf16.mxu0 0
    %598 = vmatpush1.bf16.msra.mxu0 %v468
    %599 = vmatprep.subr.bf16.mxu0 0
    %600 = vmatpush1.bf16.msra.mxu0 %v469
    %601 = vmatprep.subr.bf16.mxu0 0
    %602 = vmatpush1.bf16.msra.mxu0 %v470
    %603 = vmatprep.subr.bf16.mxu0 0
    %604 = vmatpush1.bf16.msra.mxu0 0
    %605 = vmatprep.subr.bf16.mxu0 0
    %606 = vmatpush1.bf16.msra.mxu0 0
    %607 = vmatprep.subr.bf16.mxu0 0
    %608 = vmatpush1.bf16.msra.mxu0 0
    %609 = vmatprep.subr.bf16.mxu0 0
    %610 = vmatpush1.bf16.msra.mxu0 0
    %611 = vmatprep.subr.bf16.mxu0 0
    %612 = vmatpush1.bf16.msra.mxu0 0
    %613 = vmatprep.subr.bf16.mxu0 0
    %614 = vmatpush1.bf16.msra.mxu0 0
    %615 = vmatprep.subr.bf16.mxu0 0
    %616 = vmatpush1.bf16.msra.mxu0 0
    %617 = vmatprep.subr.bf16.mxu0 0
    %618 = vmatpush1.bf16.msra.mxu0 0
    %619 = vmatprep.subr.bf16.mxu0 0
    %620 = vmatpush1.bf16.msra.mxu0 0
    %621 = vmatprep.subr.bf16.mxu0 0
    %622 = vmatpush1.bf16.msra.mxu0 0
    %623 = vmatprep.subr.bf16.mxu0 0
    %624 = vmatpush1.bf16.msra.mxu0 0
    %625 = vmatprep.subr.bf16.mxu0 0
    %626 = vmatpush1.bf16.msra.mxu0 0
    %627 = vmatprep.mubr.bf16.mxu0 0
    %628 = vmatmul.mubr.bf16.gmra.mrb[0].mxu0 %v215
    %v629 = vpop.f32.mrb[0].mxu0
    %v630 = vadd.f32 %v449, %v629
    %v631 = vpop.f32.mrb[0].mxu0
    %v632 = vpop.f32.mrb[0].mxu0
    %v633 = vpop.f32.mrb[0].mxu0
    %634 = vdwg.mxu0
    %635 = vmatprep.subr.bf16.mxu0 0
    %636 = vmatpush1.bf16.msra.mxu0 %v467
    %637 = vmatprep.subr.bf16.mxu0 0
    %638 = vmatpush1.bf16.msra.mxu0 %v468
    %639 = vmatprep.subr.bf16.mxu0 0
    %640 = vmatpush1.bf16.msra.mxu0 %v469
    %641 = vmatprep.subr.bf16.mxu0 0
    %642 = vmatpush1.bf16.msra.mxu0 %v470
    %643 = vmatprep.subr.bf16.mxu0 0
    %644 = vmatpush1.bf16.msra.mxu0 0
    %645 = vmatprep.subr.bf16.mxu0 0
    %646 = vmatpush1.bf16.msra.mxu0 0
    %647 = vmatprep.subr.bf16.mxu0 0
    %648 = vmatpush1.bf16.msra.mxu0 0
    %649 = vmatprep.subr.bf16.mxu0 0
    %650 = vmatpush1.bf16.msra.mxu0 0
    %651 = vmatprep.subr.bf16.mxu0 0
    %652 = vmatpush1.bf16.msra.mxu0 0
    %653 = vmatprep.subr.bf16.mxu0 0
    %654 = vmatpush1.bf16.msra.mxu0 0
    %655 = vmatprep.subr.bf16.mxu0 0
    %656 = vmatpush1.bf16.msra.mxu0 0
    %657 = vmatprep.subr.bf16.mxu0 0
    %658 = vmatpush1.bf16.msra.mxu0 0
    %659 = vmatprep.subr.bf16.mxu0 0
    %660 = vmatpush1.bf16.msra.mxu0 0
    %661 = vmatprep.subr.bf16.mxu0 0
    %662 = vmatpush1.bf16.msra.mxu0 0
    %663 = vmatprep.subr.bf16.mxu0 0
    %664 = vmatpush1.bf16.msra.mxu0 0
    %665 = vmatprep.subr.bf16.mxu0 0
    %666 = vmatpush1.bf16.msra.mxu0 0
    %667 = vmatprep.mubr.bf16.mxu0 0
    %668 = vmatmul.mubr.bf16.gmra.mrb[0].mxu0 %v258
    %v669 = vpop.f32.mrb[0].mxu0
    %v670 = vadd.f32 %v449, %v669
    %v671 = vpop.f32.mrb[0].mxu0
    %v672 = vpop.f32.mrb[0].mxu0
    %v673 = vpop.f32.mrb[0].mxu0
    %674 = vdwg.mxu0
    %675 = vmatprep.subr.bf16.mxu0 0
    %676 = vmatpush1.bf16.msra.mxu0 %v467
    %677 = vmatprep.subr.bf16.mxu0 0
    %678 = vmatpush1.bf16.msra.mxu0 %v468
    %679 = vmatprep.subr.bf16.mxu0 0
    %680 = vmatpush1.bf16.msra.mxu0 %v469
    %681 = vmatprep.subr.bf16.mxu0 0
    %682 = vmatpush1.bf16.msra.mxu0 %v470
    %683 = vmatprep.subr.bf16.mxu0 0
    %684 = vmatpush1.bf16.msra.mxu0 0
    %685 = vmatprep.subr.bf16.mxu0 0
    %686 = vmatpush1.bf16.msra.mxu0 0
    %687 = vmatprep.subr.bf16.mxu0 0
    %688 = vmatpush1.bf16.msra.mxu0 0
    %689 = vmatprep.subr.bf16.mxu0 0
    %690 = vmatpush1.bf16.msra.mxu0 0
    %691 = vmatprep.subr.bf16.mxu0 0
    %692 = vmatpush1.bf16.msra.mxu0 0
    %693 = vmatprep.subr.bf16.mxu0 0
    %694 = vmatpush1.bf16.msra.mxu0 0
    %695 = vmatprep.subr.bf16.mxu0 0
    %696 = vmatpush1.bf16.msra.mxu0 0
    %697 = vmatprep.subr.bf16.mxu0 0
    %698 = vmatpush1.bf16.msra.mxu0 0
    %699 = vmatprep.subr.bf16.mxu0 0
    %700 = vmatpush1.bf16.msra.mxu0 0
    %701 = vmatprep.subr.bf16.mxu0 0
    %702 = vmatpush1.bf16.msra.mxu0 0
    %703 = vmatprep.subr.bf16.mxu0 0
    %704 = vmatpush1.bf16.msra.mxu0 0
    %705 = vmatprep.subr.bf16.mxu0 0
    %706 = vmatpush1.bf16.msra.mxu0 0
    %707 = vmatprep.mubr.bf16.mxu0 0
    %708 = vmatmul.mubr.bf16.gmra.mrb[0].mxu0 %v301
    %v709 = vpop.f32.mrb[0].mxu0
    %v710 = vadd.f32 %v449, %v709
    %v711 = vpop.f32.mrb[0].mxu0
    %v712 = vpop.f32.mrb[0].mxu0
    %v713 = vpop.f32.mrb[0].mxu0
    %714 = vdwg.mxu0
    %715 = vmatprep.subr.bf16.mxu0 0
    %716 = vmatpush1.bf16.msra.mxu0 %v467
    %717 = vmatprep.subr.bf16.mxu0 0
    %718 = vmatpush1.bf16.msra.mxu0 %v468
    %719 = vmatprep.subr.bf16.mxu0 0
    %720 = vmatpush1.bf16.msra.mxu0 %v469
    %721 = vmatprep.subr.bf16.mxu0 0
    %722 = vmatpush1.bf16.msra.mxu0 %v470
    %723 = vmatprep.subr.bf16.mxu0 0
    %724 = vmatpush1.bf16.msra.mxu0 0
    %725 = vmatprep.subr.bf16.mxu0 0
    %726 = vmatpush1.bf16.msra.mxu0 0
    %727 = vmatprep.subr.bf16.mxu0 0
    %728 = vmatpush1.bf16.msra.mxu0 0
    %729 = vmatprep.subr.bf16.mxu0 0
    %730 = vmatpush1.bf16.msra.mxu0 0
    %731 = vmatprep.subr.bf16.mxu0 0
    %732 = vmatpush1.bf16.msra.mxu0 0
    %733 = vmatprep.subr.bf16.mxu0 0
    %734 = vmatpush1.bf16.msra.mxu0 0
    %735 = vmatprep.subr.bf16.mxu0 0
    %736 = vmatpush1.bf16.msra.mxu0 0
    %737 = vmatprep.subr.bf16.mxu0 0
    %738 = vmatpush1.bf16.msra.mxu0 0
    %739 = vmatprep.subr.bf16.mxu0 0
    %740 = vmatpush1.bf16.msra.mxu0 0
    %741 = vmatprep.subr.bf16.mxu0 0
    %742 = vmatpush1.bf16.msra.mxu0 0
    %743 = vmatprep.subr.bf16.mxu0 0
    %744 = vmatpush1.bf16.msra.mxu0 0
    %745 = vmatprep.subr.bf16.mxu0 0
    %746 = vmatpush1.bf16.msra.mxu0 0
    %747 = vmatprep.mubr.bf16.mxu0 0
    %748 = vmatmul.mubr.bf16.gmra.mrb[0].mxu0 %v344
    %v749 = vpop.f32.mrb[0].mxu0
    %v750 = vadd.f32 %v449, %v749
    %v751 = vpop.f32.mrb[0].mxu0
    %v752 = vpop.f32.mrb[0].mxu0
    %v753 = vpop.f32.mrb[0].mxu0
    %754 = vdwg.mxu0
    %755 = vmatprep.subr.bf16.mxu0 0
    %756 = vmatpush1.bf16.msra.mxu0 %v467
    %757 = vmatprep.subr.bf16.mxu0 0
    %758 = vmatpush1.bf16.msra.mxu0 %v468
    %759 = vmatprep.subr.bf16.mxu0 0
    %760 = vmatpush1.bf16.msra.mxu0 %v469
    %761 = vmatprep.subr.bf16.mxu0 0
    %762 = vmatpush1.bf16.msra.mxu0 %v470
    %763 = vmatprep.subr.bf16.mxu0 0
    %764 = vmatpush1.bf16.msra.mxu0 0
    %765 = vmatprep.subr.bf16.mxu0 0
    %766 = vmatpush1.bf16.msra.mxu0 0
    %767 = vmatprep.subr.bf16.mxu0 0
    %768 = vmatpush1.bf16.msra.mxu0 0
    %769 = vmatprep.subr.bf16.mxu0 0
    %770 = vmatpush1.bf16.msra.mxu0 0
    %771 = vmatprep.subr.bf16.mxu0 0
    %772 = vmatpush1.bf16.msra.mxu0 0
    %773 = vmatprep.subr.bf16.mxu0 0
    %774 = vmatpush1.bf16.msra.mxu0 0
    %775 = vmatprep.subr.bf16.mxu0 0
    %776 = vmatpush1.bf16.msra.mxu0 0
    %777 = vmatprep.subr.bf16.mxu0 0
    %778 = vmatpush1.bf16.msra.mxu0 0
    %779 = vmatprep.subr.bf16.mxu0 0
    %780 = vmatpush1.bf16.msra.mxu0 0
    %781 = vmatprep.subr.bf16.mxu0 0
    %782 = vmatpush1.bf16.msra.mxu0 0
    %783 = vmatprep.subr.bf16.mxu0 0
    %784 = vmatpush1.bf16.msra.mxu0 0
    %785 = vmatprep.subr.bf16.mxu0 0
    %786 = vmatpush1.bf16.msra.mxu0 0
    %787 = vmatprep.mubr.bf16.mxu0 0
    %788 = vmatmul.mubr.bf16.gmra.mrb[0].mxu0 %v387
    %v789 = vpop.f32.mrb[0].mxu0
    %v790 = vadd.f32 %v449, %v789
    %v791 = vpop.f32.mrb[0].mxu0
    %v792 = vpop.f32.mrb[0].mxu0
    %v793 = vpop.f32.mrb[0].mxu0
    %794 = vdwg.mxu0
    %s795 = scalar_lea.vmem %s2, 16
    %v796 = vld [vmem:[%s795] sm:$0xf]
    %v797 = vld [vmem:[%s795 + $0x4] sm:$0xf]
    %v798 = vld [vmem:[%s795 + $0x8] sm:$0xf]
    %v799 = vld [vmem:[%s795 + $0xc] sm:$0xf]
    %s800 = scalar_lea.vmem %s4, 1
    %v801 = vld [vmem:[%s800] sm:$0x1]
    %v806 = vunpack.c.l.b16 %v429
    %v807 = vunpack.c.l.b16 %v430
    %v808 = vunpack.c.l.b16 %v431
    %v809 = vunpack.c.l.b16 %v432
    %v810 = vpack.c.b16 %v807, %v806
    %v811 = vpack.c.b16 %v809, %v808
    %vm814 = vcmask 261120
    %v816 = vsel %vm814, 0, 0
    %818 = vmatprep.subr.bf16.mxu0 0
    %819 = vmatpush1.bf16.msra.mxu0 %v810
    %820 = vmatprep.subr.bf16.mxu0 0
    %821 = vmatpush1.bf16.msra.mxu0 %v811
    %822 = vmatprep.subr.bf16.mxu0 0
    %823 = vmatpush1.bf16.msra.mxu0 0
    %824 = vmatprep.subr.bf16.mxu0 0
    %825 = vmatpush1.bf16.msra.mxu0 0
    %826 = vmatprep.subr.bf16.mxu0 0
    %827 = vmatpush1.bf16.msra.mxu0 0
    %828 = vmatprep.subr.bf16.mxu0 0
    %829 = vmatpush1.bf16.msra.mxu0 0
    %830 = vmatprep.subr.bf16.mxu0 0
    %831 = vmatpush1.bf16.msra.mxu0 0
    %832 = vmatprep.subr.bf16.mxu0 0
    %833 = vmatpush1.bf16.msra.mxu0 0
    %834 = vmatprep.subr.bf16.mxu0 0
    %835 = vmatpush1.bf16.msra.mxu0 0
    %836 = vmatprep.subr.bf16.mxu0 0
    %837 = vmatpush1.bf16.msra.mxu0 0
    %838 = vmatprep.subr.bf16.mxu0 0
    %839 = vmatpush1.bf16.msra.mxu0 0
    %840 = vmatprep.subr.bf16.mxu0 0
    %841 = vmatpush1.bf16.msra.mxu0 0
    %842 = vmatprep.subr.bf16.mxu0 0
    %843 = vmatpush1.bf16.msra.mxu0 0
    %844 = vmatprep.subr.bf16.mxu0 0
    %845 = vmatpush1.bf16.msra.mxu0 0
    %846 = vmatprep.subr.bf16.mxu0 0
    %847 = vmatpush1.bf16.msra.mxu0 0
    %848 = vmatprep.subr.bf16.mxu0 0
    %849 = vmatpush1.bf16.msra.mxu0 0
    %850 = vmatprep.mubr.bf16.mxu0 0
    %851 = vmatmul.mubr.bf16.gmra.mrb[0].mxu0 %v816
    %v852 = vpop.f32.mrb[0].mxu0
    %v853 = vadd.f32 0.0, %v852
    %v854 = vpop.f32.mrb[0].mxu0
    %v855 = vpop.f32.mrb[0].mxu0
    %v856 = vpop.f32.mrb[0].mxu0
    %857 = vdwg.mxu0
    %v858 = vadd.f32 %v123, %v853
    %v859 = vxor.u32 %v858, 2147483648
    %v860 = vmul.f32 %v859, 1.442695
    %v861 = vpow.pop %v860
    %v862 = vadd.f32 %v861, 1.0
    %v863 = vrcp.pop %v862
    %v864 = vmul.f32 1.0, %v863
    %v866 = vlaneseq
    %v867 = vshrl.u32 %v866, 7
    %v868 = vsub.s32 0, %v867
    %v869 = vrot.slane %v433, %v868
    %870 = vrot.lane.b32.xlu0 %v869, 64
    %v871 = vpop.permute.xlu0 %870
    %v873 = vadd.f32 %v853, %v871
    %875 = vrot.lane.b32.xlu0 %v873, 64
    %v876 = vpop.permute.xlu0 %875
    %v878 = vmul.f32 %v864, %v876
    %880 = vrot.lane.b32.xlu0 %v878, 64
    %v881 = vpop.permute.xlu0 %880
    %v883 = vadd.f32 %v123, %v881
    %v884 = vtanh.pop %v883
    %v885 = vsub.f32 0.0, %v884
    %887 = vrot.lane.b32.xlu0 %v885, 96
    %v888 = vpop.permute.xlu0 %887
    %v890 = vmul.f32 %v864, %v888
    %892 = vrot.lane.b32.xlu0 %v890, 32
    %v893 = vpop.permute.xlu0 %892
    %v895 = vadd.f32 %v884, %v893
    %897 = vrot.lane.b32.xlu0 %v895, 64
    %v898 = vpop.permute.xlu0 %897
    %900 = vst.msk [vmem:[#allocation2] sm:$0xff] %vm814, %v898
    %v905 = vunpack.c.l.b16 %v796
    %v906 = vunpack.c.l.b16 %v797
    %v907 = vunpack.c.l.b16 %v798
    %v908 = vunpack.c.l.b16 %v799
    %v909 = vpack.c.b16 %v906, %v905
    %v910 = vpack.c.b16 %v908, %v907
    %913 = vmatprep.subr.bf16.mxu0 0
    %914 = vmatpush1.bf16.msra.mxu0 %v909
    %915 = vmatprep.subr.bf16.mxu0 0
    %916 = vmatpush1.bf16.msra.mxu0 %v910
    %917 = vmatprep.subr.bf16.mxu0 0
    %918 = vmatpush1.bf16.msra.mxu0 0
    %919 = vmatprep.subr.bf16.mxu0 0
    %920 = vmatpush1.bf16.msra.mxu0 0
    %921 = vmatprep.subr.bf16.mxu0 0
    %922 = vmatpush1.bf16.msra.mxu0 0
    %923 = vmatprep.subr.bf16.mxu0 0
    %924 = vmatpush1.bf16.msra.mxu0 0
    %925 = vmatprep.subr.bf16.mxu0 0
    %926 = vmatpush1.bf16.msra.mxu0 0
    %927 = vmatprep.subr.bf16.mxu0 0
    %928 = vmatpush1.bf16.msra.mxu0 0
    %929 = vmatprep.subr.bf16.mxu0 0
    %930 = vmatpush1.bf16.msra.mxu0 0
    %931 = vmatprep.subr.bf16.mxu0 0
    %932 = vmatpush1.bf16.msra.mxu0 0
    %933 = vmatprep.subr.bf16.mxu0 0
    %934 = vmatpush1.bf16.msra.mxu0 0
    %935 = vmatprep.subr.bf16.mxu0 0
    %936 = vmatpush1.bf16.msra.mxu0 0
    %937 = vmatprep.subr.bf16.mxu0 0
    %938 = vmatpush1.bf16.msra.mxu0 0
    %939 = vmatprep.subr.bf16.mxu0 0
    %940 = vmatpush1.bf16.msra.mxu0 0
    %941 = vmatprep.subr.bf16.mxu0 0
    %942 = vmatpush1.bf16.msra.mxu0 0
    %943 = vmatprep.subr.bf16.mxu0 0
    %944 = vmatpush1.bf16.msra.mxu0 0
    %945 = vmatprep.mubr.bf16.mxu0 0
    %946 = vmatmul.mubr.bf16.gmra.mrb[0].mxu0 %v816
    %v947 = vpop.f32.mrb[0].mxu0
    %v948 = vadd.f32 0.0, %v947
    %v949 = vpop.f32.mrb[0].mxu0
    %v950 = vpop.f32.mrb[0].mxu0
    %v951 = vpop.f32.mrb[0].mxu0
    %952 = vdwg.mxu0
    %v953 = vadd.f32 %v790, %v948
    %v954 = vxor.u32 %v953, 2147483648
    %v955 = vmul.f32 %v954, 1.442695
    %v956 = vpow.pop %v955
    %v957 = vadd.f32 %v956, 1.0
    %v958 = vrcp.pop %v957
    %v959 = vmul.f32 1.0, %v958
    %v961 = vlaneseq
    %v962 = vshrl.u32 %v961, 7
    %v963 = vsub.s32 0, %v962
    %v964 = vrot.slane %v801, %v963
    %965 = vrot.lane.b32.xlu0 %v964, 64
    %v966 = vpop.permute.xlu0 %965
    %v968 = vadd.f32 %v948, %v966
    %970 = vrot.lane.b32.xlu0 %v968, 64
    %v971 = vpop.permute.xlu0 %970
    %v973 = vmul.f32 %v959, %v971
    %975 = vrot.lane.b32.xlu0 %v973, 64
    %v976 = vpop.permute.xlu0 %975
    %v978 = vadd.f32 %v790, %v976
    %v979 = vtanh.pop %v978
    %v980 = vsub.f32 0.0, %v979
    %982 = vrot.lane.b32.xlu0 %v980, 96
    %v983 = vpop.permute.xlu0 %982
    %v985 = vmul.f32 %v959, %v983
    %987 = vrot.lane.b32.xlu0 %v985, 32
    %v988 = vpop.permute.xlu0 %987
    %v990 = vadd.f32 %v979, %v988
    %992 = vrot.lane.b32.xlu0 %v990, 96
    %v993 = vpop.permute.xlu0 %992
    %s995 = scalar_lea.vmem [#allocation2], 56
    %vm996 = vcmask 523520
    %997 = vst.msk [vmem:[%s995] sm:$0xff] %vm996, %v993
    %v998 = vpack.c.bf16 %v895, %v895
    %1000 = vrot.lane.b32.xlu0 %v998, 64
    %v1001 = vpop.permute.xlu0 %1000
    %v1003 = vsel %vm814, %v1001, 0
    %1005 = vmatprep.subr.bf16.mxu0 0
    %1006 = vmatpush1.bf16.msra.mxu0 %v810
    %1007 = vmatprep.subr.bf16.mxu0 0
    %1008 = vmatpush1.bf16.msra.mxu0 %v811
    %1009 = vmatprep.subr.bf16.mxu0 0
    %1010 = vmatpush1.bf16.msra.mxu0 0
    %1011 = vmatprep.subr.bf16.mxu0 0
    %1012 = vmatpush1.bf16.msra.mxu0 0
    %1013 = vmatprep.subr.bf16.mxu0 0
    %1014 = vmatpush1.bf16.msra.mxu0 0
    %1015 = vmatprep.subr.bf16.mxu0 0
    %1016 = vmatpush1.bf16.msra.mxu0 0
    %1017 = vmatprep.subr.bf16.mxu0 0
    %1018 = vmatpush1.bf16.msra.mxu0 0
    %1019 = vmatprep.subr.bf16.mxu0 0
    %1020 = vmatpush1.bf16.msra.mxu0 0
    %1021 = vmatprep.subr.bf16.mxu0 0
    %1022 = vmatpush1.bf16.msra.mxu0 0
    %1023 = vmatprep.subr.bf16.mxu0 0
    %1024 = vmatpush1.bf16.msra.mxu0 0
    %1025 = vmatprep.subr.bf16.mxu0 0
    %1026 = vmatpush1.bf16.msra.mxu0 0
    %1027 = vmatprep.subr.bf16.mxu0 0
    %1028 = vmatpush1.bf16.msra.mxu0 0
    %1029 = vmatprep.subr.bf16.mxu0 0
    %1030 = vmatpush1.bf16.msra.mxu0 0
    %1031 = vmatprep.subr.bf16.mxu0 0
    %1032 = vmatpush1.bf16.msra.mxu0 0
    %1033 = vmatprep.subr.bf16.mxu0 0
    %1034 = vmatpush1.bf16.msra.mxu0 0
    %1035 = vmatprep.subr.bf16.mxu0 0
    %1036 = vmatpush1.bf16.msra.mxu0 0
    %1037 = vmatprep.mubr.bf16.mxu0 0
    %1038 = vmatmul.mubr.bf16.gmra.mrb[0].mxu0 %v1003
    %v1039 = vpop.f32.mrb[0].mxu0
    %v1040 = vadd.f32 0.0, %v1039
    %v1041 = vpop.f32.mrb[0].mxu0
    %v1042 = vpop.f32.mrb[0].mxu0
    %v1043 = vpop.f32.mrb[0].mxu0
    %1044 = vdwg.mxu0
    %v1045 = vadd.f32 %v166, %v1040
    %v1046 = vxor.u32 %v1045, 2147483648
    %v1047 = vmul.f32 %v1046, 1.442695
    %v1048 = vpow.pop %v1047
    %v1049 = vadd.f32 %v1048, 1.0
    %v1050 = vrcp.pop %v1049
    %v1051 = vmul.f32 1.0, %v1050
    %v1052 = vadd.f32 %v1040, %v871
    %1054 = vrot.lane.b32.xlu0 %v1052, 64
    %v1055 = vpop.permute.xlu0 %1054
    %v1057 = vmul.f32 %v1051, %v1055
    %1059 = vrot.lane.b32.xlu0 %v1057, 64
    %v1060 = vpop.permute.xlu0 %1059
    %v1062 = vadd.f32 %v166, %v1060
    %v1063 = vtanh.pop %v1062
    %v1064 = vsub.f32 %v895, %v1063
    %1066 = vrot.lane.b32.xlu0 %v1064, 96
    %v1067 = vpop.permute.xlu0 %1066
    %v1069 = vmul.f32 %v1051, %v1067
    %1071 = vrot.lane.b32.xlu0 %v1069, 32
    %v1072 = vpop.permute.xlu0 %1071
    %v1074 = vadd.f32 %v1063, %v1072
    %1076 = vrot.lane.b32.xlu0 %v1074, 64
    %v1077 = vpop.permute.xlu0 %1076
    %s1079 = scalar_lea.vmem [#allocation2], 8
    %1080 = vst.msk [vmem:[%s1079] sm:$0xff] %vm814, %v1077
    %v1081 = vpack.c.bf16 %v990, %v990
    %1083 = vrot.lane.b32.xlu0 %v1081, 64
    %v1084 = vpop.permute.xlu0 %1083
    %v1086 = vsel %vm814, %v1084, 0
    %1088 = vmatprep.subr.bf16.mxu0 0
    %1089 = vmatpush1.bf16.msra.mxu0 %v909
    %1090 = vmatprep.subr.bf16.mxu0 0
    %1091 = vmatpush1.bf16.msra.mxu0 %v910
    %1092 = vmatprep.subr.bf16.mxu0 0
    %1093 = vmatpush1.bf16.msra.mxu0 0
    %1094 = vmatprep.subr.bf16.mxu0 0
    %1095 = vmatpush1.bf16.msra.mxu0 0
    %1096 = vmatprep.subr.bf16.mxu0 0
    %1097 = vmatpush1.bf16.msra.mxu0 0
    %1098 = vmatprep.subr.bf16.mxu0 0
    %1099 = vmatpush1.bf16.msra.mxu0 0
    %1100 = vmatprep.subr.bf16.mxu0 0
    %1101 = vmatpush1.bf16.msra.mxu0 0
    %1102 = vmatprep.subr.bf16.mxu0 0
    %1103 = vmatpush1.bf16.msra.mxu0 0
    %1104 = vmatprep.subr.bf16.mxu0 0
    %1105 = vmatpush1.bf16.msra.mxu0 0
    %1106 = vmatprep.subr.bf16.mxu0 0
    %1107 = vmatpush1.bf16.msra.mxu0 0
    %1108 = vmatprep.subr.bf16.mxu0 0
    %1109 = vmatpush1.bf16.msra.mxu0 0
    %1110 = vmatprep.subr.bf16.mxu0 0
    %1111 = vmatpush1.bf16.msra.mxu0 0
    %1112 = vmatprep.subr.bf16.mxu0 0
    %1113 = vmatpush1.bf16.msra.mxu0 0
    %1114 = vmatprep.subr.bf16.mxu0 0
    %1115 = vmatpush1.bf16.msra.mxu0 0
    %1116 = vmatprep.subr.bf16.mxu0 0
    %1117 = vmatpush1.bf16.msra.mxu0 0
    %1118 = vmatprep.subr.bf16.mxu0 0
    %1119 = vmatpush1.bf16.msra.mxu0 0
    %1120 = vmatprep.mubr.bf16.mxu0 0
    %1121 = vmatmul.mubr.bf16.gmra.mrb[0].mxu0 %v1086
    %v1122 = vpop.f32.mrb[0].mxu0
    %v1123 = vadd.f32 0.0, %v1122
    %v1124 = vpop.f32.mrb[0].mxu0
    %v1125 = vpop.f32.mrb[0].mxu0
    %v1126 = vpop.f32.mrb[0].mxu0
    %1127 = vdwg.mxu0
    %v1128 = vadd.f32 %v750, %v1123
    %v1129 = vxor.u32 %v1128, 2147483648
    %v1130 = vmul.f32 %v1129, 1.442695
    %v1131 = vpow.pop %v1130
    %v1132 = vadd.f32 %v1131, 1.0
    %v1133 = vrcp.pop %v1132
    %v1134 = vmul.f32 1.0, %v1133
    %v1135 = vadd.f32 %v1123, %v966
    %1137 = vrot.lane.b32.xlu0 %v1135, 64
    %v1138 = vpop.permute.xlu0 %1137
    %v1140 = vmul.f32 %v1134, %v1138
    %1142 = vrot.lane.b32.xlu0 %v1140, 64
    %v1143 = vpop.permute.xlu0 %1142
    %v1145 = vadd.f32 %v750, %v1143
    %v1146 = vtanh.pop %v1145
    %v1147 = vsub.f32 %v990, %v1146
    %1149 = vrot.lane.b32.xlu0 %v1147, 96
    %v1150 = vpop.permute.xlu0 %1149
    %v1152 = vmul.f32 %v1134, %v1150
    %1154 = vrot.lane.b32.xlu0 %v1152, 32
    %v1155 = vpop.permute.xlu0 %1154
    %v1157 = vadd.f32 %v1146, %v1155
    %1159 = vrot.lane.b32.xlu0 %v1157, 96
    %v1160 = vpop.permute.xlu0 %1159
    %s1162 = scalar_lea.vmem [#allocation2], 48
    %1163 = vst.msk [vmem:[%s1162] sm:$0xff] %vm996, %v1160
    %v1164 = vpack.c.bf16 %v1074, %v1074
    %1166 = vrot.lane.b32.xlu0 %v1164, 64
    %v1167 = vpop.permute.xlu0 %1166
    %v1169 = vsel %vm814, %v1167, 0
    %1171 = vmatprep.subr.bf16.mxu0 0
    %1172 = vmatpush1.bf16.msra.mxu0 %v810
    %1173 = vmatprep.subr.bf16.mxu0 0
    %1174 = vmatpush1.bf16.msra.mxu0 %v811
    %1175 = vmatprep.subr.bf16.mxu0 0
    %1176 = vmatpush1.bf16.msra.mxu0 0
    %1177 = vmatprep.subr.bf16.mxu0 0
    %1178 = vmatpush1.bf16.msra.mxu0 0
    %1179 = vmatprep.subr.bf16.mxu0 0
    %1180 = vmatpush1.bf16.msra.mxu0 0
    %1181 = vmatprep.subr.bf16.mxu0 0
    %1182 = vmatpush1.bf16.msra.mxu0 0
    %1183 = vmatprep.subr.bf16.mxu0 0
    %1184 = vmatpush1.bf16.msra.mxu0 0
    %1185 = vmatprep.subr.bf16.mxu0 0
    %1186 = vmatpush1.bf16.msra.mxu0 0
    %1187 = vmatprep.subr.bf16.mxu0 0
    %1188 = vmatpush1.bf16.msra.mxu0 0
    %1189 = vmatprep.subr.bf16.mxu0 0
    %1190 = vmatpush1.bf16.msra.mxu0 0
    %1191 = vmatprep.subr.bf16.mxu0 0
    %1192 = vmatpush1.bf16.msra.mxu0 0
    %1193 = vmatprep.subr.bf16.mxu0 0
    %1194 = vmatpush1.bf16.msra.mxu0 0
    %1195 = vmatprep.subr.bf16.mxu0 0
    %1196 = vmatpush1.bf16.msra.mxu0 0
    %1197 = vmatprep.subr.bf16.mxu0 0
    %1198 = vmatpush1.bf16.msra.mxu0 0
    %1199 = vmatprep.subr.bf16.mxu0 0
    %1200 = vmatpush1.bf16.msra.mxu0 0
    %1201 = vmatprep.subr.bf16.mxu0 0
    %1202 = vmatpush1.bf16.msra.mxu0 0
    %1203 = vmatprep.mubr.bf16.mxu0 0
    %1204 = vmatmul.mubr.bf16.gmra.mrb[0].mxu0 %v1169
    %v1205 = vpop.f32.mrb[0].mxu0
    %v1206 = vadd.f32 0.0, %v1205
    %v1207 = vpop.f32.mrb[0].mxu0
    %v1208 = vpop.f32.mrb[0].mxu0
    %v1209 = vpop.f32.mrb[0].mxu0
    %1210 = vdwg.mxu0
    %v1211 = vadd.f32 %v209, %v1206
    %v1212 = vxor.u32 %v1211, 2147483648
    %v1213 = vmul.f32 %v1212, 1.442695
    %v1214 = vpow.pop %v1213
    %v1215 = vadd.f32 %v1214, 1.0
    %v1216 = vrcp.pop %v1215
    %v1217 = vmul.f32 1.0, %v1216
    %v1218 = vadd.f32 %v1206, %v871
    %1220 = vrot.lane.b32.xlu0 %v1218, 64
    %v1221 = vpop.permute.xlu0 %1220
    %v1223 = vmul.f32 %v1217, %v1221
    %1225 = vrot.lane.b32.xlu0 %v1223, 64
    %v1226 = vpop.permute.xlu0 %1225
    %v1228 = vadd.f32 %v209, %v1226
    %v1229 = vtanh.pop %v1228
    %v1230 = vsub.f32 %v1074, %v1229
    %1232 = vrot.lane.b32.xlu0 %v1230, 96
    %v1233 = vpop.permute.xlu0 %1232
    %v1235 = vmul.f32 %v1217, %v1233
    %1237 = vrot.lane.b32.xlu0 %v1235, 32
    %v1238 = vpop.permute.xlu0 %1237
    %v1240 = vadd.f32 %v1229, %v1238
    %1242 = vrot.lane.b32.xlu0 %v1240, 64
    %v1243 = vpop.permute.xlu0 %1242
    %s1245 = scalar_lea.vmem [#allocation2], 16
    %1246 = vst.msk [vmem:[%s1245] sm:$0xff] %vm814, %v1243
    %v1247 = vpack.c.bf16 %v1157, %v1157
    %1249 = vrot.lane.b32.xlu0 %v1247, 64
    %v1250 = vpop.permute.xlu0 %1249
    %v1252 = vsel %vm814, %v1250, 0
    %1254 = vmatprep.subr.bf16.mxu0 0
    %1255 = vmatpush1.bf16.msra.mxu0 %v909
    %1256 = vmatprep.subr.bf16.mxu0 0
    %1257 = vmatpush1.bf16.msra.mxu0 %v910
    %1258 = vmatprep.subr.bf16.mxu0 0
    %1259 = vmatpush1.bf16.msra.mxu0 0
    %1260 = vmatprep.subr.bf16.mxu0 0
    %1261 = vmatpush1.bf16.msra.mxu0 0
    %1262 = vmatprep.subr.bf16.mxu0 0
    %1263 = vmatpush1.bf16.msra.mxu0 0
    %1264 = vmatprep.subr.bf16.mxu0 0
    %1265 = vmatpush1.bf16.msra.mxu0 0
    %1266 = vmatprep.subr.bf16.mxu0 0
    %1267 = vmatpush1.bf16.msra.mxu0 0
    %1268 = vmatprep.subr.bf16.mxu0 0
    %1269 = vmatpush1.bf16.msra.mxu0 0
    %1270 = vmatprep.subr.bf16.mxu0 0
    %1271 = vmatpush1.bf16.msra.mxu0 0
    %1272 = vmatprep.subr.bf16.mxu0 0
    %1273 = vmatpush1.bf16.msra.mxu0 0
    %1274 = vmatprep.subr.bf16.mxu0 0
    %1275 = vmatpush1.bf16.msra.mxu0 0
    %1276 = vmatprep.subr.bf16.mxu0 0
    %1277 = vmatpush1.bf16.msra.mxu0 0
    %1278 = vmatprep.subr.bf16.mxu0 0
    %1279 = vmatpush1.bf16.msra.mxu0 0
    %1280 = vmatprep.subr.bf16.mxu0 0
    %1281 = vmatpush1.bf16.msra.mxu0 0
    %1282 = vmatprep.subr.bf16.mxu0 0
    %1283 = vmatpush1.bf16.msra.mxu0 0
    %1284 = vmatprep.subr.bf16.mxu0 0
    %1285 = vmatpush1.bf16.msra.mxu0 0
    %1286 = vmatprep.mubr.bf16.mxu0 0
    %1287 = vmatmul.mubr.bf16.gmra.mrb[0].mxu0 %v1252
    %v1288 = vpop.f32.mrb[0].mxu0
    %v1289 = vadd.f32 0.0, %v1288
    %v1290 = vpop.f32.mrb[0].mxu0
    %v1291 = vpop.f32.mrb[0].mxu0
    %v1292 = vpop.f32.mrb[0].mxu0
    %1293 = vdwg.mxu0
    %v1294 = vadd.f32 %v710, %v1289
    %v1295 = vxor.u32 %v1294, 2147483648
    %v1296 = vmul.f32 %v1295, 1.442695
    %v1297 = vpow.pop %v1296
    %v1298 = vadd.f32 %v1297, 1.0
    %v1299 = vrcp.pop %v1298
    %v1300 = vmul.f32 1.0, %v1299
    %v1301 = vadd.f32 %v1289, %v966
    %1303 = vrot.lane.b32.xlu0 %v1301, 64
    %v1304 = vpop.permute.xlu0 %1303
    %v1306 = vmul.f32 %v1300, %v1304
    %1308 = vrot.lane.b32.xlu0 %v1306, 64
    %v1309 = vpop.permute.xlu0 %1308
    %v1311 = vadd.f32 %v710, %v1309
    %v1312 = vtanh.pop %v1311
    %v1313 = vsub.f32 %v1157, %v1312
    %1315 = vrot.lane.b32.xlu0 %v1313, 96
    %v1316 = vpop.permute.xlu0 %1315
    %v1318 = vmul.f32 %v1300, %v1316
    %1320 = vrot.lane.b32.xlu0 %v1318, 32
    %v1321 = vpop.permute.xlu0 %1320
    %v1323 = vadd.f32 %v1312, %v1321
    %1325 = vrot.lane.b32.xlu0 %v1323, 96
    %v1326 = vpop.permute.xlu0 %1325
    %s1328 = scalar_lea.vmem [#allocation2], 40
    %1329 = vst.msk [vmem:[%s1328] sm:$0xff] %vm996, %v1326
    %v1330 = vpack.c.bf16 %v1240, %v1240
    %1332 = vrot.lane.b32.xlu0 %v1330, 64
    %v1333 = vpop.permute.xlu0 %1332
    %v1335 = vsel %vm814, %v1333, 0
    %1337 = vmatprep.subr.bf16.mxu0 0
    %1338 = vmatpush1.bf16.msra.mxu0 %v810
    %1339 = vmatprep.subr.bf16.mxu0 0
    %1340 = vmatpush1.bf16.msra.mxu0 %v811
    %1341 = vmatprep.subr.bf16.mxu0 0
    %1342 = vmatpush1.bf16.msra.mxu0 0
    %1343 = vmatprep.subr.bf16.mxu0 0
    %1344 = vmatpush1.bf16.msra.mxu0 0
    %1345 = vmatprep.subr.bf16.mxu0 0
    %1346 = vmatpush1.bf16.msra.mxu0 0
    %1347 = vmatprep.subr.bf16.mxu0 0
    %1348 = vmatpush1.bf16.msra.mxu0 0
    %1349 = vmatprep.subr.bf16.mxu0 0
    %1350 = vmatpush1.bf16.msra.mxu0 0
    %1351 = vmatprep.subr.bf16.mxu0 0
    %1352 = vmatpush1.bf16.msra.mxu0 0
    %1353 = vmatprep.subr.bf16.mxu0 0
    %1354 = vmatpush1.bf16.msra.mxu0 0
    %1355 = vmatprep.subr.bf16.mxu0 0
    %1356 = vmatpush1.bf16.msra.mxu0 0
    %1357 = vmatprep.subr.bf16.mxu0 0
    %1358 = vmatpush1.bf16.msra.mxu0 0
    %1359 = vmatprep.subr.bf16.mxu0 0
    %1360 = vmatpush1.bf16.msra.mxu0 0
    %1361 = vmatprep.subr.bf16.mxu0 0
    %1362 = vmatpush1.bf16.msra.mxu0 0
    %1363 = vmatprep.subr.bf16.mxu0 0
    %1364 = vmatpush1.bf16.msra.mxu0 0
    %1365 = vmatprep.subr.bf16.mxu0 0
    %1366 = vmatpush1.bf16.msra.mxu0 0
    %1367 = vmatprep.subr.bf16.mxu0 0
    %1368 = vmatpush1.bf16.msra.mxu0 0
    %1369 = vmatprep.mubr.bf16.mxu0 0
    %1370 = vmatmul.mubr.bf16.gmra.mrb[0].mxu0 %v1335
    %v1371 = vpop.f32.mrb[0].mxu0
    %v1372 = vadd.f32 0.0, %v1371
    %v1373 = vpop.f32.mrb[0].mxu0
    %v1374 = vpop.f32.mrb[0].mxu0
    %v1375 = vpop.f32.mrb[0].mxu0
    %1376 = vdwg.mxu0
    %v1377 = vadd.f32 %v252, %v1372
    %v1378 = vxor.u32 %v1377, 2147483648
    %v1379 = vmul.f32 %v1378, 1.442695
    %v1380 = vpow.pop %v1379
    %v1381 = vadd.f32 %v1380, 1.0
    %v1382 = vrcp.pop %v1381
    %v1383 = vmul.f32 1.0, %v1382
    %v1384 = vadd.f32 %v1372, %v871
    %1386 = vrot.lane.b32.xlu0 %v1384, 64
    %v1387 = vpop.permute.xlu0 %1386
    %v1389 = vmul.f32 %v1383, %v1387
    %1391 = vrot.lane.b32.xlu0 %v1389, 64
    %v1392 = vpop.permute.xlu0 %1391
    %v1394 = vadd.f32 %v252, %v1392
    %v1395 = vtanh.pop %v1394
    %v1396 = vsub.f32 %v1240, %v1395
    %1398 = vrot.lane.b32.xlu0 %v1396, 96
    %v1399 = vpop.permute.xlu0 %1398
    %v1401 = vmul.f32 %v1383, %v1399
    %1403 = vrot.lane.b32.xlu0 %v1401, 32
    %v1404 = vpop.permute.xlu0 %1403
    %v1406 = vadd.f32 %v1395, %v1404
    %1408 = vrot.lane.b32.xlu0 %v1406, 64
    %v1409 = vpop.permute.xlu0 %1408
    %s1411 = scalar_lea.vmem [#allocation2], 24
    %1412 = vst.msk [vmem:[%s1411] sm:$0xff] %vm814, %v1409
    %v1413 = vpack.c.bf16 %v1323, %v1323
    %1415 = vrot.lane.b32.xlu0 %v1413, 64
    %v1416 = vpop.permute.xlu0 %1415
    %v1418 = vsel %vm814, %v1416, 0
    %1420 = vmatprep.subr.bf16.mxu0 0
    %1421 = vmatpush1.bf16.msra.mxu0 %v909
    %1422 = vmatprep.subr.bf16.mxu0 0
    %1423 = vmatpush1.bf16.msra.mxu0 %v910
    %1424 = vmatprep.subr.bf16.mxu0 0
    %1425 = vmatpush1.bf16.msra.mxu0 0
    %1426 = vmatprep.subr.bf16.mxu0 0
    %1427 = vmatpush1.bf16.msra.mxu0 0
    %1428 = vmatprep.subr.bf16.mxu0 0
    %1429 = vmatpush1.bf16.msra.mxu0 0
    %1430 = vmatprep.subr.bf16.mxu0 0
    %1431 = vmatpush1.bf16.msra.mxu0 0
    %1432 = vmatprep.subr.bf16.mxu0 0
    %1433 = vmatpush1.bf16.msra.mxu0 0
    %1434 = vmatprep.subr.bf16.mxu0 0
    %1435 = vmatpush1.bf16.msra.mxu0 0
    %1436 = vmatprep.subr.bf16.mxu0 0
    %1437 = vmatpush1.bf16.msra.mxu0 0
    %1438 = vmatprep.subr.bf16.mxu0 0
    %1439 = vmatpush1.bf16.msra.mxu0 0
    %1440 = vmatprep.subr.bf16.mxu0 0
    %1441 = vmatpush1.bf16.msra.mxu0 0
    %1442 = vmatprep.subr.bf16.mxu0 0
    %1443 = vmatpush1.bf16.msra.mxu0 0
    %1444 = vmatprep.subr.bf16.mxu0 0
    %1445 = vmatpush1.bf16.msra.mxu0 0
    %1446 = vmatprep.subr.bf16.mxu0 0
    %1447 = vmatpush1.bf16.msra.mxu0 0
    %1448 = vmatprep.subr.bf16.mxu0 0
    %1449 = vmatpush1.bf16.msra.mxu0 0
    %1450 = vmatprep.subr.bf16.mxu0 0
    %1451 = vmatpush1.bf16.msra.mxu0 0
    %1452 = vmatprep.mubr.bf16.mxu0 0
    %1453 = vmatmul.mubr.bf16.gmra.mrb[0].mxu0 %v1418
    %v1454 = vpop.f32.mrb[0].mxu0
    %v1455 = vadd.f32 0.0, %v1454
    %v1456 = vpop.f32.mrb[0].mxu0
    %v1457 = vpop.f32.mrb[0].mxu0
    %v1458 = vpop.f32.mrb[0].mxu0
    %1459 = vdwg.mxu0
    %v1460 = vadd.f32 %v670, %v1455
    %v1461 = vxor.u32 %v1460, 2147483648
    %v1462 = vmul.f32 %v1461, 1.442695
    %v1463 = vpow.pop %v1462
    %v1464 = vadd.f32 %v1463, 1.0
    %v1465 = vrcp.pop %v1464
    %v1466 = vmul.f32 1.0, %v1465
    %v1467 = vadd.f32 %v1455, %v966
    %1469 = vrot.lane.b32.xlu0 %v1467, 64
    %v1470 = vpop.permute.xlu0 %1469
    %v1472 = vmul.f32 %v1466, %v1470
    %1474 = vrot.lane.b32.xlu0 %v1472, 64
    %v1475 = vpop.permute.xlu0 %1474
    %v1477 = vadd.f32 %v670, %v1475
    %v1478 = vtanh.pop %v1477
    %v1479 = vsub.f32 %v1323, %v1478
    %1481 = vrot.lane.b32.xlu0 %v1479, 96
    %v1482 = vpop.permute.xlu0 %1481
    %v1484 = vmul.f32 %v1466, %v1482
    %1486 = vrot.lane.b32.xlu0 %v1484, 32
    %v1487 = vpop.permute.xlu0 %1486
    %v1489 = vadd.f32 %v1478, %v1487
    %1491 = vrot.lane.b32.xlu0 %v1489, 96
    %v1492 = vpop.permute.xlu0 %1491
    %s1494 = scalar_lea.vmem [#allocation2], 32
    %1495 = vst.msk [vmem:[%s1494] sm:$0xff] %vm996, %v1492
    %v1496 = vpack.c.bf16 %v1406, %v1406
    %1498 = vrot.lane.b32.xlu0 %v1496, 64
    %v1499 = vpop.permute.xlu0 %1498
    %v1501 = vsel %vm814, %v1499, 0
    %1503 = vmatprep.subr.bf16.mxu0 0
    %1504 = vmatpush1.bf16.msra.mxu0 %v810
    %1505 = vmatprep.subr.bf16.mxu0 0
    %1506 = vmatpush1.bf16.msra.mxu0 %v811
    %1507 = vmatprep.subr.bf16.mxu0 0
    %1508 = vmatpush1.bf16.msra.mxu0 0
    %1509 = vmatprep.subr.bf16.mxu0 0
    %1510 = vmatpush1.bf16.msra.mxu0 0
    %1511 = vmatprep.subr.bf16.mxu0 0
    %1512 = vmatpush1.bf16.msra.mxu0 0
    %1513 = vmatprep.subr.bf16.mxu0 0
    %1514 = vmatpush1.bf16.msra.mxu0 0
    %1515 = vmatprep.subr.bf16.mxu0 0
    %1516 = vmatpush1.bf16.msra.mxu0 0
    %1517 = vmatprep.subr.bf16.mxu0 0
    %1518 = vmatpush1.bf16.msra.mxu0 0
    %1519 = vmatprep.subr.bf16.mxu0 0
    %1520 = vmatpush1.bf16.msra.mxu0 0
    %1521 = vmatprep.subr.bf16.mxu0 0
    %1522 = vmatpush1.bf16.msra.mxu0 0
    %1523 = vmatprep.subr.bf16.mxu0 0
    %1524 = vmatpush1.bf16.msra.mxu0 0
    %1525 = vmatprep.subr.bf16.mxu0 0
    %1526 = vmatpush1.bf16.msra.mxu0 0
    %1527 = vmatprep.subr.bf16.mxu0 0
    %1528 = vmatpush1.bf16.msra.mxu0 0
    %1529 = vmatprep.subr.bf16.mxu0 0
    %1530 = vmatpush1.bf16.msra.mxu0 0
    %1531 = vmatprep.subr.bf16.mxu0 0
    %1532 = vmatpush1.bf16.msra.mxu0 0
    %1533 = vmatprep.subr.bf16.mxu0 0
    %1534 = vmatpush1.bf16.msra.mxu0 0
    %1535 = vmatprep.mubr.bf16.mxu0 0
    %1536 = vmatmul.mubr.bf16.gmra.mrb[0].mxu0 %v1501
    %v1537 = vpop.f32.mrb[0].mxu0
    %v1538 = vadd.f32 0.0, %v1537
    %v1539 = vpop.f32.mrb[0].mxu0
    %v1540 = vpop.f32.mrb[0].mxu0
    %v1541 = vpop.f32.mrb[0].mxu0
    %1542 = vdwg.mxu0
    %v1543 = vadd.f32 %v295, %v1538
    %v1544 = vxor.u32 %v1543, 2147483648
    %v1545 = vmul.f32 %v1544, 1.442695
    %v1546 = vpow.pop %v1545
    %v1547 = vadd.f32 %v1546, 1.0
    %v1548 = vrcp.pop %v1547
    %v1549 = vmul.f32 1.0, %v1548
    %v1550 = vadd.f32 %v1538, %v871
    %1552 = vrot.lane.b32.xlu0 %v1550, 64
    %v1553 = vpop.permute.xlu0 %1552
    %v1555 = vmul.f32 %v1549, %v1553
    %1557 = vrot.lane.b32.xlu0 %v1555, 64
    %v1558 = vpop.permute.xlu0 %1557
    %v1560 = vadd.f32 %v295, %v1558
    %v1561 = vtanh.pop %v1560
    %v1562 = vsub.f32 %v1406, %v1561
    %1564 = vrot.lane.b32.xlu0 %v1562, 96
    %v1565 = vpop.permute.xlu0 %1564
    %v1567 = vmul.f32 %v1549, %v1565
    %1569 = vrot.lane.b32.xlu0 %v1567, 32
    %v1570 = vpop.permute.xlu0 %1569
    %v1572 = vadd.f32 %v1561, %v1570
    %1574 = vrot.lane.b32.xlu0 %v1572, 64
    %v1575 = vpop.permute.xlu0 %1574
    %1577 = vst.msk [vmem:[%s1494] sm:$0xff] %vm814, %v1575
    %v1578 = vpack.c.bf16 %v1489, %v1489
    %1580 = vrot.lane.b32.xlu0 %v1578, 64
    %v1581 = vpop.permute.xlu0 %1580
    %v1583 = vsel %vm814, %v1581, 0
    %1585 = vmatprep.subr.bf16.mxu0 0
    %1586 = vmatpush1.bf16.msra.mxu0 %v909
    %1587 = vmatprep.subr.bf16.mxu0 0
    %1588 = vmatpush1.bf16.msra.mxu0 %v910
    %1589 = vmatprep.subr.bf16.mxu0 0
    %1590 = vmatpush1.bf16.msra.mxu0 0
    %1591 = vmatprep.subr.bf16.mxu0 0
    %1592 = vmatpush1.bf16.msra.mxu0 0
    %1593 = vmatprep.subr.bf16.mxu0 0
    %1594 = vmatpush1.bf16.msra.mxu0 0
    %1595 = vmatprep.subr.bf16.mxu0 0
    %1596 = vmatpush1.bf16.msra.mxu0 0
    %1597 = vmatprep.subr.bf16.mxu0 0
    %1598 = vmatpush1.bf16.msra.mxu0 0
    %1599 = vmatprep.subr.bf16.mxu0 0
    %1600 = vmatpush1.bf16.msra.mxu0 0
    %1601 = vmatprep.subr.bf16.mxu0 0
    %1602 = vmatpush1.bf16.msra.mxu0 0
    %1603 = vmatprep.subr.bf16.mxu0 0
    %1604 = vmatpush1.bf16.msra.mxu0 0
    %1605 = vmatprep.subr.bf16.mxu0 0
    %1606 = vmatpush1.bf16.msra.mxu0 0
    %1607 = vmatprep.subr.bf16.mxu0 0
    %1608 = vmatpush1.bf16.msra.mxu0 0
    %1609 = vmatprep.subr.bf16.mxu0 0
    %1610 = vmatpush1.bf16.msra.mxu0 0
    %1611 = vmatprep.subr.bf16.mxu0 0
    %1612 = vmatpush1.bf16.msra.mxu0 0
    %1613 = vmatprep.subr.bf16.mxu0 0
    %1614 = vmatpush1.bf16.msra.mxu0 0
    %1615 = vmatprep.subr.bf16.mxu0 0
    %1616 = vmatpush1.bf16.msra.mxu0 0
    %1617 = vmatprep.mubr.bf16.mxu0 0
    %1618 = vmatmul.mubr.bf16.gmra.mrb[0].mxu0 %v1583
    %v1619 = vpop.f32.mrb[0].mxu0
    %v1620 = vadd.f32 0.0, %v1619
    %v1621 = vpop.f32.mrb[0].mxu0
    %v1622 = vpop.f32.mrb[0].mxu0
    %v1623 = vpop.f32.mrb[0].mxu0
    %1624 = vdwg.mxu0
    %v1625 = vadd.f32 %v630, %v1620
    %v1626 = vxor.u32 %v1625, 2147483648
    %v1627 = vmul.f32 %v1626, 1.442695
    %v1628 = vpow.pop %v1627
    %v1629 = vadd.f32 %v1628, 1.0
    %v1630 = vrcp.pop %v1629
    %v1631 = vmul.f32 1.0, %v1630
    %v1632 = vadd.f32 %v1620, %v966
    %1634 = vrot.lane.b32.xlu0 %v1632, 64
    %v1635 = vpop.permute.xlu0 %1634
    %v1637 = vmul.f32 %v1631, %v1635
    %1639 = vrot.lane.b32.xlu0 %v1637, 64
    %v1640 = vpop.permute.xlu0 %1639
    %v1642 = vadd.f32 %v630, %v1640
    %v1643 = vtanh.pop %v1642
    %v1644 = vsub.f32 %v1489, %v1643
    %1646 = vrot.lane.b32.xlu0 %v1644, 96
    %v1647 = vpop.permute.xlu0 %1646
    %v1649 = vmul.f32 %v1631, %v1647
    %1651 = vrot.lane.b32.xlu0 %v1649, 32
    %v1652 = vpop.permute.xlu0 %1651
    %v1654 = vadd.f32 %v1643, %v1652
    %1656 = vrot.lane.b32.xlu0 %v1654, 96
    %v1657 = vpop.permute.xlu0 %1656
    %1659 = vst.msk [vmem:[%s1411] sm:$0xff] %vm996, %v1657
    %v1660 = vpack.c.bf16 %v1572, %v1572
    %1662 = vrot.lane.b32.xlu0 %v1660, 64
    %v1663 = vpop.permute.xlu0 %1662
    %v1665 = vsel %vm814, %v1663, 0
    %1667 = vmatprep.subr.bf16.mxu0 0
    %1668 = vmatpush1.bf16.msra.mxu0 %v810
    %1669 = vmatprep.subr.bf16.mxu0 0
    %1670 = vmatpush1.bf16.msra.mxu0 %v811
    %1671 = vmatprep.subr.bf16.mxu0 0
    %1672 = vmatpush1.bf16.msra.mxu0 0
    %1673 = vmatprep.subr.bf16.mxu0 0
    %1674 = vmatpush1.bf16.msra.mxu0 0
    %1675 = vmatprep.subr.bf16.mxu0 0
    %1676 = vmatpush1.bf16.msra.mxu0 0
    %1677 = vmatprep.subr.bf16.mxu0 0
    %1678 = vmatpush1.bf16.msra.mxu0 0
    %1679 = vmatprep.subr.bf16.mxu0 0
    %1680 = vmatpush1.bf16.msra.mxu0 0
    %1681 = vmatprep.subr.bf16.mxu0 0
    %1682 = vmatpush1.bf16.msra.mxu0 0
    %1683 = vmatprep.subr.bf16.mxu0 0
    %1684 = vmatpush1.bf16.msra.mxu0 0
    %1685 = vmatprep.subr.bf16.mxu0 0
    %1686 = vmatpush1.bf16.msra.mxu0 0
    %1687 = vmatprep.subr.bf16.mxu0 0
    %1688 = vmatpush1.bf16.msra.mxu0 0
    %1689 = vmatprep.subr.bf16.mxu0 0
    %1690 = vmatpush1.bf16.msra.mxu0 0
    %1691 = vmatprep.subr.bf16.mxu0 0
    %1692 = vmatpush1.bf16.msra.mxu0 0
    %1693 = vmatprep.subr.bf16.mxu0 0
    %1694 = vmatpush1.bf16.msra.mxu0 0
    %1695 = vmatprep.subr.bf16.mxu0 0
    %1696 = vmatpush1.bf16.msra.mxu0 0
    %1697 = vmatprep.subr.bf16.mxu0 0
    %1698 = vmatpush1.bf16.msra.mxu0 0
    %1699 = vmatprep.mubr.bf16.mxu0 0
    %1700 = vmatmul.mubr.bf16.gmra.mrb[0].mxu0 %v1665
    %v1701 = vpop.f32.mrb[0].mxu0
    %v1702 = vadd.f32 0.0, %v1701
    %v1703 = vpop.f32.mrb[0].mxu0
    %v1704 = vpop.f32.mrb[0].mxu0
    %v1705 = vpop.f32.mrb[0].mxu0
    %1706 = vdwg.mxu0
    %v1707 = vadd.f32 %v338, %v1702
    %v1708 = vxor.u32 %v1707, 2147483648
    %v1709 = vmul.f32 %v1708, 1.442695
    %v1710 = vpow.pop %v1709
    %v1711 = vadd.f32 %v1710, 1.0
    %v1712 = vrcp.pop %v1711
    %v1713 = vmul.f32 1.0, %v1712
    %v1714 = vadd.f32 %v1702, %v871
    %1716 = vrot.lane.b32.xlu0 %v1714, 64
    %v1717 = vpop.permute.xlu0 %1716
    %v1719 = vmul.f32 %v1713, %v1717
    %1721 = vrot.lane.b32.xlu0 %v1719, 64
    %v1722 = vpop.permute.xlu0 %1721
    %v1724 = vadd.f32 %v338, %v1722
    %v1725 = vtanh.pop %v1724
    %v1726 = vsub.f32 %v1572, %v1725
    %1728 = vrot.lane.b32.xlu0 %v1726, 96
    %v1729 = vpop.permute.xlu0 %1728
    %v1731 = vmul.f32 %v1713, %v1729
    %1733 = vrot.lane.b32.xlu0 %v1731, 32
    %v1734 = vpop.permute.xlu0 %1733
    %v1736 = vadd.f32 %v1725, %v1734
    %1738 = vrot.lane.b32.xlu0 %v1736, 64
    %v1739 = vpop.permute.xlu0 %1738
    %1741 = vst.msk [vmem:[%s1328] sm:$0xff] %vm814, %v1739
    %v1742 = vpack.c.bf16 %v1654, %v1654
    %1744 = vrot.lane.b32.xlu0 %v1742, 64
    %v1745 = vpop.permute.xlu0 %1744
    %v1747 = vsel %vm814, %v1745, 0
    %1749 = vmatprep.subr.bf16.mxu0 0
    %1750 = vmatpush1.bf16.msra.mxu0 %v909
    %1751 = vmatprep.subr.bf16.mxu0 0
    %1752 = vmatpush1.bf16.msra.mxu0 %v910
    %1753 = vmatprep.subr.bf16.mxu0 0
    %1754 = vmatpush1.bf16.msra.mxu0 0
    %1755 = vmatprep.subr.bf16.mxu0 0
    %1756 = vmatpush1.bf16.msra.mxu0 0
    %1757 = vmatprep.subr.bf16.mxu0 0
    %1758 = vmatpush1.bf16.msra.mxu0 0
    %1759 = vmatprep.subr.bf16.mxu0 0
    %1760 = vmatpush1.bf16.msra.mxu0 0
    %1761 = vmatprep.subr.bf16.mxu0 0
    %1762 = vmatpush1.bf16.msra.mxu0 0
    %1763 = vmatprep.subr.bf16.mxu0 0
    %1764 = vmatpush1.bf16.msra.mxu0 0
    %1765 = vmatprep.subr.bf16.mxu0 0
    %1766 = vmatpush1.bf16.msra.mxu0 0
    %1767 = vmatprep.subr.bf16.mxu0 0
    %1768 = vmatpush1.bf16.msra.mxu0 0
    %1769 = vmatprep.subr.bf16.mxu0 0
    %1770 = vmatpush1.bf16.msra.mxu0 0
    %1771 = vmatprep.subr.bf16.mxu0 0
    %1772 = vmatpush1.bf16.msra.mxu0 0
    %1773 = vmatprep.subr.bf16.mxu0 0
    %1774 = vmatpush1.bf16.msra.mxu0 0
    %1775 = vmatprep.subr.bf16.mxu0 0
    %1776 = vmatpush1.bf16.msra.mxu0 0
    %1777 = vmatprep.subr.bf16.mxu0 0
    %1778 = vmatpush1.bf16.msra.mxu0 0
    %1779 = vmatprep.subr.bf16.mxu0 0
    %1780 = vmatpush1.bf16.msra.mxu0 0
    %1781 = vmatprep.mubr.bf16.mxu0 0
    %1782 = vmatmul.mubr.bf16.gmra.mrb[0].mxu0 %v1747
    %v1783 = vpop.f32.mrb[0].mxu0
    %v1784 = vadd.f32 0.0, %v1783
    %v1785 = vpop.f32.mrb[0].mxu0
    %v1786 = vpop.f32.mrb[0].mxu0
    %v1787 = vpop.f32.mrb[0].mxu0
    %1788 = vdwg.mxu0
    %v1789 = vadd.f32 %v590, %v1784
    %v1790 = vxor.u32 %v1789, 2147483648
    %v1791 = vmul.f32 %v1790, 1.442695
    %v1792 = vpow.pop %v1791
    %v1793 = vadd.f32 %v1792, 1.0
    %v1794 = vrcp.pop %v1793
    %v1795 = vmul.f32 1.0, %v1794
    %v1796 = vadd.f32 %v1784, %v966
    %1798 = vrot.lane.b32.xlu0 %v1796, 64
    %v1799 = vpop.permute.xlu0 %1798
    %v1801 = vmul.f32 %v1795, %v1799
    %1803 = vrot.lane.b32.xlu0 %v1801, 64
    %v1804 = vpop.permute.xlu0 %1803
    %v1806 = vadd.f32 %v590, %v1804
    %v1807 = vtanh.pop %v1806
    %v1808 = vsub.f32 %v1654, %v1807
    %1810 = vrot.lane.b32.xlu0 %v1808, 96
    %v1811 = vpop.permute.xlu0 %1810
    %v1813 = vmul.f32 %v1795, %v1811
    %1815 = vrot.lane.b32.xlu0 %v1813, 32
    %v1816 = vpop.permute.xlu0 %1815
    %v1818 = vadd.f32 %v1807, %v1816
    %1820 = vrot.lane.b32.xlu0 %v1818, 96
    %v1821 = vpop.permute.xlu0 %1820
    %1823 = vst.msk [vmem:[%s1245] sm:$0xff] %vm996, %v1821
    %v1824 = vpack.c.bf16 %v1736, %v1736
    %1826 = vrot.lane.b32.xlu0 %v1824, 64
    %v1827 = vpop.permute.xlu0 %1826
    %v1829 = vsel %vm814, %v1827, 0
    %1831 = vmatprep.subr.bf16.mxu0 0
    %1832 = vmatpush1.bf16.msra.mxu0 %v810
    %1833 = vmatprep.subr.bf16.mxu0 0
    %1834 = vmatpush1.bf16.msra.mxu0 %v811
    %1835 = vmatprep.subr.bf16.mxu0 0
    %1836 = vmatpush1.bf16.msra.mxu0 0
    %1837 = vmatprep.subr.bf16.mxu0 0
    %1838 = vmatpush1.bf16.msra.mxu0 0
    %1839 = vmatprep.subr.bf16.mxu0 0
    %1840 = vmatpush1.bf16.msra.mxu0 0
    %1841 = vmatprep.subr.bf16.mxu0 0
    %1842 = vmatpush1.bf16.msra.mxu0 0
    %1843 = vmatprep.subr.bf16.mxu0 0
    %1844 = vmatpush1.bf16.msra.mxu0 0
    %1845 = vmatprep.subr.bf16.mxu0 0
    %1846 = vmatpush1.bf16.msra.mxu0 0
    %1847 = vmatprep.subr.bf16.mxu0 0
    %1848 = vmatpush1.bf16.msra.mxu0 0
    %1849 = vmatprep.subr.bf16.mxu0 0
    %1850 = vmatpush1.bf16.msra.mxu0 0
    %1851 = vmatprep.subr.bf16.mxu0 0
    %1852 = vmatpush1.bf16.msra.mxu0 0
    %1853 = vmatprep.subr.bf16.mxu0 0
    %1854 = vmatpush1.bf16.msra.mxu0 0
    %1855 = vmatprep.subr.bf16.mxu0 0
    %1856 = vmatpush1.bf16.msra.mxu0 0
    %1857 = vmatprep.subr.bf16.mxu0 0
    %1858 = vmatpush1.bf16.msra.mxu0 0
    %1859 = vmatprep.subr.bf16.mxu0 0
    %1860 = vmatpush1.bf16.msra.mxu0 0
    %1861 = vmatprep.subr.bf16.mxu0 0
    %1862 = vmatpush1.bf16.msra.mxu0 0
    %1863 = vmatprep.mubr.bf16.mxu0 0
    %1864 = vmatmul.mubr.bf16.gmra.mrb[0].mxu0 %v1829
    %v1865 = vpop.f32.mrb[0].mxu0
    %v1866 = vadd.f32 0.0, %v1865
    %v1867 = vpop.f32.mrb[0].mxu0
    %v1868 = vpop.f32.mrb[0].mxu0
    %v1869 = vpop.f32.mrb[0].mxu0
    %1870 = vdwg.mxu0
    %v1871 = vadd.f32 %v381, %v1866
    %v1872 = vxor.u32 %v1871, 2147483648
    %v1873 = vmul.f32 %v1872, 1.442695
    %v1874 = vpow.pop %v1873
    %v1875 = vadd.f32 %v1874, 1.0
    %v1876 = vrcp.pop %v1875
    %v1877 = vmul.f32 1.0, %v1876
    %v1878 = vadd.f32 %v1866, %v871
    %1880 = vrot.lane.b32.xlu0 %v1878, 64
    %v1881 = vpop.permute.xlu0 %1880
    %v1883 = vmul.f32 %v1877, %v1881
    %1885 = vrot.lane.b32.xlu0 %v1883, 64
    %v1886 = vpop.permute.xlu0 %1885
    %v1888 = vadd.f32 %v381, %v1886
    %v1889 = vtanh.pop %v1888
    %v1890 = vsub.f32 %v1736, %v1889
    %1892 = vrot.lane.b32.xlu0 %v1890, 96
    %v1893 = vpop.permute.xlu0 %1892
    %v1895 = vmul.f32 %v1877, %v1893
    %1897 = vrot.lane.b32.xlu0 %v1895, 32
    %v1898 = vpop.permute.xlu0 %1897
    %v1900 = vadd.f32 %v1889, %v1898
    %1902 = vrot.lane.b32.xlu0 %v1900, 64
    %v1903 = vpop.permute.xlu0 %1902
    %1905 = vst.msk [vmem:[%s1162] sm:$0xff] %vm814, %v1903
    %v1906 = vpack.c.bf16 %v1818, %v1818
    %1908 = vrot.lane.b32.xlu0 %v1906, 64
    %v1909 = vpop.permute.xlu0 %1908
    %v1911 = vsel %vm814, %v1909, 0
    %1913 = vmatprep.subr.bf16.mxu0 0
    %1914 = vmatpush1.bf16.msra.mxu0 %v909
    %1915 = vmatprep.subr.bf16.mxu0 0
    %1916 = vmatpush1.bf16.msra.mxu0 %v910
    %1917 = vmatprep.subr.bf16.mxu0 0
    %1918 = vmatpush1.bf16.msra.mxu0 0
    %1919 = vmatprep.subr.bf16.mxu0 0
    %1920 = vmatpush1.bf16.msra.mxu0 0
    %1921 = vmatprep.subr.bf16.mxu0 0
    %1922 = vmatpush1.bf16.msra.mxu0 0
    %1923 = vmatprep.subr.bf16.mxu0 0
    %1924 = vmatpush1.bf16.msra.mxu0 0
    %1925 = vmatprep.subr.bf16.mxu0 0
    %1926 = vmatpush1.bf16.msra.mxu0 0
    %1927 = vmatprep.subr.bf16.mxu0 0
    %1928 = vmatpush1.bf16.msra.mxu0 0
    %1929 = vmatprep.subr.bf16.mxu0 0
    %1930 = vmatpush1.bf16.msra.mxu0 0
    %1931 = vmatprep.subr.bf16.mxu0 0
    %1932 = vmatpush1.bf16.msra.mxu0 0
    %1933 = vmatprep.subr.bf16.mxu0 0
    %1934 = vmatpush1.bf16.msra.mxu0 0
    %1935 = vmatprep.subr.bf16.mxu0 0
    %1936 = vmatpush1.bf16.msra.mxu0 0
    %1937 = vmatprep.subr.bf16.mxu0 0
    %1938 = vmatpush1.bf16.msra.mxu0 0
    %1939 = vmatprep.subr.bf16.mxu0 0
    %1940 = vmatpush1.bf16.msra.mxu0 0
    %1941 = vmatprep.subr.bf16.mxu0 0
    %1942 = vmatpush1.bf16.msra.mxu0 0
    %1943 = vmatprep.subr.bf16.mxu0 0
    %1944 = vmatpush1.bf16.msra.mxu0 0
    %1945 = vmatprep.mubr.bf16.mxu0 0
    %1946 = vmatmul.mubr.bf16.gmra.mrb[0].mxu0 %v1911
    %v1947 = vpop.f32.mrb[0].mxu0
    %v1948 = vadd.f32 0.0, %v1947
    %v1949 = vpop.f32.mrb[0].mxu0
    %v1950 = vpop.f32.mrb[0].mxu0
    %v1951 = vpop.f32.mrb[0].mxu0
    %1952 = vdwg.mxu0
    %v1953 = vadd.f32 %v550, %v1948
    %v1954 = vxor.u32 %v1953, 2147483648
    %v1955 = vmul.f32 %v1954, 1.442695
    %v1956 = vpow.pop %v1955
    %v1957 = vadd.f32 %v1956, 1.0
    %v1958 = vrcp.pop %v1957
    %v1959 = vmul.f32 1.0, %v1958
    %v1960 = vadd.f32 %v1948, %v966
    %1962 = vrot.lane.b32.xlu0 %v1960, 64
    %v1963 = vpop.permute.xlu0 %1962
    %v1965 = vmul.f32 %v1959, %v1963
    %1967 = vrot.lane.b32.xlu0 %v1965, 64
    %v1968 = vpop.permute.xlu0 %1967
    %v1970 = vadd.f32 %v550, %v1968
    %v1971 = vtanh.pop %v1970
    %v1972 = vsub.f32 %v1818, %v1971
    %1974 = vrot.lane.b32.xlu0 %v1972, 96
    %v1975 = vpop.permute.xlu0 %1974
    %v1977 = vmul.f32 %v1959, %v1975
    %1979 = vrot.lane.b32.xlu0 %v1977, 32
    %v1980 = vpop.permute.xlu0 %1979
    %v1982 = vadd.f32 %v1971, %v1980
    %1984 = vrot.lane.b32.xlu0 %v1982, 96
    %v1985 = vpop.permute.xlu0 %1984
    %1987 = vst.msk [vmem:[%s1079] sm:$0xff] %vm996, %v1985
    %v1988 = vpack.c.bf16 %v1900, %v1900
    %1990 = vrot.lane.b32.xlu0 %v1988, 64
    %v1991 = vpop.permute.xlu0 %1990
    %v1993 = vsel %vm814, %v1991, 0
    %1995 = vmatprep.subr.bf16.mxu0 0
    %1996 = vmatpush1.bf16.msra.mxu0 %v810
    %1997 = vmatprep.subr.bf16.mxu0 0
    %1998 = vmatpush1.bf16.msra.mxu0 %v811
    %1999 = vmatprep.subr.bf16.mxu0 0
    %2000 = vmatpush1.bf16.msra.mxu0 0
    %2001 = vmatprep.subr.bf16.mxu0 0
    %2002 = vmatpush1.bf16.msra.mxu0 0
    %2003 = vmatprep.subr.bf16.mxu0 0
    %2004 = vmatpush1.bf16.msra.mxu0 0
    %2005 = vmatprep.subr.bf16.mxu0 0
    %2006 = vmatpush1.bf16.msra.mxu0 0
    %2007 = vmatprep.subr.bf16.mxu0 0
    %2008 = vmatpush1.bf16.msra.mxu0 0
    %2009 = vmatprep.subr.bf16.mxu0 0
    %2010 = vmatpush1.bf16.msra.mxu0 0
    %2011 = vmatprep.subr.bf16.mxu0 0
    %2012 = vmatpush1.bf16.msra.mxu0 0
    %2013 = vmatprep.subr.bf16.mxu0 0
    %2014 = vmatpush1.bf16.msra.mxu0 0
    %2015 = vmatprep.subr.bf16.mxu0 0
    %2016 = vmatpush1.bf16.msra.mxu0 0
    %2017 = vmatprep.subr.bf16.mxu0 0
    %2018 = vmatpush1.bf16.msra.mxu0 0
    %2019 = vmatprep.subr.bf16.mxu0 0
    %2020 = vmatpush1.bf16.msra.mxu0 0
    %2021 = vmatprep.subr.bf16.mxu0 0
    %2022 = vmatpush1.bf16.msra.mxu0 0
    %2023 = vmatprep.subr.bf16.mxu0 0
    %2024 = vmatpush1.bf16.msra.mxu0 0
    %2025 = vmatprep.subr.bf16.mxu0 0
    %2026 = vmatpush1.bf16.msra.mxu0 0
    %2027 = vmatprep.mubr.bf16.mxu0 0
    %2028 = vmatmul.mubr.bf16.gmra.mrb[0].mxu0 %v1993
    %v2029 = vpop.f32.mrb[0].mxu0
    %v2030 = vadd.f32 0.0, %v2029
    %v2031 = vpop.f32.mrb[0].mxu0
    %v2032 = vpop.f32.mrb[0].mxu0
    %v2033 = vpop.f32.mrb[0].mxu0
    %2034 = vdwg.mxu0
    %v2035 = vadd.f32 %v424, %v2030
    %v2036 = vxor.u32 %v2035, 2147483648
    %v2037 = vmul.f32 %v2036, 1.442695
    %v2038 = vpow.pop %v2037
    %v2039 = vadd.f32 %v2038, 1.0
    %v2040 = vrcp.pop %v2039
    %v2041 = vmul.f32 1.0, %v2040
    %v2042 = vadd.f32 %v2030, %v871
    %2044 = vrot.lane.b32.xlu0 %v2042, 64
    %v2045 = vpop.permute.xlu0 %2044
    %v2047 = vmul.f32 %v2041, %v2045
    %2049 = vrot.lane.b32.xlu0 %v2047, 64
    %v2050 = vpop.permute.xlu0 %2049
    %v2052 = vadd.f32 %v424, %v2050
    %v2053 = vtanh.pop %v2052
    %v2054 = vsub.f32 %v1900, %v2053
    %2056 = vrot.lane.b32.xlu0 %v2054, 96
    %v2057 = vpop.permute.xlu0 %2056
    %v2059 = vmul.f32 %v2041, %v2057
    %2061 = vrot.lane.b32.xlu0 %v2059, 32
    %v2062 = vpop.permute.xlu0 %2061
    %v2064 = vadd.f32 %v2053, %v2062
    %2066 = vrot.lane.b32.xlu0 %v2064, 64
    %v2067 = vpop.permute.xlu0 %2066
    %2069 = vst.msk [vmem:[%s995] sm:$0xff] %vm814, %v2067
    %v2070 = vpack.c.bf16 %v1982, %v1982
    %2072 = vrot.lane.b32.xlu0 %v2070, 64
    %v2073 = vpop.permute.xlu0 %2072
    %v2075 = vsel %vm814, %v2073, 0
    %2077 = vmatprep.subr.bf16.mxu0 0
    %2078 = vmatpush1.bf16.msra.mxu0 %v909
    %2079 = vmatprep.subr.bf16.mxu0 0
    %2080 = vmatpush1.bf16.msra.mxu0 %v910
    %2081 = vmatprep.subr.bf16.mxu0 0
    %2082 = vmatpush1.bf16.msra.mxu0 0
    %2083 = vmatprep.subr.bf16.mxu0 0
    %2084 = vmatpush1.bf16.msra.mxu0 0
    %2085 = vmatprep.subr.bf16.mxu0 0
    %2086 = vmatpush1.bf16.msra.mxu0 0
    %2087 = vmatprep.subr.bf16.mxu0 0
    %2088 = vmatpush1.bf16.msra.mxu0 0
    %2089 = vmatprep.subr.bf16.mxu0 0
    %2090 = vmatpush1.bf16.msra.mxu0 0
    %2091 = vmatprep.subr.bf16.mxu0 0
    %2092 = vmatpush1.bf16.msra.mxu0 0
    %2093 = vmatprep.subr.bf16.mxu0 0
    %2094 = vmatpush1.bf16.msra.mxu0 0
    %2095 = vmatprep.subr.bf16.mxu0 0
    %2096 = vmatpush1.bf16.msra.mxu0 0
    %2097 = vmatprep.subr.bf16.mxu0 0
    %2098 = vmatpush1.bf16.msra.mxu0 0
    %2099 = vmatprep.subr.bf16.mxu0 0
    %2100 = vmatpush1.bf16.msra.mxu0 0
    %2101 = vmatprep.subr.bf16.mxu0 0
    %2102 = vmatpush1.bf16.msra.mxu0 0
    %2103 = vmatprep.subr.bf16.mxu0 0
    %2104 = vmatpush1.bf16.msra.mxu0 0
    %2105 = vmatprep.subr.bf16.mxu0 0
    %2106 = vmatpush1.bf16.msra.mxu0 0
    %2107 = vmatprep.subr.bf16.mxu0 0
    %2108 = vmatpush1.bf16.msra.mxu0 0
    %2109 = vmatprep.mubr.bf16.mxu0 0
    %2110 = vmatmul.mubr.bf16.gmra.mrb[0].mxu0 %v2075
    %v2111 = vpop.f32.mrb[0].mxu0
    %v2112 = vadd.f32 0.0, %v2111
    %v2113 = vpop.f32.mrb[0].mxu0
    %v2114 = vpop.f32.mrb[0].mxu0
    %v2115 = vpop.f32.mrb[0].mxu0
    %2116 = vdwg.mxu0
    %v2117 = vadd.f32 %v510, %v2112
    %v2118 = vxor.u32 %v2117, 2147483648
    %v2119 = vmul.f32 %v2118, 1.442695
    %v2120 = vpow.pop %v2119
    %v2121 = vadd.f32 %v2120, 1.0
    %v2122 = vrcp.pop %v2121
    %v2123 = vmul.f32 1.0, %v2122
    %v2124 = vadd.f32 %v2112, %v966
    %2126 = vrot.lane.b32.xlu0 %v2124, 64
    %v2127 = vpop.permute.xlu0 %2126
    %v2129 = vmul.f32 %v2123, %v2127
    %2131 = vrot.lane.b32.xlu0 %v2129, 64
    %v2132 = vpop.permute.xlu0 %2131
    %v2134 = vadd.f32 %v510, %v2132
    %v2135 = vtanh.pop %v2134
    %v2136 = vsub.f32 %v1982, %v2135
    %2138 = vrot.lane.b32.xlu0 %v2136, 96
    %v2139 = vpop.permute.xlu0 %2138
    %v2141 = vmul.f32 %v2123, %v2139
    %2143 = vrot.lane.b32.xlu0 %v2141, 32
    %v2144 = vpop.permute.xlu0 %2143
    %v2146 = vadd.f32 %v2135, %v2144
    %2148 = vrot.lane.b32.xlu0 %v2146, 96
    %v2149 = vpop.permute.xlu0 %2148
    %2151 = vst.msk [vmem:[#allocation2] sm:$0xff] %vm996, %v2149
    // Predicated region
    $region22: #{rnn_encoder_forward.3} parent=1 // pred_check
      _
    $region23: #{rnn_encoder_forward.3} parent=1 // pred_check_branch
      %2153 = sbr.rel (0) target = $region25
    $region24: #{rnn_encoder_forward.3} parent=1 // pred_region
      %s2155 = ssub.s32 1024, 1024
      %2156 = vsyncadd [#allocation3], %s2155
      %s2157 = sshll.u32 [#allocation2], 4
      %s2158 = int_to_ptr.vmem [resolvable:$true] %s2157
      %2163 = dma.vmem_to_hbm [thread:$0]  %s2158, 1024, %s5, [#allocation3], 128, 128, 8
    $region25: #{rnn_encoder_forward.3} parent=1 // pred_fallthru
      _
    // Predicated region
    $region26: #{rnn_encoder_forward.3} parent=1 // pred_check
      _
    $region27: #{rnn_encoder_forward.3} parent=1 // pred_check_branch
      %2165 = sbr.rel (0) target = $region29
    $region28: #{rnn_encoder_forward.3} parent=1 // pred_region
      %2166 = dma.done [#allocation3], 1024
    $region29: #{rnn_encoder_forward.3} parent=1 // pred_fallthru
      _
    %2167 = vsyncpa [#allocation3], 1

// kernel: rnn_encoder_forward.2
$region0: #{rnn_encoder_forward.2}
  #allocation0 [shape = 'u32[]', space=smem, size = 0x4, offset = 0x4, fixed_abs, tag = 'smem constant byte address 0x4 - core index']
  #allocation1 [shape = 'u32[144,128]{1,0:T(1,128)}', space=vmem, size = 0x12000, scoped, tag = 'internal scratch']
  %s0 = inlined_call_operand.hbm [shape: f32[8,8,32], index: 0, kind: input, shape index: {}]
  %s1 = inlined_call_operand.hbm [shape: bf16[2,32,96], index: 1, kind: input, shape index: {}]
  %s2 = inlined_call_operand.hbm [shape: bf16[2,32,96], index: 2, kind: input, shape index: {}]
  %s3 = inlined_call_operand.vmem [shape: f32[2,1,96], index: 3, kind: input, shape index: {}]
  %s4 = inlined_call_operand.vmem [shape: f32[2,1,32], index: 4, kind: input, shape index: {}]
  %s5 = inlined_call_operand.vmem [shape: f32[8,8,64], index: 5, kind: output, shape index: {}]
  %s6 = sld [smem:[#allocation0]]
  $region42: #{rnn_encoder_forward.2} parent=0
    _
  %s8 = ssub.s32 1, %s6
  %s9 = scalar_select 0, %s8, %s6
  $region1: #{rnn_encoder_forward.2} parent=0
    #allocation2 [shape = 'u8[32768]{0}', space=vmem, size = 0x8000, scoped, tag = 'input window, operand 0, single buffered']
    #allocation3 [shape = 's32[1]{0}', space=sflag, size = 0x4, scoped, tag = 'scoped memory for rnn_encoder_forward.2']
    #allocation4 [shape = 'u8[16384]{0}', space=vmem, size = 0x4000, scoped, tag = 'input window, operand 1, single buffered']
    #allocation5 [shape = 's32[1]{0}', space=sflag, size = 0x4, scoped, tag = 'scoped memory for rnn_encoder_forward.2']
    #allocation6 [shape = 'u8[16384]{0}', space=vmem, size = 0x4000, scoped, tag = 'input window, operand 2, single buffered']
    %10 = vsyncpa [#allocation3], 0
    %11 = vsyncpa [#allocation5], 0
    // Predicated region
    $region2: #{rnn_encoder_forward.2} parent=1 // pred_check
      _
    $region3: #{rnn_encoder_forward.2} parent=1 // pred_check_branch
      %13 = sbr.rel (0) target = $region5
    $region4: #{rnn_encoder_forward.2} parent=1 // pred_region
      %s15 = ssub.s32 1024, 1024
      %16 = vsyncadd [#allocation3], %s15
      %s17 = sshll.u32 [#allocation2], 4
      %s18 = int_to_ptr.vmem [resolvable:$true] %s17
      %23 = dma.hbm_to_vmem [thread:$0]  %s0, 1024, %s18, [#allocation3], 128, 128, 8
    $region5: #{rnn_encoder_forward.2} parent=1 // pred_fallthru
      _
    // Predicated region
    $region6: #{rnn_encoder_forward.2} parent=1 // pred_check
      _
    $region7: #{rnn_encoder_forward.2} parent=1 // pred_check_branch
      %25 = sbr.rel (0) target = $region9
    $region8: #{rnn_encoder_forward.2} parent=1 // pred_region
      %s27 = ssub.s32 512, 512
      %28 = vsyncadd [#allocation5], %s27
      %s29 = sshll.u32 [#allocation4], 4
      %s30 = int_to_ptr.vmem [resolvable:$true] %s29
      %35 = dma.hbm_to_vmem [thread:$0]  %s1, 512, %s30, [#allocation5], 64, 64, 4
    $region9: #{rnn_encoder_forward.2} parent=1 // pred_fallthru
      _
    // Predicated region
    $region10: #{rnn_encoder_forward.2} parent=1 // pred_check
      _
    $region11: #{rnn_encoder_forward.2} parent=1 // pred_check_branch
      %37 = sbr.rel (0) target = $region13
    $region12: #{rnn_encoder_forward.2} parent=1 // pred_region
      %s39 = ssub.s32 512, 512
      %40 = vsyncadd [#allocation5], %s39
      %s41 = sshll.u32 [#allocation6], 4
      %s42 = int_to_ptr.vmem [resolvable:$true] %s41
      %47 = dma.hbm_to_vmem [thread:$0]  %s2, 512, %s42, [#allocation5], 64, 64, 4
    $region13: #{rnn_encoder_forward.2} parent=1 // pred_fallthru
      _
    // Predicated region
    $region14: #{rnn_encoder_forward.2} parent=1 // pred_check
      _
    $region15: #{rnn_encoder_forward.2} parent=1 // pred_check_branch
      %49 = sbr.rel (0) target = $region17
    $region16: #{rnn_encoder_forward.2} parent=1 // pred_region
      _
    $region17: #{rnn_encoder_forward.2} parent=1 // pred_fallthru
      _
    // Predicated region
    $region18: #{rnn_encoder_forward.2} parent=1 // pred_check
      _
    $region19: #{rnn_encoder_forward.2} parent=1 // pred_check_branch
      %51 = sbr.rel (0) target = $region21
    $region20: #{rnn_encoder_forward.2} parent=1 // pred_region
      _
    $region21: #{rnn_encoder_forward.2} parent=1 // pred_fallthru
      _
    // Predicated region
    $region22: #{rnn_encoder_forward.2} parent=1 // pred_check
      _
    $region23: #{rnn_encoder_forward.2} parent=1 // pred_check_branch
      %53 = sbr.rel (0) target = $region25
    $region24: #{rnn_encoder_forward.2} parent=1 // pred_region
      %54 = dma.done [#allocation3], 1024
    $region25: #{rnn_encoder_forward.2} parent=1 // pred_fallthru
      _
    // Predicated region
    $region26: #{rnn_encoder_forward.2} parent=1 // pred_check
      _
    $region27: #{rnn_encoder_forward.2} parent=1 // pred_check_branch
      %56 = sbr.rel (0) target = $region29
    $region28: #{rnn_encoder_forward.2} parent=1 // pred_region
      %57 = dma.done [#allocation5], 512
    $region29: #{rnn_encoder_forward.2} parent=1 // pred_fallthru
      _
    // Predicated region
    $region30: #{rnn_encoder_forward.2} parent=1 // pred_check
      _
    $region31: #{rnn_encoder_forward.2} parent=1 // pred_check_branch
      %59 = sbr.rel (0) target = $region33
    $region32: #{rnn_encoder_forward.2} parent=1 // pred_region
      %60 = dma.done [#allocation5], 512
    $region33: #{rnn_encoder_forward.2} parent=1 // pred_fallthru
      _
    %v62 = vld [vmem:[#allocation2] sm:$0xff]
    %v63 = vpack.c.bf16 %v62, %v62
    %s64 = scalar_lea.vmem [#allocation2], 8
    %v65 = vld [vmem:[%s64] sm:$0xff]
    %v66 = vpack.c.bf16 %v65, %v65
    %s67 = scalar_lea.vmem [#allocation2], 16
    %v68 = vld [vmem:[%s67] sm:$0xff]
    %v69 = vpack.c.bf16 %v68, %v68
    %s70 = scalar_lea.vmem [#allocation2], 24
    %v71 = vld [vmem:[%s70] sm:$0xff]
    %v72 = vpack.c.bf16 %v71, %v71
    %s73 = scalar_lea.vmem [#allocation2], 32
    %v74 = vld [vmem:[%s73] sm:$0xff]
    %v75 = vpack.c.bf16 %v74, %v74
    %s76 = scalar_lea.vmem [#allocation2], 40
    %v77 = vld [vmem:[%s76] sm:$0xff]
    %v78 = vpack.c.bf16 %v77, %v77
    %s79 = scalar_lea.vmem [#allocation2], 48
    %v80 = vld [vmem:[%s79] sm:$0xff]
    %v81 = vpack.c.bf16 %v80, %v80
    %s82 = scalar_lea.vmem [#allocation2], 56
    %v83 = vld [vmem:[%s82] sm:$0xff]
    %v84 = vpack.c.bf16 %v83, %v83
    %v85 = vld [vmem:[#allocation4] sm:$0xf]
    %v86 = vld [vmem:[#allocation4 + $0x4] sm:$0xf]
    %v87 = vld [vmem:[#allocation4 + $0x8] sm:$0xf]
    %v88 = vld [vmem:[#allocation4 + $0xc] sm:$0xf]
    %v89 = vld [vmem:[%s3] sm:$0x1]
    %v91 = vlaneseq
    %v92 = vshrl.u32 %v91, 7
    %v93 = vsub.s32 0, %v92
    %v94 = vrot.slane %v89, %v93
    %v100 = vunpack.c.l.b16 %v85
    %v101 = vunpack.c.l.b16 %v86
    %v102 = vunpack.c.l.b16 %v87
    %v103 = vunpack.c.l.b16 %v88
    %v104 = vpack.c.b16 %v101, %v100
    %v105 = vpack.c.b16 %v103, %v102
    %vm108 = vcmask 261120
    %v110 = vsel %vm108, %v63, 0
    %112 = vmatprep.subr.bf16.mxu0 0
    %113 = vmatpush1.bf16.msra.mxu0 %v104
    %114 = vmatprep.subr.bf16.mxu0 0
    %115 = vmatpush1.bf16.msra.mxu0 %v105
    %116 = vmatprep.subr.bf16.mxu0 0
    %117 = vmatpush1.bf16.msra.mxu0 0
    %118 = vmatprep.subr.bf16.mxu0 0
    %119 = vmatpush1.bf16.msra.mxu0 0
    %120 = vmatprep.subr.bf16.mxu0 0
    %121 = vmatpush1.bf16.msra.mxu0 0
    %122 = vmatprep.subr.bf16.mxu0 0
    %123 = vmatpush1.bf16.msra.mxu0 0
    %124 = vmatprep.subr.bf16.mxu0 0
    %125 = vmatpush1.bf16.msra.mxu0 0
    %126 = vmatprep.subr.bf16.mxu0 0
    %127 = vmatpush1.bf16.msra.mxu0 0
    %128 = vmatprep.subr.bf16.mxu0 0
    %129 = vmatpush1.bf16.msra.mxu0 0
    %130 = vmatprep.subr.bf16.mxu0 0
    %131 = vmatpush1.bf16.msra.mxu0 0
    %132 = vmatprep.subr.bf16.mxu0 0
    %133 = vmatpush1.bf16.msra.mxu0 0
    %134 = vmatprep.subr.bf16.mxu0 0
    %135 = vmatpush1.bf16.msra.mxu0 0
    %136 = vmatprep.subr.bf16.mxu0 0
    %137 = vmatpush1.bf16.msra.mxu0 0
    %138 = vmatprep.subr.bf16.mxu0 0
    %139 = vmatpush1.bf16.msra.mxu0 0
    %140 = vmatprep.subr.bf16.mxu0 0
    %141 = vmatpush1.bf16.msra.mxu0 0
    %142 = vmatprep.subr.bf16.mxu0 0
    %143 = vmatpush1.bf16.msra.mxu0 0
    %144 = vmatprep.mubr.bf16.mxu0 0
    %145 = vmatmul.mubr.bf16.gmra.mrb[0].mxu0 %v110
    %v146 = vpop.f32.mrb[0].mxu0
    %v147 = vadd.f32 %v94, %v146
    %v148 = vpop.f32.mrb[0].mxu0
    %v149 = vpop.f32.mrb[0].mxu0
    %v150 = vpop.f32.mrb[0].mxu0
    %151 = vdwg.mxu0
    %v153 = vsel %vm108, %v66, 0
    %155 = vmatprep.subr.bf16.mxu0 0
    %156 = vmatpush1.bf16.msra.mxu0 %v104
    %157 = vmatprep.subr.bf16.mxu0 0
    %158 = vmatpush1.bf16.msra.mxu0 %v105
    %159 = vmatprep.subr.bf16.mxu0 0
    %160 = vmatpush1.bf16.msra.mxu0 0
    %161 = vmatprep.subr.bf16.mxu0 0
    %162 = vmatpush1.bf16.msra.mxu0 0
    %163 = vmatprep.subr.bf16.mxu0 0
    %164 = vmatpush1.bf16.msra.mxu0 0
    %165 = vmatprep.subr.bf16.mxu0 0
    %166 = vmatpush1.bf16.msra.mxu0 0
    %167 = vmatprep.subr.bf16.mxu0 0
    %168 = vmatpush1.bf16.msra.mxu0 0
    %169 = vmatprep.subr.bf16.mxu0 0
    %170 = vmatpush1.bf16.msra.mxu0 0
    %171 = vmatprep.subr.bf16.mxu0 0
    %172 = vmatpush1.bf16.msra.mxu0 0
    %173 = vmatprep.subr.bf16.mxu0 0
    %174 = vmatpush1.bf16.msra.mxu0 0
    %175 = vmatprep.subr.bf16.mxu0 0
    %176 = vmatpush1.bf16.msra.mxu0 0
    %177 = vmatprep.subr.bf16.mxu0 0
    %178 = vmatpush1.bf16.msra.mxu0 0
    %179 = vmatprep.subr.bf16.mxu0 0
    %180 = vmatpush1.bf16.msra.mxu0 0
    %181 = vmatprep.subr.bf16.mxu0 0
    %182 = vmatpush1.bf16.msra.mxu0 0
    %183 = vmatprep.subr.bf16.mxu0 0
    %184 = vmatpush1.bf16.msra.mxu0 0
    %185 = vmatprep.subr.bf16.mxu0 0
    %186 = vmatpush1.bf16.msra.mxu0 0
    %187 = vmatprep.mubr.bf16.mxu0 0
    %188 = vmatmul.mubr.bf16.gmra.mrb[0].mxu0 %v153
    %v189 = vpop.f32.mrb[0].mxu0
    %v190 = vadd.f32 %v94, %v189
    %v191 = vpop.f32.mrb[0].mxu0
    %v192 = vpop.f32.mrb[0].mxu0
    %v193 = vpop.f32.mrb[0].mxu0
    %194 = vdwg.mxu0
    %v196 = vsel %vm108, %v69, 0
    %198 = vmatprep.subr.bf16.mxu0 0
    %199 = vmatpush1.bf16.msra.mxu0 %v104
    %200 = vmatprep.subr.bf16.mxu0 0
    %201 = vmatpush1.bf16.msra.mxu0 %v105
    %202 = vmatprep.subr.bf16.mxu0 0
    %203 = vmatpush1.bf16.msra.mxu0 0
    %204 = vmatprep.subr.bf16.mxu0 0
    %205 = vmatpush1.bf16.msra.mxu0 0
    %206 = vmatprep.subr.bf16.mxu0 0
    %207 = vmatpush1.bf16.msra.mxu0 0
    %208 = vmatprep.subr.bf16.mxu0 0
    %209 = vmatpush1.bf16.msra.mxu0 0
    %210 = vmatprep.subr.bf16.mxu0 0
    %211 = vmatpush1.bf16.msra.mxu0 0
    %212 = vmatprep.subr.bf16.mxu0 0
    %213 = vmatpush1.bf16.msra.mxu0 0
    %214 = vmatprep.subr.bf16.mxu0 0
    %215 = vmatpush1.bf16.msra.mxu0 0
    %216 = vmatprep.subr.bf16.mxu0 0
    %217 = vmatpush1.bf16.msra.mxu0 0
    %218 = vmatprep.subr.bf16.mxu0 0
    %219 = vmatpush1.bf16.msra.mxu0 0
    %220 = vmatprep.subr.bf16.mxu0 0
    %221 = vmatpush1.bf16.msra.mxu0 0
    %222 = vmatprep.subr.bf16.mxu0 0
    %223 = vmatpush1.bf16.msra.mxu0 0
    %224 = vmatprep.subr.bf16.mxu0 0
    %225 = vmatpush1.bf16.msra.mxu0 0
    %226 = vmatprep.subr.bf16.mxu0 0
    %227 = vmatpush1.bf16.msra.mxu0 0
    %228 = vmatprep.subr.bf16.mxu0 0
    %229 = vmatpush1.bf16.msra.mxu0 0
    %230 = vmatprep.mubr.bf16.mxu0 0
    %231 = vmatmul.mubr.bf16.gmra.mrb[0].mxu0 %v196
    %v232 = vpop.f32.mrb[0].mxu0
    %v233 = vadd.f32 %v94, %v232
    %v234 = vpop.f32.mrb[0].mxu0
    %v235 = vpop.f32.mrb[0].mxu0
    %v236 = vpop.f32.mrb[0].mxu0
    %237 = vdwg.mxu0
    %v239 = vsel %vm108, %v72, 0
    %241 = vmatprep.subr.bf16.mxu0 0
    %242 = vmatpush1.bf16.msra.mxu0 %v104
    %243 = vmatprep.subr.bf16.mxu0 0
    %244 = vmatpush1.bf16.msra.mxu0 %v105
    %245 = vmatprep.subr.bf16.mxu0 0
    %246 = vmatpush1.bf16.msra.mxu0 0
    %247 = vmatprep.subr.bf16.mxu0 0
    %248 = vmatpush1.bf16.msra.mxu0 0
    %249 = vmatprep.subr.bf16.mxu0 0
    %250 = vmatpush1.bf16.msra.mxu0 0
    %251 = vmatprep.subr.bf16.mxu0 0
    %252 = vmatpush1.bf16.msra.mxu0 0
    %253 = vmatprep.subr.bf16.mxu0 0
    %254 = vmatpush1.bf16.msra.mxu0 0
    %255 = vmatprep.subr.bf16.mxu0 0
    %256 = vmatpush1.bf16.msra.mxu0 0
    %257 = vmatprep.subr.bf16.mxu0 0
    %258 = vmatpush1.bf16.msra.mxu0 0
    %259 = vmatprep.subr.bf16.mxu0 0
    %260 = vmatpush1.bf16.msra.mxu0 0
    %261 = vmatprep.subr.bf16.mxu0 0
    %262 = vmatpush1.bf16.msra.mxu0 0
    %263 = vmatprep.subr.bf16.mxu0 0
    %264 = vmatpush1.bf16.msra.mxu0 0
    %265 = vmatprep.subr.bf16.mxu0 0
    %266 = vmatpush1.bf16.msra.mxu0 0
    %267 = vmatprep.subr.bf16.mxu0 0
    %268 = vmatpush1.bf16.msra.mxu0 0
    %269 = vmatprep.subr.bf16.mxu0 0
    %270 = vmatpush1.bf16.msra.mxu0 0
    %271 = vmatprep.subr.bf16.mxu0 0
    %272 = vmatpush1.bf16.msra.mxu0 0
    %273 = vmatprep.mubr.bf16.mxu0 0
    %274 = vmatmul.mubr.bf16.gmra.mrb[0].mxu0 %v239
    %v275 = vpop.f32.mrb[0].mxu0
    %v276 = vadd.f32 %v94, %v275
    %v277 = vpop.f32.mrb[0].mxu0
    %v278 = vpop.f32.mrb[0].mxu0
    %v279 = vpop.f32.mrb[0].mxu0
    %280 = vdwg.mxu0
    %v282 = vsel %vm108, %v75, 0
    %284 = vmatprep.subr.bf16.mxu0 0
    %285 = vmatpush1.bf16.msra.mxu0 %v104
    %286 = vmatprep.subr.bf16.mxu0 0
    %287 = vmatpush1.bf16.msra.mxu0 %v105
    %288 = vmatprep.subr.bf16.mxu0 0
    %289 = vmatpush1.bf16.msra.mxu0 0
    %290 = vmatprep.subr.bf16.mxu0 0
    %291 = vmatpush1.bf16.msra.mxu0 0
    %292 = vmatprep.subr.bf16.mxu0 0
    %293 = vmatpush1.bf16.msra.mxu0 0
    %294 = vmatprep.subr.bf16.mxu0 0
    %295 = vmatpush1.bf16.msra.mxu0 0
    %296 = vmatprep.subr.bf16.mxu0 0
    %297 = vmatpush1.bf16.msra.mxu0 0
    %298 = vmatprep.subr.bf16.mxu0 0
    %299 = vmatpush1.bf16.msra.mxu0 0
    %300 = vmatprep.subr.bf16.mxu0 0
    %301 = vmatpush1.bf16.msra.mxu0 0
    %302 = vmatprep.subr.bf16.mxu0 0
    %303 = vmatpush1.bf16.msra.mxu0 0
    %304 = vmatprep.subr.bf16.mxu0 0
    %305 = vmatpush1.bf16.msra.mxu0 0
    %306 = vmatprep.subr.bf16.mxu0 0
    %307 = vmatpush1.bf16.msra.mxu0 0
    %308 = vmatprep.subr.bf16.mxu0 0
    %309 = vmatpush1.bf16.msra.mxu0 0
    %310 = vmatprep.subr.bf16.mxu0 0
    %311 = vmatpush1.bf16.msra.mxu0 0
    %312 = vmatprep.subr.bf16.mxu0 0
    %313 = vmatpush1.bf16.msra.mxu0 0
    %314 = vmatprep.subr.bf16.mxu0 0
    %315 = vmatpush1.bf16.msra.mxu0 0
    %316 = vmatprep.mubr.bf16.mxu0 0
    %317 = vmatmul.mubr.bf16.gmra.mrb[0].mxu0 %v282
    %v318 = vpop.f32.mrb[0].mxu0
    %v319 = vadd.f32 %v94, %v318
    %v320 = vpop.f32.mrb[0].mxu0
    %v321 = vpop.f32.mrb[0].mxu0
    %v322 = vpop.f32.mrb[0].mxu0
    %323 = vdwg.mxu0
    %v325 = vsel %vm108, %v78, 0
    %327 = vmatprep.subr.bf16.mxu0 0
    %328 = vmatpush1.bf16.msra.mxu0 %v104
    %329 = vmatprep.subr.bf16.mxu0 0
    %330 = vmatpush1.bf16.msra.mxu0 %v105
    %331 = vmatprep.subr.bf16.mxu0 0
    %332 = vmatpush1.bf16.msra.mxu0 0
    %333 = vmatprep.subr.bf16.mxu0 0
    %334 = vmatpush1.bf16.msra.mxu0 0
    %335 = vmatprep.subr.bf16.mxu0 0
    %336 = vmatpush1.bf16.msra.mxu0 0
    %337 = vmatprep.subr.bf16.mxu0 0
    %338 = vmatpush1.bf16.msra.mxu0 0
    %339 = vmatprep.subr.bf16.mxu0 0
    %340 = vmatpush1.bf16.msra.mxu0 0
    %341 = vmatprep.subr.bf16.mxu0 0
    %342 = vmatpush1.bf16.msra.mxu0 0
    %343 = vmatprep.subr.bf16.mxu0 0
    %344 = vmatpush1.bf16.msra.mxu0 0
    %345 = vmatprep.subr.bf16.mxu0 0
    %346 = vmatpush1.bf16.msra.mxu0 0
    %347 = vmatprep.subr.bf16.mxu0 0
    %348 = vmatpush1.bf16.msra.mxu0 0
    %349 = vmatprep.subr.bf16.mxu0 0
    %350 = vmatpush1.bf16.msra.mxu0 0
    %351 = vmatprep.subr.bf16.mxu0 0
    %352 = vmatpush1.bf16.msra.mxu0 0
    %353 = vmatprep.subr.bf16.mxu0 0
    %354 = vmatpush1.bf16.msra.mxu0 0
    %355 = vmatprep.subr.bf16.mxu0 0
    %356 = vmatpush1.bf16.msra.mxu0 0
    %357 = vmatprep.subr.bf16.mxu0 0
    %358 = vmatpush1.bf16.msra.mxu0 0
    %359 = vmatprep.mubr.bf16.mxu0 0
    %360 = vmatmul.mubr.bf16.gmra.mrb[0].mxu0 %v325
    %v361 = vpop.f32.mrb[0].mxu0
    %v362 = vadd.f32 %v94, %v361
    %v363 = vpop.f32.mrb[0].mxu0
    %v364 = vpop.f32.mrb[0].mxu0
    %v365 = vpop.f32.mrb[0].mxu0
    %366 = vdwg.mxu0
    %v368 = vsel %vm108, %v81, 0
    %370 = vmatprep.subr.bf16.mxu0 0
    %371 = vmatpush1.bf16.msra.mxu0 %v104
    %372 = vmatprep.subr.bf16.mxu0 0
    %373 = vmatpush1.bf16.msra.mxu0 %v105
    %374 = vmatprep.subr.bf16.mxu0 0
    %375 = vmatpush1.bf16.msra.mxu0 0
    %376 = vmatprep.subr.bf16.mxu0 0
    %377 = vmatpush1.bf16.msra.mxu0 0
    %378 = vmatprep.subr.bf16.mxu0 0
    %379 = vmatpush1.bf16.msra.mxu0 0
    %380 = vmatprep.subr.bf16.mxu0 0
    %381 = vmatpush1.bf16.msra.mxu0 0
    %382 = vmatprep.subr.bf16.mxu0 0
    %383 = vmatpush1.bf16.msra.mxu0 0
    %384 = vmatprep.subr.bf16.mxu0 0
    %385 = vmatpush1.bf16.msra.mxu0 0
    %386 = vmatprep.subr.bf16.mxu0 0
    %387 = vmatpush1.bf16.msra.mxu0 0
    %388 = vmatprep.subr.bf16.mxu0 0
    %389 = vmatpush1.bf16.msra.mxu0 0
    %390 = vmatprep.subr.bf16.mxu0 0
    %391 = vmatpush1.bf16.msra.mxu0 0
    %392 = vmatprep.subr.bf16.mxu0 0
    %393 = vmatpush1.bf16.msra.mxu0 0
    %394 = vmatprep.subr.bf16.mxu0 0
    %395 = vmatpush1.bf16.msra.mxu0 0
    %396 = vmatprep.subr.bf16.mxu0 0
    %397 = vmatpush1.bf16.msra.mxu0 0
    %398 = vmatprep.subr.bf16.mxu0 0
    %399 = vmatpush1.bf16.msra.mxu0 0
    %400 = vmatprep.subr.bf16.mxu0 0
    %401 = vmatpush1.bf16.msra.mxu0 0
    %402 = vmatprep.mubr.bf16.mxu0 0
    %403 = vmatmul.mubr.bf16.gmra.mrb[0].mxu0 %v368
    %v404 = vpop.f32.mrb[0].mxu0
    %v405 = vadd.f32 %v94, %v404
    %v406 = vpop.f32.mrb[0].mxu0
    %v407 = vpop.f32.mrb[0].mxu0
    %v408 = vpop.f32.mrb[0].mxu0
    %409 = vdwg.mxu0
    %v411 = vsel %vm108, %v84, 0
    %413 = vmatprep.subr.bf16.mxu0 0
    %414 = vmatpush1.bf16.msra.mxu0 %v104
    %415 = vmatprep.subr.bf16.mxu0 0
    %416 = vmatpush1.bf16.msra.mxu0 %v105
    %417 = vmatprep.subr.bf16.mxu0 0
    %418 = vmatpush1.bf16.msra.mxu0 0
    %419 = vmatprep.subr.bf16.mxu0 0
    %420 = vmatpush1.bf16.msra.mxu0 0
    %421 = vmatprep.subr.bf16.mxu0 0
    %422 = vmatpush1.bf16.msra.mxu0 0
    %423 = vmatprep.subr.bf16.mxu0 0
    %424 = vmatpush1.bf16.msra.mxu0 0
    %425 = vmatprep.subr.bf16.mxu0 0
    %426 = vmatpush1.bf16.msra.mxu0 0
    %427 = vmatprep.subr.bf16.mxu0 0
    %428 = vmatpush1.bf16.msra.mxu0 0
    %429 = vmatprep.subr.bf16.mxu0 0
    %430 = vmatpush1.bf16.msra.mxu0 0
    %431 = vmatprep.subr.bf16.mxu0 0
    %432 = vmatpush1.bf16.msra.mxu0 0
    %433 = vmatprep.subr.bf16.mxu0 0
    %434 = vmatpush1.bf16.msra.mxu0 0
    %435 = vmatprep.subr.bf16.mxu0 0
    %436 = vmatpush1.bf16.msra.mxu0 0
    %437 = vmatprep.subr.bf16.mxu0 0
    %438 = vmatpush1.bf16.msra.mxu0 0
    %439 = vmatprep.subr.bf16.mxu0 0
    %440 = vmatpush1.bf16.msra.mxu0 0
    %441 = vmatprep.subr.bf16.mxu0 0
    %442 = vmatpush1.bf16.msra.mxu0 0
    %443 = vmatprep.subr.bf16.mxu0 0
    %444 = vmatpush1.bf16.msra.mxu0 0
    %445 = vmatprep.mubr.bf16.mxu0 0
    %446 = vmatmul.mubr.bf16.gmra.mrb[0].mxu0 %v411
    %v447 = vpop.f32.mrb[0].mxu0
    %v448 = vadd.f32 %v94, %v447
    %v449 = vpop.f32.mrb[0].mxu0
    %v450 = vpop.f32.mrb[0].mxu0
    %v451 = vpop.f32.mrb[0].mxu0
    %452 = vdwg.mxu0
    %v453 = vld [vmem:[#allocation6] sm:$0xf]
    %v454 = vld [vmem:[#allocation6 + $0x4] sm:$0xf]
    %v455 = vld [vmem:[#allocation6 + $0x8] sm:$0xf]
    %v456 = vld [vmem:[#allocation6 + $0xc] sm:$0xf]
    %v457 = vld [vmem:[%s4] sm:$0x1]
    %s458 = scalar_lea.vmem [#allocation4], 16
    %v459 = vld [vmem:[%s458] sm:$0xf]
    %v460 = vld [vmem:[%s458 + $0x4] sm:$0xf]
    %v461 = vld [vmem:[%s458 + $0x8] sm:$0xf]
    %v462 = vld [vmem:[%s458 + $0xc] sm:$0xf]
    %s463 = scalar_lea.vmem %s3, 1
    %v464 = vld [vmem:[%s463] sm:$0x1]
    %v466 = vlaneseq
    %v467 = vshrl.u32 %v466, 7
    %v468 = vsub.s32 0, %v467
    %v469 = vrot.slane %v464, %v468
    %v475 = vunpack.c.l.b16 %v459
    %v476 = vunpack.c.l.b16 %v460
    %v477 = vunpack.c.l.b16 %v461
    %v478 = vunpack.c.l.b16 %v462
    %v479 = vpack.c.b16 %v476, %v475
    %v480 = vpack.c.b16 %v478, %v477
    %483 = vmatprep.subr.bf16.mxu0 0
    %484 = vmatpush1.bf16.msra.mxu0 %v479
    %485 = vmatprep.subr.bf16.mxu0 0
    %486 = vmatpush1.bf16.msra.mxu0 %v480
    %487 = vmatprep.subr.bf16.mxu0 0
    %488 = vmatpush1.bf16.msra.mxu0 0
    %489 = vmatprep.subr.bf16.mxu0 0
    %490 = vmatpush1.bf16.msra.mxu0 0
    %491 = vmatprep.subr.bf16.mxu0 0
    %492 = vmatpush1.bf16.msra.mxu0 0
    %493 = vmatprep.subr.bf16.mxu0 0
    %494 = vmatpush1.bf16.msra.mxu0 0
    %495 = vmatprep.subr.bf16.mxu0 0
    %496 = vmatpush1.bf16.msra.mxu0 0
    %497 = vmatprep.subr.bf16.mxu0 0
    %498 = vmatpush1.bf16.msra.mxu0 0
    %499 = vmatprep.subr.bf16.mxu0 0
    %500 = vmatpush1.bf16.msra.mxu0 0
    %501 = vmatprep.subr.bf16.mxu0 0
    %502 = vmatpush1.bf16.msra.mxu0 0
    %503 = vmatprep.subr.bf16.mxu0 0
    %504 = vmatpush1.bf16.msra.mxu0 0
    %505 = vmatprep.subr.bf16.mxu0 0
    %506 = vmatpush1.bf16.msra.mxu0 0
    %507 = vmatprep.subr.bf16.mxu0 0
    %508 = vmatpush1.bf16.msra.mxu0 0
    %509 = vmatprep.subr.bf16.mxu0 0
    %510 = vmatpush1.bf16.msra.mxu0 0
    %511 = vmatprep.subr.bf16.mxu0 0
    %512 = vmatpush1.bf16.msra.mxu0 0
    %513 = vmatprep.subr.bf16.mxu0 0
    %514 = vmatpush1.bf16.msra.mxu0 0
    %515 = vmatprep.mubr.bf16.mxu0 0
    %516 = vmatmul.mubr.bf16.gmra.mrb[0].mxu0 %v110
    %v517 = vpop.f32.mrb[0].mxu0
    %v518 = vadd.f32 %v469, %v517
    %v519 = vpop.f32.mrb[0].mxu0
    %v520 = vpop.f32.mrb[0].mxu0
    %v521 = vpop.f32.mrb[0].mxu0
    %522 = vdwg.mxu0
    %523 = vmatprep.subr.bf16.mxu0 0
    %524 = vmatpush1.bf16.msra.mxu0 %v479
    %525 = vmatprep.subr.bf16.mxu0 0
    %526 = vmatpush1.bf16.msra.mxu0 %v480
    %527 = vmatprep.subr.bf16.mxu0 0
    %528 = vmatpush1.bf16.msra.mxu0 0
    %529 = vmatprep.subr.bf16.mxu0 0
    %530 = vmatpush1.bf16.msra.mxu0 0
    %531 = vmatprep.subr.bf16.mxu0 0
    %532 = vmatpush1.bf16.msra.mxu0 0
    %533 = vmatprep.subr.bf16.mxu0 0
    %534 = vmatpush1.bf16.msra.mxu0 0
    %535 = vmatprep.subr.bf16.mxu0 0
    %536 = vmatpush1.bf16.msra.mxu0 0
    %537 = vmatprep.subr.bf16.mxu0 0
    %538 = vmatpush1.bf16.msra.mxu0 0
    %539 = vmatprep.subr.bf16.mxu0 0
    %540 = vmatpush1.bf16.msra.mxu0 0
    %541 = vmatprep.subr.bf16.mxu0 0
    %542 = vmatpush1.bf16.msra.mxu0 0
    %543 = vmatprep.subr.bf16.mxu0 0
    %544 = vmatpush1.bf16.msra.mxu0 0
    %545 = vmatprep.subr.bf16.mxu0 0
    %546 = vmatpush1.bf16.msra.mxu0 0
    %547 = vmatprep.subr.bf16.mxu0 0
    %548 = vmatpush1.bf16.msra.mxu0 0
    %549 = vmatprep.subr.bf16.mxu0 0
    %550 = vmatpush1.bf16.msra.mxu0 0
    %551 = vmatprep.subr.bf16.mxu0 0
    %552 = vmatpush1.bf16.msra.mxu0 0
    %553 = vmatprep.subr.bf16.mxu0 0
    %554 = vmatpush1.bf16.msra.mxu0 0
    %555 = vmatprep.mubr.bf16.mxu0 0
    %556 = vmatmul.mubr.bf16.gmra.mrb[0].mxu0 %v153
    %v557 = vpop.f32.mrb[0].mxu0
    %v558 = vadd.f32 %v469, %v557
    %v559 = vpop.f32.mrb[0].mxu0
    %v560 = vpop.f32.mrb[0].mxu0
    %v561 = vpop.f32.mrb[0].mxu0
    %562 = vdwg.mxu0
    %563 = vmatprep.subr.bf16.mxu0 0
    %564 = vmatpush1.bf16.msra.mxu0 %v479
    %565 = vmatprep.subr.bf16.mxu0 0
    %566 = vmatpush1.bf16.msra.mxu0 %v480
    %567 = vmatprep.subr.bf16.mxu0 0
    %568 = vmatpush1.bf16.msra.mxu0 0
    %569 = vmatprep.subr.bf16.mxu0 0
    %570 = vmatpush1.bf16.msra.mxu0 0
    %571 = vmatprep.subr.bf16.mxu0 0
    %572 = vmatpush1.bf16.msra.mxu0 0
    %573 = vmatprep.subr.bf16.mxu0 0
    %574 = vmatpush1.bf16.msra.mxu0 0
    %575 = vmatprep.subr.bf16.mxu0 0
    %576 = vmatpush1.bf16.msra.mxu0 0
    %577 = vmatprep.subr.bf16.mxu0 0
    %578 = vmatpush1.bf16.msra.mxu0 0
    %579 = vmatprep.subr.bf16.mxu0 0
    %580 = vmatpush1.bf16.msra.mxu0 0
    %581 = vmatprep.subr.bf16.mxu0 0
    %582 = vmatpush1.bf16.msra.mxu0 0
    %583 = vmatprep.subr.bf16.mxu0 0
    %584 = vmatpush1.bf16.msra.mxu0 0
    %585 = vmatprep.subr.bf16.mxu0 0
    %586 = vmatpush1.bf16.msra.mxu0 0
    %587 = vmatprep.subr.bf16.mxu0 0
    %588 = vmatpush1.bf16.msra.mxu0 0
    %589 = vmatprep.subr.bf16.mxu0 0
    %590 = vmatpush1.bf16.msra.mxu0 0
    %591 = vmatprep.subr.bf16.mxu0 0
    %592 = vmatpush1.bf16.msra.mxu0 0
    %593 = vmatprep.subr.bf16.mxu0 0
    %594 = vmatpush1.bf16.msra.mxu0 0
    %595 = vmatprep.mubr.bf16.mxu0 0
    %596 = vmatmul.mubr.bf16.gmra.mrb[0].mxu0 %v196
    %v597 = vpop.f32.mrb[0].mxu0
    %v598 = vadd.f32 %v469, %v597
    %v599 = vpop.f32.mrb[0].mxu0
    %v600 = vpop.f32.mrb[0].mxu0
    %v601 = vpop.f32.mrb[0].mxu0
    %602 = vdwg.mxu0
    %603 = vmatprep.subr.bf16.mxu0 0
    %604 = vmatpush1.bf16.msra.mxu0 %v479
    %605 = vmatprep.subr.bf16.mxu0 0
    %606 = vmatpush1.bf16.msra.mxu0 %v480
    %607 = vmatprep.subr.bf16.mxu0 0
    %608 = vmatpush1.bf16.msra.mxu0 0
    %609 = vmatprep.subr.bf16.mxu0 0
    %610 = vmatpush1.bf16.msra.mxu0 0
    %611 = vmatprep.subr.bf16.mxu0 0
    %612 = vmatpush1.bf16.msra.mxu0 0
    %613 = vmatprep.subr.bf16.mxu0 0
    %614 = vmatpush1.bf16.msra.mxu0 0
    %615 = vmatprep.subr.bf16.mxu0 0
    %616 = vmatpush1.bf16.msra.mxu0 0
    %617 = vmatprep.subr.bf16.mxu0 0
    %618 = vmatpush1.bf16.msra.mxu0 0
    %619 = vmatprep.subr.bf16.mxu0 0
    %620 = vmatpush1.bf16.msra.mxu0 0
    %621 = vmatprep.subr.bf16.mxu0 0
    %622 = vmatpush1.bf16.msra.mxu0 0
    %623 = vmatprep.subr.bf16.mxu0 0
    %624 = vmatpush1.bf16.msra.mxu0 0
    %625 = vmatprep.subr.bf16.mxu0 0
    %626 = vmatpush1.bf16.msra.mxu0 0
    %627 = vmatprep.subr.bf16.mxu0 0
    %628 = vmatpush1.bf16.msra.mxu0 0
    %629 = vmatprep.subr.bf16.mxu0 0
    %630 = vmatpush1.bf16.msra.mxu0 0
    %631 = vmatprep.subr.bf16.mxu0 0
    %632 = vmatpush1.bf16.msra.mxu0 0
    %633 = vmatprep.subr.bf16.mxu0 0
    %634 = vmatpush1.bf16.msra.mxu0 0
    %635 = vmatprep.mubr.bf16.mxu0 0
    %636 = vmatmul.mubr.bf16.gmra.mrb[0].mxu0 %v239
    %v637 = vpop.f32.mrb[0].mxu0
    %v638 = vadd.f32 %v469, %v637
    %v639 = vpop.f32.mrb[0].mxu0
    %v640 = vpop.f32.mrb[0].mxu0
    %v641 = vpop.f32.mrb[0].mxu0
    %642 = vdwg.mxu0
    %643 = vmatprep.subr.bf16.mxu0 0
    %644 = vmatpush1.bf16.msra.mxu0 %v479
    %645 = vmatprep.subr.bf16.mxu0 0
    %646 = vmatpush1.bf16.msra.mxu0 %v480
    %647 = vmatprep.subr.bf16.mxu0 0
    %648 = vmatpush1.bf16.msra.mxu0 0
    %649 = vmatprep.subr.bf16.mxu0 0
    %650 = vmatpush1.bf16.msra.mxu0 0
    %651 = vmatprep.subr.bf16.mxu0 0
    %652 = vmatpush1.bf16.msra.mxu0 0
    %653 = vmatprep.subr.bf16.mxu0 0
    %654 = vmatpush1.bf16.msra.mxu0 0
    %655 = vmatprep.subr.bf16.mxu0 0
    %656 = vmatpush1.bf16.msra.mxu0 0
    %657 = vmatprep.subr.bf16.mxu0 0
    %658 = vmatpush1.bf16.msra.mxu0 0
    %659 = vmatprep.subr.bf16.mxu0 0
    %660 = vmatpush1.bf16.msra.mxu0 0
    %661 = vmatprep.subr.bf16.mxu0 0
    %662 = vmatpush1.bf16.msra.mxu0 0
    %663 = vmatprep.subr.bf16.mxu0 0
    %664 = vmatpush1.bf16.msra.mxu0 0
    %665 = vmatprep.subr.bf16.mxu0 0
    %666 = vmatpush1.bf16.msra.mxu0 0
    %667 = vmatprep.subr.bf16.mxu0 0
    %668 = vmatpush1.bf16.msra.mxu0 0
    %669 = vmatprep.subr.bf16.mxu0 0
    %670 = vmatpush1.bf16.msra.mxu0 0
    %671 = vmatprep.subr.bf16.mxu0 0
    %672 = vmatpush1.bf16.msra.mxu0 0
    %673 = vmatprep.subr.bf16.mxu0 0
    %674 = vmatpush1.bf16.msra.mxu0 0
    %675 = vmatprep.mubr.bf16.mxu0 0
    %676 = vmatmul.mubr.bf16.gmra.mrb[0].mxu0 %v282
    %v677 = vpop.f32.mrb[0].mxu0
    %v678 = vadd.f32 %v469, %v677
    %v679 = vpop.f32.mrb[0].mxu0
    %v680 = vpop.f32.mrb[0].mxu0
    %v681 = vpop.f32.mrb[0].mxu0
    %682 = vdwg.mxu0
    %683 = vmatprep.subr.bf16.mxu0 0
    %684 = vmatpush1.bf16.msra.mxu0 %v479
    %685 = vmatprep.subr.bf16.mxu0 0
    %686 = vmatpush1.bf16.msra.mxu0 %v480
    %687 = vmatprep.subr.bf16.mxu0 0
    %688 = vmatpush1.bf16.msra.mxu0 0
    %689 = vmatprep.subr.bf16.mxu0 0
    %690 = vmatpush1.bf16.msra.mxu0 0
    %691 = vmatprep.subr.bf16.mxu0 0
    %692 = vmatpush1.bf16.msra.mxu0 0
    %693 = vmatprep.subr.bf16.mxu0 0
    %694 = vmatpush1.bf16.msra.mxu0 0
    %695 = vmatprep.subr.bf16.mxu0 0
    %696 = vmatpush1.bf16.msra.mxu0 0
    %697 = vmatprep.subr.bf16.mxu0 0
    %698 = vmatpush1.bf16.msra.mxu0 0
    %699 = vmatprep.subr.bf16.mxu0 0
    %700 = vmatpush1.bf16.msra.mxu0 0
    %701 = vmatprep.subr.bf16.mxu0 0
    %702 = vmatpush1.bf16.msra.mxu0 0
    %703 = vmatprep.subr.bf16.mxu0 0
    %704 = vmatpush1.bf16.msra.mxu0 0
    %705 = vmatprep.subr.bf16.mxu0 0
    %706 = vmatpush1.bf16.msra.mxu0 0
    %707 = vmatprep.subr.bf16.mxu0 0
    %708 = vmatpush1.bf16.msra.mxu0 0
    %709 = vmatprep.subr.bf16.mxu0 0
    %710 = vmatpush1.bf16.msra.mxu0 0
    %711 = vmatprep.subr.bf16.mxu0 0
    %712 = vmatpush1.bf16.msra.mxu0 0
    %713 = vmatprep.subr.bf16.mxu0 0
    %714 = vmatpush1.bf16.msra.mxu0 0
    %715 = vmatprep.mubr.bf16.mxu0 0
    %716 = vmatmul.mubr.bf16.gmra.mrb[0].mxu0 %v325
    %v717 = vpop.f32.mrb[0].mxu0
    %v718 = vadd.f32 %v469, %v717
    %v719 = vpop.f32.mrb[0].mxu0
    %v720 = vpop.f32.mrb[0].mxu0
    %v721 = vpop.f32.mrb[0].mxu0
    %722 = vdwg.mxu0
    %723 = vmatprep.subr.bf16.mxu0 0
    %724 = vmatpush1.bf16.msra.mxu0 %v479
    %725 = vmatprep.subr.bf16.mxu0 0
    %726 = vmatpush1.bf16.msra.mxu0 %v480
    %727 = vmatprep.subr.bf16.mxu0 0
    %728 = vmatpush1.bf16.msra.mxu0 0
    %729 = vmatprep.subr.bf16.mxu0 0
    %730 = vmatpush1.bf16.msra.mxu0 0
    %731 = vmatprep.subr.bf16.mxu0 0
    %732 = vmatpush1.bf16.msra.mxu0 0
    %733 = vmatprep.subr.bf16.mxu0 0
    %734 = vmatpush1.bf16.msra.mxu0 0
    %735 = vmatprep.subr.bf16.mxu0 0
    %736 = vmatpush1.bf16.msra.mxu0 0
    %737 = vmatprep.subr.bf16.mxu0 0
    %738 = vmatpush1.bf16.msra.mxu0 0
    %739 = vmatprep.subr.bf16.mxu0 0
    %740 = vmatpush1.bf16.msra.mxu0 0
    %741 = vmatprep.subr.bf16.mxu0 0
    %742 = vmatpush1.bf16.msra.mxu0 0
    %743 = vmatprep.subr.bf16.mxu0 0
    %744 = vmatpush1.bf16.msra.mxu0 0
    %745 = vmatprep.subr.bf16.mxu0 0
    %746 = vmatpush1.bf16.msra.mxu0 0
    %747 = vmatprep.subr.bf16.mxu0 0
    %748 = vmatpush1.bf16.msra.mxu0 0
    %749 = vmatprep.subr.bf16.mxu0 0
    %750 = vmatpush1.bf16.msra.mxu0 0
    %751 = vmatprep.subr.bf16.mxu0 0
    %752 = vmatpush1.bf16.msra.mxu0 0
    %753 = vmatprep.subr.bf16.mxu0 0
    %754 = vmatpush1.bf16.msra.mxu0 0
    %755 = vmatprep.mubr.bf16.mxu0 0
    %756 = vmatmul.mubr.bf16.gmra.mrb[0].mxu0 %v368
    %v757 = vpop.f32.mrb[0].mxu0
    %v758 = vadd.f32 %v469, %v757
    %v759 = vpop.f32.mrb[0].mxu0
    %v760 = vpop.f32.mrb[0].mxu0
    %v761 = vpop.f32.mrb[0].mxu0
    %762 = vdwg.mxu0
    %763 = vmatprep.subr.bf16.mxu0 0
    %764 = vmatpush1.bf16.msra.mxu0 %v479
    %765 = vmatprep.subr.bf16.mxu0 0
    %766 = vmatpush1.bf16.msra.mxu0 %v480
    %767 = vmatprep.subr.bf16.mxu0 0
    %768 = vmatpush1.bf16.msra.mxu0 0
    %769 = vmatprep.subr.bf16.mxu0 0
    %770 = vmatpush1.bf16.msra.mxu0 0
    %771 = vmatprep.subr.bf16.mxu0 0
    %772 = vmatpush1.bf16.msra.mxu0 0
    %773 = vmatprep.subr.bf16.mxu0 0
    %774 = vmatpush1.bf16.msra.mxu0 0
    %775 = vmatprep.subr.bf16.mxu0 0
    %776 = vmatpush1.bf16.msra.mxu0 0
    %777 = vmatprep.subr.bf16.mxu0 0
    %778 = vmatpush1.bf16.msra.mxu0 0
    %779 = vmatprep.subr.bf16.mxu0 0
    %780 = vmatpush1.bf16.msra.mxu0 0
    %781 = vmatprep.subr.bf16.mxu0 0
    %782 = vmatpush1.bf16.msra.mxu0 0
    %783 = vmatprep.subr.bf16.mxu0 0
    %784 = vmatpush1.bf16.msra.mxu0 0
    %785 = vmatprep.subr.bf16.mxu0 0
    %786 = vmatpush1.bf16.msra.mxu0 0
    %787 = vmatprep.subr.bf16.mxu0 0
    %788 = vmatpush1.bf16.msra.mxu0 0
    %789 = vmatprep.subr.bf16.mxu0 0
    %790 = vmatpush1.bf16.msra.mxu0 0
    %791 = vmatprep.subr.bf16.mxu0 0
    %792 = vmatpush1.bf16.msra.mxu0 0
    %793 = vmatprep.subr.bf16.mxu0 0
    %794 = vmatpush1.bf16.msra.mxu0 0
    %795 = vmatprep.mubr.bf16.mxu0 0
    %796 = vmatmul.mubr.bf16.gmra.mrb[0].mxu0 %v411
    %v797 = vpop.f32.mrb[0].mxu0
    %v798 = vadd.f32 %v469, %v797
    %v799 = vpop.f32.mrb[0].mxu0
    %v800 = vpop.f32.mrb[0].mxu0
    %v801 = vpop.f32.mrb[0].mxu0
    %802 = vdwg.mxu0
    %s803 = scalar_lea.vmem [#allocation6], 16
    %v804 = vld [vmem:[%s803] sm:$0xf]
    %v805 = vld [vmem:[%s803 + $0x4] sm:$0xf]
    %v806 = vld [vmem:[%s803 + $0x8] sm:$0xf]
    %v807 = vld [vmem:[%s803 + $0xc] sm:$0xf]
    %s808 = scalar_lea.vmem %s4, 1
    %v809 = vld [vmem:[%s808] sm:$0x1]
    %v814 = vunpack.c.l.b16 %v453
    %v815 = vunpack.c.l.b16 %v454
    %v816 = vunpack.c.l.b16 %v455
    %v817 = vunpack.c.l.b16 %v456
    %v818 = vpack.c.b16 %v815, %v814
    %v819 = vpack.c.b16 %v817, %v816
    %v823 = vsel %vm108, 0, 0
    %825 = vmatprep.subr.bf16.mxu0 0
    %826 = vmatpush1.bf16.msra.mxu0 %v818
    %827 = vmatprep.subr.bf16.mxu0 0
    %828 = vmatpush1.bf16.msra.mxu0 %v819
    %829 = vmatprep.subr.bf16.mxu0 0
    %830 = vmatpush1.bf16.msra.mxu0 0
    %831 = vmatprep.subr.bf16.mxu0 0
    %832 = vmatpush1.bf16.msra.mxu0 0
    %833 = vmatprep.subr.bf16.mxu0 0
    %834 = vmatpush1.bf16.msra.mxu0 0
    %835 = vmatprep.subr.bf16.mxu0 0
    %836 = vmatpush1.bf16.msra.mxu0 0
    %837 = vmatprep.subr.bf16.mxu0 0
    %838 = vmatpush1.bf16.msra.mxu0 0
    %839 = vmatprep.subr.bf16.mxu0 0
    %840 = vmatpush1.bf16.msra.mxu0 0
    %841 = vmatprep.subr.bf16.mxu0 0
    %842 = vmatpush1.bf16.msra.mxu0 0
    %843 = vmatprep.subr.bf16.mxu0 0
    %844 = vmatpush1.bf16.msra.mxu0 0
    %845 = vmatprep.subr.bf16.mxu0 0
    %846 = vmatpush1.bf16.msra.mxu0 0
    %847 = vmatprep.subr.bf16.mxu0 0
    %848 = vmatpush1.bf16.msra.mxu0 0
    %849 = vmatprep.subr.bf16.mxu0 0
    %850 = vmatpush1.bf16.msra.mxu0 0
    %851 = vmatprep.subr.bf16.mxu0 0
    %852 = vmatpush1.bf16.msra.mxu0 0
    %853 = vmatprep.subr.bf16.mxu0 0
    %854 = vmatpush1.bf16.msra.mxu0 0
    %855 = vmatprep.subr.bf16.mxu0 0
    %856 = vmatpush1.bf16.msra.mxu0 0
    %857 = vmatprep.mubr.bf16.mxu0 0
    %858 = vmatmul.mubr.bf16.gmra.mrb[0].mxu0 %v823
    %v859 = vpop.f32.mrb[0].mxu0
    %v860 = vadd.f32 0.0, %v859
    %v861 = vpop.f32.mrb[0].mxu0
    %v862 = vpop.f32.mrb[0].mxu0
    %v863 = vpop.f32.mrb[0].mxu0
    %864 = vdwg.mxu0
    %v865 = vadd.f32 %v147, %v860
    %v866 = vxor.u32 %v865, 2147483648
    %v867 = vmul.f32 %v866, 1.442695
    %v868 = vpow.pop %v867
    %v869 = vadd.f32 %v868, 1.0
    %v870 = vrcp.pop %v869
    %v871 = vmul.f32 1.0, %v870
    %v873 = vlaneseq
    %v874 = vshrl.u32 %v873, 7
    %v875 = vsub.s32 0, %v874
    %v876 = vrot.slane %v457, %v875
    %877 = vrot.lane.b32.xlu0 %v876, 64
    %v878 = vpop.permute.xlu0 %877
    %v880 = vadd.f32 %v860, %v878
    %882 = vrot.lane.b32.xlu0 %v880, 64
    %v883 = vpop.permute.xlu0 %882
    %v885 = vmul.f32 %v871, %v883
    %887 = vrot.lane.b32.xlu0 %v885, 64
    %v888 = vpop.permute.xlu0 %887
    %v890 = vadd.f32 %v147, %v888
    %v891 = vtanh.pop %v890
    %v892 = vsub.f32 0.0, %v891
    %894 = vrot.lane.b32.xlu0 %v892, 96
    %v895 = vpop.permute.xlu0 %894
    %v897 = vmul.f32 %v871, %v895
    %899 = vrot.lane.b32.xlu0 %v897, 32
    %v900 = vpop.permute.xlu0 %899
    %v902 = vadd.f32 %v891, %v900
    %904 = vrot.lane.b32.xlu0 %v902, 64
    %v905 = vpop.permute.xlu0 %904
    %907 = vst.msk [vmem:[%s5] sm:$0xff] %vm108, %v905
    %v912 = vunpack.c.l.b16 %v804
    %v913 = vunpack.c.l.b16 %v805
    %v914 = vunpack.c.l.b16 %v806
    %v915 = vunpack.c.l.b16 %v807
    %v916 = vpack.c.b16 %v913, %v912
    %v917 = vpack.c.b16 %v915, %v914
    %920 = vmatprep.subr.bf16.mxu0 0
    %921 = vmatpush1.bf16.msra.mxu0 %v916
    %922 = vmatprep.subr.bf16.mxu0 0
    %923 = vmatpush1.bf16.msra.mxu0 %v917
    %924 = vmatprep.subr.bf16.mxu0 0
    %925 = vmatpush1.bf16.msra.mxu0 0
    %926 = vmatprep.subr.bf16.mxu0 0
    %927 = vmatpush1.bf16.msra.mxu0 0
    %928 = vmatprep.subr.bf16.mxu0 0
    %929 = vmatpush1.bf16.msra.mxu0 0
    %930 = vmatprep.subr.bf16.mxu0 0
    %931 = vmatpush1.bf16.msra.mxu0 0
    %932 = vmatprep.subr.bf16.mxu0 0
    %933 = vmatpush1.bf16.msra.mxu0 0
    %934 = vmatprep.subr.bf16.mxu0 0
    %935 = vmatpush1.bf16.msra.mxu0 0
    %936 = vmatprep.subr.bf16.mxu0 0
    %937 = vmatpush1.bf16.msra.mxu0 0
    %938 = vmatprep.subr.bf16.mxu0 0
    %939 = vmatpush1.bf16.msra.mxu0 0
    %940 = vmatprep.subr.bf16.mxu0 0
    %941 = vmatpush1.bf16.msra.mxu0 0
    %942 = vmatprep.subr.bf16.mxu0 0
    %943 = vmatpush1.bf16.msra.mxu0 0
    %944 = vmatprep.subr.bf16.mxu0 0
    %945 = vmatpush1.bf16.msra.mxu0 0
    %946 = vmatprep.subr.bf16.mxu0 0
    %947 = vmatpush1.bf16.msra.mxu0 0
    %948 = vmatprep.subr.bf16.mxu0 0
    %949 = vmatpush1.bf16.msra.mxu0 0
    %950 = vmatprep.subr.bf16.mxu0 0
    %951 = vmatpush1.bf16.msra.mxu0 0
    %952 = vmatprep.mubr.bf16.mxu0 0
    %953 = vmatmul.mubr.bf16.gmra.mrb[0].mxu0 %v823
    %v954 = vpop.f32.mrb[0].mxu0
    %v955 = vadd.f32 0.0, %v954
    %v956 = vpop.f32.mrb[0].mxu0
    %v957 = vpop.f32.mrb[0].mxu0
    %v958 = vpop.f32.mrb[0].mxu0
    %959 = vdwg.mxu0
    %v960 = vadd.f32 %v798, %v955
    %v961 = vxor.u32 %v960, 2147483648
    %v962 = vmul.f32 %v961, 1.442695
    %v963 = vpow.pop %v962
    %v964 = vadd.f32 %v963, 1.0
    %v965 = vrcp.pop %v964
    %v966 = vmul.f32 1.0, %v965
    %v968 = vlaneseq
    %v969 = vshrl.u32 %v968, 7
    %v970 = vsub.s32 0, %v969
    %v971 = vrot.slane %v809, %v970
    %972 = vrot.lane.b32.xlu0 %v971, 64
    %v973 = vpop.permute.xlu0 %972
    %v975 = vadd.f32 %v955, %v973
    %977 = vrot.lane.b32.xlu0 %v975, 64
    %v978 = vpop.permute.xlu0 %977
    %v980 = vmul.f32 %v966, %v978
    %982 = vrot.lane.b32.xlu0 %v980, 64
    %v983 = vpop.permute.xlu0 %982
    %v985 = vadd.f32 %v798, %v983
    %v986 = vtanh.pop %v985
    %v987 = vsub.f32 0.0, %v986
    %989 = vrot.lane.b32.xlu0 %v987, 96
    %v990 = vpop.permute.xlu0 %989
    %v992 = vmul.f32 %v966, %v990
    %994 = vrot.lane.b32.xlu0 %v992, 32
    %v995 = vpop.permute.xlu0 %994
    %v997 = vadd.f32 %v986, %v995
    %999 = vrot.lane.b32.xlu0 %v997, 96
    %v1000 = vpop.permute.xlu0 %999
    %s1002 = scalar_lea.vmem %s5, 56
    %vm1003 = vcmask 523520
    %1004 = vst.msk [vmem:[%s1002] sm:$0xff] %vm1003, %v1000
    %v1005 = vpack.c.bf16 %v902, %v902
    %1007 = vrot.lane.b32.xlu0 %v1005, 64
    %v1008 = vpop.permute.xlu0 %1007
    %v1010 = vsel %vm108, %v1008, 0
    %1012 = vmatprep.subr.bf16.mxu0 0
    %1013 = vmatpush1.bf16.msra.mxu0 %v818
    %1014 = vmatprep.subr.bf16.mxu0 0
    %1015 = vmatpush1.bf16.msra.mxu0 %v819
    %1016 = vmatprep.subr.bf16.mxu0 0
    %1017 = vmatpush1.bf16.msra.mxu0 0
    %1018 = vmatprep.subr.bf16.mxu0 0
    %1019 = vmatpush1.bf16.msra.mxu0 0
    %1020 = vmatprep.subr.bf16.mxu0 0
    %1021 = vmatpush1.bf16.msra.mxu0 0
    %1022 = vmatprep.subr.bf16.mxu0 0
    %1023 = vmatpush1.bf16.msra.mxu0 0
    %1024 = vmatprep.subr.bf16.mxu0 0
    %1025 = vmatpush1.bf16.msra.mxu0 0
    %1026 = vmatprep.subr.bf16.mxu0 0
    %1027 = vmatpush1.bf16.msra.mxu0 0
    %1028 = vmatprep.subr.bf16.mxu0 0
    %1029 = vmatpush1.bf16.msra.mxu0 0
    %1030 = vmatprep.subr.bf16.mxu0 0
    %1031 = vmatpush1.bf16.msra.mxu0 0
    %1032 = vmatprep.subr.bf16.mxu0 0
    %1033 = vmatpush1.bf16.msra.mxu0 0
    %1034 = vmatprep.subr.bf16.mxu0 0
    %1035 = vmatpush1.bf16.msra.mxu0 0
    %1036 = vmatprep.subr.bf16.mxu0 0
    %1037 = vmatpush1.bf16.msra.mxu0 0
    %1038 = vmatprep.subr.bf16.mxu0 0
    %1039 = vmatpush1.bf16.msra.mxu0 0
    %1040 = vmatprep.subr.bf16.mxu0 0
    %1041 = vmatpush1.bf16.msra.mxu0 0
    %1042 = vmatprep.subr.bf16.mxu0 0
    %1043 = vmatpush1.bf16.msra.mxu0 0
    %1044 = vmatprep.mubr.bf16.mxu0 0
    %1045 = vmatmul.mubr.bf16.gmra.mrb[0].mxu0 %v1010
    %v1046 = vpop.f32.mrb[0].mxu0
    %v1047 = vadd.f32 0.0, %v1046
    %v1048 = vpop.f32.mrb[0].mxu0
    %v1049 = vpop.f32.mrb[0].mxu0
    %v1050 = vpop.f32.mrb[0].mxu0
    %1051 = vdwg.mxu0
    %v1052 = vadd.f32 %v190, %v1047
    %v1053 = vxor.u32 %v1052, 2147483648
    %v1054 = vmul.f32 %v1053, 1.442695
    %v1055 = vpow.pop %v1054
    %v1056 = vadd.f32 %v1055, 1.0
    %v1057 = vrcp.pop %v1056
    %v1058 = vmul.f32 1.0, %v1057
    %v1059 = vadd.f32 %v1047, %v878
    %1061 = vrot.lane.b32.xlu0 %v1059, 64
    %v1062 = vpop.permute.xlu0 %1061
    %v1064 = vmul.f32 %v1058, %v1062
    %1066 = vrot.lane.b32.xlu0 %v1064, 64
    %v1067 = vpop.permute.xlu0 %1066
    %v1069 = vadd.f32 %v190, %v1067
    %v1070 = vtanh.pop %v1069
    %v1071 = vsub.f32 %v902, %v1070
    %1073 = vrot.lane.b32.xlu0 %v1071, 96
    %v1074 = vpop.permute.xlu0 %1073
    %v1076 = vmul.f32 %v1058, %v1074
    %1078 = vrot.lane.b32.xlu0 %v1076, 32
    %v1079 = vpop.permute.xlu0 %1078
    %v1081 = vadd.f32 %v1070, %v1079
    %1083 = vrot.lane.b32.xlu0 %v1081, 64
    %v1084 = vpop.permute.xlu0 %1083
    %s1086 = scalar_lea.vmem %s5, 8
    %1087 = vst.msk [vmem:[%s1086] sm:$0xff] %vm108, %v1084
    %v1088 = vpack.c.bf16 %v997, %v997
    %1090 = vrot.lane.b32.xlu0 %v1088, 64
    %v1091 = vpop.permute.xlu0 %1090
    %v1093 = vsel %vm108, %v1091, 0
    %1095 = vmatprep.subr.bf16.mxu0 0
    %1096 = vmatpush1.bf16.msra.mxu0 %v916
    %1097 = vmatprep.subr.bf16.mxu0 0
    %1098 = vmatpush1.bf16.msra.mxu0 %v917
    %1099 = vmatprep.subr.bf16.mxu0 0
    %1100 = vmatpush1.bf16.msra.mxu0 0
    %1101 = vmatprep.subr.bf16.mxu0 0
    %1102 = vmatpush1.bf16.msra.mxu0 0
    %1103 = vmatprep.subr.bf16.mxu0 0
    %1104 = vmatpush1.bf16.msra.mxu0 0
    %1105 = vmatprep.subr.bf16.mxu0 0
    %1106 = vmatpush1.bf16.msra.mxu0 0
    %1107 = vmatprep.subr.bf16.mxu0 0
    %1108 = vmatpush1.bf16.msra.mxu0 0
    %1109 = vmatprep.subr.bf16.mxu0 0
    %1110 = vmatpush1.bf16.msra.mxu0 0
    %1111 = vmatprep.subr.bf16.mxu0 0
    %1112 = vmatpush1.bf16.msra.mxu0 0
    %1113 = vmatprep.subr.bf16.mxu0 0
    %1114 = vmatpush1.bf16.msra.mxu0 0
    %1115 = vmatprep.subr.bf16.mxu0 0
    %1116 = vmatpush1.bf16.msra.mxu0 0
    %1117 = vmatprep.subr.bf16.mxu0 0
    %1118 = vmatpush1.bf16.msra.mxu0 0
    %1119 = vmatprep.subr.bf16.mxu0 0
    %1120 = vmatpush1.bf16.msra.mxu0 0
    %1121 = vmatprep.subr.bf16.mxu0 0
    %1122 = vmatpush1.bf16.msra.mxu0 0
    %1123 = vmatprep.subr.bf16.mxu0 0
    %1124 = vmatpush1.bf16.msra.mxu0 0
    %1125 = vmatprep.subr.bf16.mxu0 0
    %1126 = vmatpush1.bf16.msra.mxu0 0
    %1127 = vmatprep.mubr.bf16.mxu0 0
    %1128 = vmatmul.mubr.bf16.gmra.mrb[0].mxu0 %v1093
    %v1129 = vpop.f32.mrb[0].mxu0
    %v1130 = vadd.f32 0.0, %v1129
    %v1131 = vpop.f32.mrb[0].mxu0
    %v1132 = vpop.f32.mrb[0].mxu0
    %v1133 = vpop.f32.mrb[0].mxu0
    %1134 = vdwg.mxu0
    %v1135 = vadd.f32 %v758, %v1130
    %v1136 = vxor.u32 %v1135, 2147483648
    %v1137 = vmul.f32 %v1136, 1.442695
    %v1138 = vpow.pop %v1137
    %v1139 = vadd.f32 %v1138, 1.0
    %v1140 = vrcp.pop %v1139
    %v1141 = vmul.f32 1.0, %v1140
    %v1142 = vadd.f32 %v1130, %v973
    %1144 = vrot.lane.b32.xlu0 %v1142, 64
    %v1145 = vpop.permute.xlu0 %1144
    %v1147 = vmul.f32 %v1141, %v1145
    %1149 = vrot.lane.b32.xlu0 %v1147, 64
    %v1150 = vpop.permute.xlu0 %1149
    %v1152 = vadd.f32 %v758, %v1150
    %v1153 = vtanh.pop %v1152
    %v1154 = vsub.f32 %v997, %v1153
    %1156 = vrot.lane.b32.xlu0 %v1154, 96
    %v1157 = vpop.permute.xlu0 %1156
    %v1159 = vmul.f32 %v1141, %v1157
    %1161 = vrot.lane.b32.xlu0 %v1159, 32
    %v1162 = vpop.permute.xlu0 %1161
    %v1164 = vadd.f32 %v1153, %v1162
    %1166 = vrot.lane.b32.xlu0 %v1164, 96
    %v1167 = vpop.permute.xlu0 %1166
    %s1169 = scalar_lea.vmem %s5, 48
    %1170 = vst.msk [vmem:[%s1169] sm:$0xff] %vm1003, %v1167
    %v1171 = vpack.c.bf16 %v1081, %v1081
    %1173 = vrot.lane.b32.xlu0 %v1171, 64
    %v1174 = vpop.permute.xlu0 %1173
    %v1176 = vsel %vm108, %v1174, 0
    %1178 = vmatprep.subr.bf16.mxu0 0
    %1179 = vmatpush1.bf16.msra.mxu0 %v818
    %1180 = vmatprep.subr.bf16.mxu0 0
    %1181 = vmatpush1.bf16.msra.mxu0 %v819
    %1182 = vmatprep.subr.bf16.mxu0 0
    %1183 = vmatpush1.bf16.msra.mxu0 0
    %1184 = vmatprep.subr.bf16.mxu0 0
    %1185 = vmatpush1.bf16.msra.mxu0 0
    %1186 = vmatprep.subr.bf16.mxu0 0
    %1187 = vmatpush1.bf16.msra.mxu0 0
    %1188 = vmatprep.subr.bf16.mxu0 0
    %1189 = vmatpush1.bf16.msra.mxu0 0
    %1190 = vmatprep.subr.bf16.mxu0 0
    %1191 = vmatpush1.bf16.msra.mxu0 0
    %1192 = vmatprep.subr.bf16.mxu0 0
    %1193 = vmatpush1.bf16.msra.mxu0 0
    %1194 = vmatprep.subr.bf16.mxu0 0
    %1195 = vmatpush1.bf16.msra.mxu0 0
    %1196 = vmatprep.subr.bf16.mxu0 0
    %1197 = vmatpush1.bf16.msra.mxu0 0
    %1198 = vmatprep.subr.bf16.mxu0 0
    %1199 = vmatpush1.bf16.msra.mxu0 0
    %1200 = vmatprep.subr.bf16.mxu0 0
    %1201 = vmatpush1.bf16.msra.mxu0 0
    %1202 = vmatprep.subr.bf16.mxu0 0
    %1203 = vmatpush1.bf16.msra.mxu0 0
    %1204 = vmatprep.subr.bf16.mxu0 0
    %1205 = vmatpush1.bf16.msra.mxu0 0
    %1206 = vmatprep.subr.bf16.mxu0 0
    %1207 = vmatpush1.bf16.msra.mxu0 0
    %1208 = vmatprep.subr.bf16.mxu0 0
    %1209 = vmatpush1.bf16.msra.mxu0 0
    %1210 = vmatprep.mubr.bf16.mxu0 0
    %1211 = vmatmul.mubr.bf16.gmra.mrb[0].mxu0 %v1176
    %v1212 = vpop.f32.mrb[0].mxu0
    %v1213 = vadd.f32 0.0, %v1212
    %v1214 = vpop.f32.mrb[0].mxu0
    %v1215 = vpop.f32.mrb[0].mxu0
    %v1216 = vpop.f32.mrb[0].mxu0
    %1217 = vdwg.mxu0
    %v1218 = vadd.f32 %v233, %v1213
    %v1219 = vxor.u32 %v1218, 2147483648
    %v1220 = vmul.f32 %v1219, 1.442695
    %v1221 = vpow.pop %v1220
    %v1222 = vadd.f32 %v1221, 1.0
    %v1223 = vrcp.pop %v1222
    %v1224 = vmul.f32 1.0, %v1223
    %v1225 = vadd.f32 %v1213, %v878
    %1227 = vrot.lane.b32.xlu0 %v1225, 64
    %v1228 = vpop.permute.xlu0 %1227
    %v1230 = vmul.f32 %v1224, %v1228
    %1232 = vrot.lane.b32.xlu0 %v1230, 64
    %v1233 = vpop.permute.xlu0 %1232
    %v1235 = vadd.f32 %v233, %v1233
    %v1236 = vtanh.pop %v1235
    %v1237 = vsub.f32 %v1081, %v1236
    %1239 = vrot.lane.b32.xlu0 %v1237, 96
    %v1240 = vpop.permute.xlu0 %1239
    %v1242 = vmul.f32 %v1224, %v1240
    %1244 = vrot.lane.b32.xlu0 %v1242, 32
    %v1245 = vpop.permute.xlu0 %1244
    %v1247 = vadd.f32 %v1236, %v1245
    %1249 = vrot.lane.b32.xlu0 %v1247, 64
    %v1250 = vpop.permute.xlu0 %1249
    %s1252 = scalar_lea.vmem %s5, 16
    %1253 = vst.msk [vmem:[%s1252] sm:$0xff] %vm108, %v1250
    %v1254 = vpack.c.bf16 %v1164, %v1164
    %1256 = vrot.lane.b32.xlu0 %v1254, 64
    %v1257 = vpop.permute.xlu0 %1256
    %v1259 = vsel %vm108, %v1257, 0
    %1261 = vmatprep.subr.bf16.mxu0 0
    %1262 = vmatpush1.bf16.msra.mxu0 %v916
    %1263 = vmatprep.subr.bf16.mxu0 0
    %1264 = vmatpush1.bf16.msra.mxu0 %v917
    %1265 = vmatprep.subr.bf16.mxu0 0
    %1266 = vmatpush1.bf16.msra.mxu0 0
    %1267 = vmatprep.subr.bf16.mxu0 0
    %1268 = vmatpush1.bf16.msra.mxu0 0
    %1269 = vmatprep.subr.bf16.mxu0 0
    %1270 = vmatpush1.bf16.msra.mxu0 0
    %1271 = vmatprep.subr.bf16.mxu0 0
    %1272 = vmatpush1.bf16.msra.mxu0 0
    %1273 = vmatprep.subr.bf16.mxu0 0
    %1274 = vmatpush1.bf16.msra.mxu0 0
    %1275 = vmatprep.subr.bf16.mxu0 0
    %1276 = vmatpush1.bf16.msra.mxu0 0
    %1277 = vmatprep.subr.bf16.mxu0 0
    %1278 = vmatpush1.bf16.msra.mxu0 0
    %1279 = vmatprep.subr.bf16.mxu0 0
    %1280 = vmatpush1.bf16.msra.mxu0 0
    %1281 = vmatprep.subr.bf16.mxu0 0
    %1282 = vmatpush1.bf16.msra.mxu0 0
    %1283 = vmatprep.subr.bf16.mxu0 0
    %1284 = vmatpush1.bf16.msra.mxu0 0
    %1285 = vmatprep.subr.bf16.mxu0 0
    %1286 = vmatpush1.bf16.msra.mxu0 0
    %1287 = vmatprep.subr.bf16.mxu0 0
    %1288 = vmatpush1.bf16.msra.mxu0 0
    %1289 = vmatprep.subr.bf16.mxu0 0
    %1290 = vmatpush1.bf16.msra.mxu0 0
    %1291 = vmatprep.subr.bf16.mxu0 0
    %1292 = vmatpush1.bf16.msra.mxu0 0
    %1293 = vmatprep.mubr.bf16.mxu0 0
    %1294 = vmatmul.mubr.bf16.gmra.mrb[0].mxu0 %v1259
    %v1295 = vpop.f32.mrb[0].mxu0
    %v1296 = vadd.f32 0.0, %v1295
    %v1297 = vpop.f32.mrb[0].mxu0
    %v1298 = vpop.f32.mrb[0].mxu0
    %v1299 = vpop.f32.mrb[0].mxu0
    %1300 = vdwg.mxu0
    %v1301 = vadd.f32 %v718, %v1296
    %v1302 = vxor.u32 %v1301, 2147483648
    %v1303 = vmul.f32 %v1302, 1.442695
    %v1304 = vpow.pop %v1303
    %v1305 = vadd.f32 %v1304, 1.0
    %v1306 = vrcp.pop %v1305
    %v1307 = vmul.f32 1.0, %v1306
    %v1308 = vadd.f32 %v1296, %v973
    %1310 = vrot.lane.b32.xlu0 %v1308, 64
    %v1311 = vpop.permute.xlu0 %1310
    %v1313 = vmul.f32 %v1307, %v1311
    %1315 = vrot.lane.b32.xlu0 %v1313, 64
    %v1316 = vpop.permute.xlu0 %1315
    %v1318 = vadd.f32 %v718, %v1316
    %v1319 = vtanh.pop %v1318
    %v1320 = vsub.f32 %v1164, %v1319
    %1322 = vrot.lane.b32.xlu0 %v1320, 96
    %v1323 = vpop.permute.xlu0 %1322
    %v1325 = vmul.f32 %v1307, %v1323
    %1327 = vrot.lane.b32.xlu0 %v1325, 32
    %v1328 = vpop.permute.xlu0 %1327
    %v1330 = vadd.f32 %v1319, %v1328
    %1332 = vrot.lane.b32.xlu0 %v1330, 96
    %v1333 = vpop.permute.xlu0 %1332
    %s1335 = scalar_lea.vmem %s5, 40
    %1336 = vst.msk [vmem:[%s1335] sm:$0xff] %vm1003, %v1333
    %v1337 = vpack.c.bf16 %v1247, %v1247
    %1339 = vrot.lane.b32.xlu0 %v1337, 64
    %v1340 = vpop.permute.xlu0 %1339
    %v1342 = vsel %vm108, %v1340, 0
    %1344 = vmatprep.subr.bf16.mxu0 0
    %1345 = vmatpush1.bf16.msra.mxu0 %v818
    %1346 = vmatprep.subr.bf16.mxu0 0
    %1347 = vmatpush1.bf16.msra.mxu0 %v819
    %1348 = vmatprep.subr.bf16.mxu0 0
    %1349 = vmatpush1.bf16.msra.mxu0 0
    %1350 = vmatprep.subr.bf16.mxu0 0
    %1351 = vmatpush1.bf16.msra.mxu0 0
    %1352 = vmatprep.subr.bf16.mxu0 0
    %1353 = vmatpush1.bf16.msra.mxu0 0
    %1354 = vmatprep.subr.bf16.mxu0 0
    %1355 = vmatpush1.bf16.msra.mxu0 0
    %1356 = vmatprep.subr.bf16.mxu0 0
    %1357 = vmatpush1.bf16.msra.mxu0 0
    %1358 = vmatprep.subr.bf16.mxu0 0
    %1359 = vmatpush1.bf16.msra.mxu0 0
    %1360 = vmatprep.subr.bf16.mxu0 0
    %1361 = vmatpush1.bf16.msra.mxu0 0
    %1362 = vmatprep.subr.bf16.mxu0 0
    %1363 = vmatpush1.bf16.msra.mxu0 0
    %1364 = vmatprep.subr.bf16.mxu0 0
    %1365 = vmatpush1.bf16.msra.mxu0 0
    %1366 = vmatprep.subr.bf16.mxu0 0
    %1367 = vmatpush1.bf16.msra.mxu0 0
    %1368 = vmatprep.subr.bf16.mxu0 0
    %1369 = vmatpush1.bf16.msra.mxu0 0
    %1370 = vmatprep.subr.bf16.mxu0 0
    %1371 = vmatpush1.bf16.msra.mxu0 0
    %1372 = vmatprep.subr.bf16.mxu0 0
    %1373 = vmatpush1.bf16.msra.mxu0 0
    %1374 = vmatprep.subr.bf16.mxu0 0
    %1375 = vmatpush1.bf16.msra.mxu0 0
    %1376 = vmatprep.mubr.bf16.mxu0 0
    %1377 = vmatmul.mubr.bf16.gmra.mrb[0].mxu0 %v1342
    %v1378 = vpop.f32.mrb[0].mxu0
    %v1379 = vadd.f32 0.0, %v1378
    %v1380 = vpop.f32.mrb[0].mxu0
    %v1381 = vpop.f32.mrb[0].mxu0
    %v1382 = vpop.f32.mrb[0].mxu0
    %1383 = vdwg.mxu0
    %v1384 = vadd.f32 %v276, %v1379
    %v1385 = vxor.u32 %v1384, 2147483648
    %v1386 = vmul.f32 %v1385, 1.442695
    %v1387 = vpow.pop %v1386
    %v1388 = vadd.f32 %v1387, 1.0
    %v1389 = vrcp.pop %v1388
    %v1390 = vmul.f32 1.0, %v1389
    %v1391 = vadd.f32 %v1379, %v878
    %1393 = vrot.lane.b32.xlu0 %v1391, 64
    %v1394 = vpop.permute.xlu0 %1393
    %v1396 = vmul.f32 %v1390, %v1394
    %1398 = vrot.lane.b32.xlu0 %v1396, 64
    %v1399 = vpop.permute.xlu0 %1398
    %v1401 = vadd.f32 %v276, %v1399
    %v1402 = vtanh.pop %v1401
    %v1403 = vsub.f32 %v1247, %v1402
    %1405 = vrot.lane.b32.xlu0 %v1403, 96
    %v1406 = vpop.permute.xlu0 %1405
    %v1408 = vmul.f32 %v1390, %v1406
    %1410 = vrot.lane.b32.xlu0 %v1408, 32
    %v1411 = vpop.permute.xlu0 %1410
    %v1413 = vadd.f32 %v1402, %v1411
    %1415 = vrot.lane.b32.xlu0 %v1413, 64
    %v1416 = vpop.permute.xlu0 %1415
    %s1418 = scalar_lea.vmem %s5, 24
    %1419 = vst.msk [vmem:[%s1418] sm:$0xff] %vm108, %v1416
    %v1420 = vpack.c.bf16 %v1330, %v1330
    %1422 = vrot.lane.b32.xlu0 %v1420, 64
    %v1423 = vpop.permute.xlu0 %1422
    %v1425 = vsel %vm108, %v1423, 0
    %1427 = vmatprep.subr.bf16.mxu0 0
    %1428 = vmatpush1.bf16.msra.mxu0 %v916
    %1429 = vmatprep.subr.bf16.mxu0 0
    %1430 = vmatpush1.bf16.msra.mxu0 %v917
    %1431 = vmatprep.subr.bf16.mxu0 0
    %1432 = vmatpush1.bf16.msra.mxu0 0
    %1433 = vmatprep.subr.bf16.mxu0 0
    %1434 = vmatpush1.bf16.msra.mxu0 0
    %1435 = vmatprep.subr.bf16.mxu0 0
    %1436 = vmatpush1.bf16.msra.mxu0 0
    %1437 = vmatprep.subr.bf16.mxu0 0
    %1438 = vmatpush1.bf16.msra.mxu0 0
    %1439 = vmatprep.subr.bf16.mxu0 0
    %1440 = vmatpush1.bf16.msra.mxu0 0
    %1441 = vmatprep.subr.bf16.mxu0 0
    %1442 = vmatpush1.bf16.msra.mxu0 0
    %1443 = vmatprep.subr.bf16.mxu0 0
    %1444 = vmatpush1.bf16.msra.mxu0 0
    %1445 = vmatprep.subr.bf16.mxu0 0
    %1446 = vmatpush1.bf16.msra.mxu0 0
    %1447 = vmatprep.subr.bf16.mxu0 0
    %1448 = vmatpush1.bf16.msra.mxu0 0
    %1449 = vmatprep.subr.bf16.mxu0 0
    %1450 = vmatpush1.bf16.msra.mxu0 0
    %1451 = vmatprep.subr.bf16.mxu0 0
    %1452 = vmatpush1.bf16.msra.mxu0 0
    %1453 = vmatprep.subr.bf16.mxu0 0
    %1454 = vmatpush1.bf16.msra.mxu0 0
    %1455 = vmatprep.subr.bf16.mxu0 0
    %1456 = vmatpush1.bf16.msra.mxu0 0
    %1457 = vmatprep.subr.bf16.mxu0 0
    %1458 = vmatpush1.bf16.msra.mxu0 0
    %1459 = vmatprep.mubr.bf16.mxu0 0
    %1460 = vmatmul.mubr.bf16.gmra.mrb[0].mxu0 %v1425
    %v1461 = vpop.f32.mrb[0].mxu0
    %v1462 = vadd.f32 0.0, %v1461
    %v1463 = vpop.f32.mrb[0].mxu0
    %v1464 = vpop.f32.mrb[0].mxu0
    %v1465 = vpop.f32.mrb[0].mxu0
    %1466 = vdwg.mxu0
    %v1467 = vadd.f32 %v678, %v1462
    %v1468 = vxor.u32 %v1467, 2147483648
    %v1469 = vmul.f32 %v1468, 1.442695
    %v1470 = vpow.pop %v1469
    %v1471 = vadd.f32 %v1470, 1.0
    %v1472 = vrcp.pop %v1471
    %v1473 = vmul.f32 1.0, %v1472
    %v1474 = vadd.f32 %v1462, %v973
    %1476 = vrot.lane.b32.xlu0 %v1474, 64
    %v1477 = vpop.permute.xlu0 %1476
    %v1479 = vmul.f32 %v1473, %v1477
    %1481 = vrot.lane.b32.xlu0 %v1479, 64
    %v1482 = vpop.permute.xlu0 %1481
    %v1484 = vadd.f32 %v678, %v1482
    %v1485 = vtanh.pop %v1484
    %v1486 = vsub.f32 %v1330, %v1485
    %1488 = vrot.lane.b32.xlu0 %v1486, 96
    %v1489 = vpop.permute.xlu0 %1488
    %v1491 = vmul.f32 %v1473, %v1489
    %1493 = vrot.lane.b32.xlu0 %v1491, 32
    %v1494 = vpop.permute.xlu0 %1493
    %v1496 = vadd.f32 %v1485, %v1494
    %1498 = vrot.lane.b32.xlu0 %v1496, 96
    %v1499 = vpop.permute.xlu0 %1498
    %s1501 = scalar_lea.vmem %s5, 32
    %1502 = vst.msk [vmem:[%s1501] sm:$0xff] %vm1003, %v1499
    %v1503 = vpack.c.bf16 %v1413, %v1413
    %1505 = vrot.lane.b32.xlu0 %v1503, 64
    %v1506 = vpop.permute.xlu0 %1505
    %v1508 = vsel %vm108, %v1506, 0
    %1510 = vmatprep.subr.bf16.mxu0 0
    %1511 = vmatpush1.bf16.msra.mxu0 %v818
    %1512 = vmatprep.subr.bf16.mxu0 0
    %1513 = vmatpush1.bf16.msra.mxu0 %v819
    %1514 = vmatprep.subr.bf16.mxu0 0
    %1515 = vmatpush1.bf16.msra.mxu0 0
    %1516 = vmatprep.subr.bf16.mxu0 0
    %1517 = vmatpush1.bf16.msra.mxu0 0
    %1518 = vmatprep.subr.bf16.mxu0 0
    %1519 = vmatpush1.bf16.msra.mxu0 0
    %1520 = vmatprep.subr.bf16.mxu0 0
    %1521 = vmatpush1.bf16.msra.mxu0 0
    %1522 = vmatprep.subr.bf16.mxu0 0
    %1523 = vmatpush1.bf16.msra.mxu0 0
    %1524 = vmatprep.subr.bf16.mxu0 0
    %1525 = vmatpush1.bf16.msra.mxu0 0
    %1526 = vmatprep.subr.bf16.mxu0 0
    %1527 = vmatpush1.bf16.msra.mxu0 0
    %1528 = vmatprep.subr.bf16.mxu0 0
    %1529 = vmatpush1.bf16.msra.mxu0 0
    %1530 = vmatprep.subr.bf16.mxu0 0
    %1531 = vmatpush1.bf16.msra.mxu0 0
    %1532 = vmatprep.subr.bf16.mxu0 0
    %1533 = vmatpush1.bf16.msra.mxu0 0
    %1534 = vmatprep.subr.bf16.mxu0 0
    %1535 = vmatpush1.bf16.msra.mxu0 0
    %1536 = vmatprep.subr.bf16.mxu0 0
    %1537 = vmatpush1.bf16.msra.mxu0 0
    %1538 = vmatprep.subr.bf16.mxu0 0
    %1539 = vmatpush1.bf16.msra.mxu0 0
    %1540 = vmatprep.subr.bf16.mxu0 0
    %1541 = vmatpush1.bf16.msra.mxu0 0
    %1542 = vmatprep.mubr.bf16.mxu0 0
    %1543 = vmatmul.mubr.bf16.gmra.mrb[0].mxu0 %v1508
    %v1544 = vpop.f32.mrb[0].mxu0
    %v1545 = vadd.f32 0.0, %v1544
    %v1546 = vpop.f32.mrb[0].mxu0
    %v1547 = vpop.f32.mrb[0].mxu0
    %v1548 = vpop.f32.mrb[0].mxu0
    %1549 = vdwg.mxu0
    %v1550 = vadd.f32 %v319, %v1545
    %v1551 = vxor.u32 %v1550, 2147483648
    %v1552 = vmul.f32 %v1551, 1.442695
    %v1553 = vpow.pop %v1552
    %v1554 = vadd.f32 %v1553, 1.0
    %v1555 = vrcp.pop %v1554
    %v1556 = vmul.f32 1.0, %v1555
    %v1557 = vadd.f32 %v1545, %v878
    %1559 = vrot.lane.b32.xlu0 %v1557, 64
    %v1560 = vpop.permute.xlu0 %1559
    %v1562 = vmul.f32 %v1556, %v1560
    %1564 = vrot.lane.b32.xlu0 %v1562, 64
    %v1565 = vpop.permute.xlu0 %1564
    %v1567 = vadd.f32 %v319, %v1565
    %v1568 = vtanh.pop %v1567
    %v1569 = vsub.f32 %v1413, %v1568
    %1571 = vrot.lane.b32.xlu0 %v1569, 96
    %v1572 = vpop.permute.xlu0 %1571
    %v1574 = vmul.f32 %v1556, %v1572
    %1576 = vrot.lane.b32.xlu0 %v1574, 32
    %v1577 = vpop.permute.xlu0 %1576
    %v1579 = vadd.f32 %v1568, %v1577
    %1581 = vrot.lane.b32.xlu0 %v1579, 64
    %v1582 = vpop.permute.xlu0 %1581
    %1584 = vst.msk [vmem:[%s1501] sm:$0xff] %vm108, %v1582
    %v1585 = vpack.c.bf16 %v1496, %v1496
    %1587 = vrot.lane.b32.xlu0 %v1585, 64
    %v1588 = vpop.permute.xlu0 %1587
    %v1590 = vsel %vm108, %v1588, 0
    %1592 = vmatprep.subr.bf16.mxu0 0
    %1593 = vmatpush1.bf16.msra.mxu0 %v916
    %1594 = vmatprep.subr.bf16.mxu0 0
    %1595 = vmatpush1.bf16.msra.mxu0 %v917
    %1596 = vmatprep.subr.bf16.mxu0 0
    %1597 = vmatpush1.bf16.msra.mxu0 0
    %1598 = vmatprep.subr.bf16.mxu0 0
    %1599 = vmatpush1.bf16.msra.mxu0 0
    %1600 = vmatprep.subr.bf16.mxu0 0
    %1601 = vmatpush1.bf16.msra.mxu0 0
    %1602 = vmatprep.subr.bf16.mxu0 0
    %1603 = vmatpush1.bf16.msra.mxu0 0
    %1604 = vmatprep.subr.bf16.mxu0 0
    %1605 = vmatpush1.bf16.msra.mxu0 0
    %1606 = vmatprep.subr.bf16.mxu0 0
    %1607 = vmatpush1.bf16.msra.mxu0 0
    %1608 = vmatprep.subr.bf16.mxu0 0
    %1609 = vmatpush1.bf16.msra.mxu0 0
    %1610 = vmatprep.subr.bf16.mxu0 0
    %1611 = vmatpush1.bf16.msra.mxu0 0
    %1612 = vmatprep.subr.bf16.mxu0 0
    %1613 = vmatpush1.bf16.msra.mxu0 0
    %1614 = vmatprep.subr.bf16.mxu0 0
    %1615 = vmatpush1.bf16.msra.mxu0 0
    %1616 = vmatprep.subr.bf16.mxu0 0
    %1617 = vmatpush1.bf16.msra.mxu0 0
    %1618 = vmatprep.subr.bf16.mxu0 0
    %1619 = vmatpush1.bf16.msra.mxu0 0
    %1620 = vmatprep.subr.bf16.mxu0 0
    %1621 = vmatpush1.bf16.msra.mxu0 0
    %1622 = vmatprep.subr.bf16.mxu0 0
    %1623 = vmatpush1.bf16.msra.mxu0 0
    %1624 = vmatprep.mubr.bf16.mxu0 0
    %1625 = vmatmul.mubr.bf16.gmra.mrb[0].mxu0 %v1590
    %v1626 = vpop.f32.mrb[0].mxu0
    %v1627 = vadd.f32 0.0, %v1626
    %v1628 = vpop.f32.mrb[0].mxu0
    %v1629 = vpop.f32.mrb[0].mxu0
    %v1630 = vpop.f32.mrb[0].mxu0
    %1631 = vdwg.mxu0
    %v1632 = vadd.f32 %v638, %v1627
    %v1633 = vxor.u32 %v1632, 2147483648
    %v1634 = vmul.f32 %v1633, 1.442695
    %v1635 = vpow.pop %v1634
    %v1636 = vadd.f32 %v1635, 1.0
    %v1637 = vrcp.pop %v1636
    %v1638 = vmul.f32 1.0, %v1637
    %v1639 = vadd.f32 %v1627, %v973
    %1641 = vrot.lane.b32.xlu0 %v1639, 64
    %v1642 = vpop.permute.xlu0 %1641
    %v1644 = vmul.f32 %v1638, %v1642
    %1646 = vrot.lane.b32.xlu0 %v1644, 64
    %v1647 = vpop.permute.xlu0 %1646
    %v1649 = vadd.f32 %v638, %v1647
    %v1650 = vtanh.pop %v1649
    %v1651 = vsub.f32 %v1496, %v1650
    %1653 = vrot.lane.b32.xlu0 %v1651, 96
    %v1654 = vpop.permute.xlu0 %1653
    %v1656 = vmul.f32 %v1638, %v1654
    %1658 = vrot.lane.b32.xlu0 %v1656, 32
    %v1659 = vpop.permute.xlu0 %1658
    %v1661 = vadd.f32 %v1650, %v1659
    %1663 = vrot.lane.b32.xlu0 %v1661, 96
    %v1664 = vpop.permute.xlu0 %1663
    %1666 = vst.msk [vmem:[%s1418] sm:$0xff] %vm1003, %v1664
    %v1667 = vpack.c.bf16 %v1579, %v1579
    %1669 = vrot.lane.b32.xlu0 %v1667, 64
    %v1670 = vpop.permute.xlu0 %1669
    %v1672 = vsel %vm108, %v1670, 0
    %1674 = vmatprep.subr.bf16.mxu0 0
    %1675 = vmatpush1.bf16.msra.mxu0 %v818
    %1676 = vmatprep.subr.bf16.mxu0 0
    %1677 = vmatpush1.bf16.msra.mxu0 %v819
    %1678 = vmatprep.subr.bf16.mxu0 0
    %1679 = vmatpush1.bf16.msra.mxu0 0
    %1680 = vmatprep.subr.bf16.mxu0 0
    %1681 = vmatpush1.bf16.msra.mxu0 0
    %1682 = vmatprep.subr.bf16.mxu0 0
    %1683 = vmatpush1.bf16.msra.mxu0 0
    %1684 = vmatprep.subr.bf16.mxu0 0
    %1685 = vmatpush1.bf16.msra.mxu0 0
    %1686 = vmatprep.subr.bf16.mxu0 0
    %1687 = vmatpush1.bf16.msra.mxu0 0
    %1688 = vmatprep.subr.bf16.mxu0 0
    %1689 = vmatpush1.bf16.msra.mxu0 0
    %1690 = vmatprep.subr.bf16.mxu0 0
    %1691 = vmatpush1.bf16.msra.mxu0 0
    %1692 = vmatprep.subr.bf16.mxu0 0
    %1693 = vmatpush1.bf16.msra.mxu0 0
    %1694 = vmatprep.subr.bf16.mxu0 0
    %1695 = vmatpush1.bf16.msra.mxu0 0
    %1696 = vmatprep.subr.bf16.mxu0 0
    %1697 = vmatpush1.bf16.msra.mxu0 0
    %1698 = vmatprep.subr.bf16.mxu0 0
    %1699 = vmatpush1.bf16.msra.mxu0 0
    %1700 = vmatprep.subr.bf16.mxu0 0
    %1701 = vmatpush1.bf16.msra.mxu0 0
    %1702 = vmatprep.subr.bf16.mxu0 0
    %1703 = vmatpush1.bf16.msra.mxu0 0
    %1704 = vmatprep.subr.bf16.mxu0 0
    %1705 = vmatpush1.bf16.msra.mxu0 0
    %1706 = vmatprep.mubr.bf16.mxu0 0
    %1707 = vmatmul.mubr.bf16.gmra.mrb[0].mxu0 %v1672
    %v1708 = vpop.f32.mrb[0].mxu0
    %v1709 = vadd.f32 0.0, %v1708
    %v1710 = vpop.f32.mrb[0].mxu0
    %v1711 = vpop.f32.mrb[0].mxu0
    %v1712 = vpop.f32.mrb[0].mxu0
    %1713 = vdwg.mxu0
    %v1714 = vadd.f32 %v362, %v1709
    %v1715 = vxor.u32 %v1714, 2147483648
    %v1716 = vmul.f32 %v1715, 1.442695
    %v1717 = vpow.pop %v1716
    %v1718 = vadd.f32 %v1717, 1.0
    %v1719 = vrcp.pop %v1718
    %v1720 = vmul.f32 1.0, %v1719
    %v1721 = vadd.f32 %v1709, %v878
    %1723 = vrot.lane.b32.xlu0 %v1721, 64
    %v1724 = vpop.permute.xlu0 %1723
    %v1726 = vmul.f32 %v1720, %v1724
    %1728 = vrot.lane.b32.xlu0 %v1726, 64
    %v1729 = vpop.permute.xlu0 %1728
    %v1731 = vadd.f32 %v362, %v1729
    %v1732 = vtanh.pop %v1731
    %v1733 = vsub.f32 %v1579, %v1732
    %1735 = vrot.lane.b32.xlu0 %v1733, 96
    %v1736 = vpop.permute.xlu0 %1735
    %v1738 = vmul.f32 %v1720, %v1736
    %1740 = vrot.lane.b32.xlu0 %v1738, 32
    %v1741 = vpop.permute.xlu0 %1740
    %v1743 = vadd.f32 %v1732, %v1741
    %1745 = vrot.lane.b32.xlu0 %v1743, 64
    %v1746 = vpop.permute.xlu0 %1745
    %1748 = vst.msk [vmem:[%s1335] sm:$0xff] %vm108, %v1746
    %v1749 = vpack.c.bf16 %v1661, %v1661
    %1751 = vrot.lane.b32.xlu0 %v1749, 64
    %v1752 = vpop.permute.xlu0 %1751
    %v1754 = vsel %vm108, %v1752, 0
    %1756 = vmatprep.subr.bf16.mxu0 0
    %1757 = vmatpush1.bf16.msra.mxu0 %v916
    %1758 = vmatprep.subr.bf16.mxu0 0
    %1759 = vmatpush1.bf16.msra.mxu0 %v917
    %1760 = vmatprep.subr.bf16.mxu0 0
    %1761 = vmatpush1.bf16.msra.mxu0 0
    %1762 = vmatprep.subr.bf16.mxu0 0
    %1763 = vmatpush1.bf16.msra.mxu0 0
    %1764 = vmatprep.subr.bf16.mxu0 0
    %1765 = vmatpush1.bf16.msra.mxu0 0
    %1766 = vmatprep.subr.bf16.mxu0 0
    %1767 = vmatpush1.bf16.msra.mxu0 0
    %1768 = vmatprep.subr.bf16.mxu0 0
    %1769 = vmatpush1.bf16.msra.mxu0 0
    %1770 = vmatprep.subr.bf16.mxu0 0
    %1771 = vmatpush1.bf16.msra.mxu0 0
    %1772 = vmatprep.subr.bf16.mxu0 0
    %1773 = vmatpush1.bf16.msra.mxu0 0
    %1774 = vmatprep.subr.bf16.mxu0 0
    %1775 = vmatpush1.bf16.msra.mxu0 0
    %1776 = vmatprep.subr.bf16.mxu0 0
    %1777 = vmatpush1.bf16.msra.mxu0 0
    %1778 = vmatprep.subr.bf16.mxu0 0
    %1779 = vmatpush1.bf16.msra.mxu0 0
    %1780 = vmatprep.subr.bf16.mxu0 0
    %1781 = vmatpush1.bf16.msra.mxu0 0
    %1782 = vmatprep.subr.bf16.mxu0 0
    %1783 = vmatpush1.bf16.msra.mxu0 0
    %1784 = vmatprep.subr.bf16.mxu0 0
    %1785 = vmatpush1.bf16.msra.mxu0 0
    %1786 = vmatprep.subr.bf16.mxu0 0
    %1787 = vmatpush1.bf16.msra.mxu0 0
    %1788 = vmatprep.mubr.bf16.mxu0 0
    %1789 = vmatmul.mubr.bf16.gmra.mrb[0].mxu0 %v1754
    %v1790 = vpop.f32.mrb[0].mxu0
    %v1791 = vadd.f32 0.0, %v1790
    %v1792 = vpop.f32.mrb[0].mxu0
    %v1793 = vpop.f32.mrb[0].mxu0
    %v1794 = vpop.f32.mrb[0].mxu0
    %1795 = vdwg.mxu0
    %v1796 = vadd.f32 %v598, %v1791
    %v1797 = vxor.u32 %v1796, 2147483648
    %v1798 = vmul.f32 %v1797, 1.442695
    %v1799 = vpow.pop %v1798
    %v1800 = vadd.f32 %v1799, 1.0
    %v1801 = vrcp.pop %v1800
    %v1802 = vmul.f32 1.0, %v1801
    %v1803 = vadd.f32 %v1791, %v973
    %1805 = vrot.lane.b32.xlu0 %v1803, 64
    %v1806 = vpop.permute.xlu0 %1805
    %v1808 = vmul.f32 %v1802, %v1806
    %1810 = vrot.lane.b32.xlu0 %v1808, 64
    %v1811 = vpop.permute.xlu0 %1810
    %v1813 = vadd.f32 %v598, %v1811
    %v1814 = vtanh.pop %v1813
    %v1815 = vsub.f32 %v1661, %v1814
    %1817 = vrot.lane.b32.xlu0 %v1815, 96
    %v1818 = vpop.permute.xlu0 %1817
    %v1820 = vmul.f32 %v1802, %v1818
    %1822 = vrot.lane.b32.xlu0 %v1820, 32
    %v1823 = vpop.permute.xlu0 %1822
    %v1825 = vadd.f32 %v1814, %v1823
    %1827 = vrot.lane.b32.xlu0 %v1825, 96
    %v1828 = vpop.permute.xlu0 %1827
    %1830 = vst.msk [vmem:[%s1252] sm:$0xff] %vm1003, %v1828
    %v1831 = vpack.c.bf16 %v1743, %v1743
    %1833 = vrot.lane.b32.xlu0 %v1831, 64
    %v1834 = vpop.permute.xlu0 %1833
    %v1836 = vsel %vm108, %v1834, 0
    %1838 = vmatprep.subr.bf16.mxu0 0
    %1839 = vmatpush1.bf16.msra.mxu0 %v818
    %1840 = vmatprep.subr.bf16.mxu0 0
    %1841 = vmatpush1.bf16.msra.mxu0 %v819
    %1842 = vmatprep.subr.bf16.mxu0 0
    %1843 = vmatpush1.bf16.msra.mxu0 0
    %1844 = vmatprep.subr.bf16.mxu0 0
    %1845 = vmatpush1.bf16.msra.mxu0 0
    %1846 = vmatprep.subr.bf16.mxu0 0
    %1847 = vmatpush1.bf16.msra.mxu0 0
    %1848 = vmatprep.subr.bf16.mxu0 0
    %1849 = vmatpush1.bf16.msra.mxu0 0
    %1850 = vmatprep.subr.bf16.mxu0 0
    %1851 = vmatpush1.bf16.msra.mxu0 0
    %1852 = vmatprep.subr.bf16.mxu0 0
    %1853 = vmatpush1.bf16.msra.mxu0 0
    %1854 = vmatprep.subr.bf16.mxu0 0
    %1855 = vmatpush1.bf16.msra.mxu0 0
    %1856 = vmatprep.subr.bf16.mxu0 0
    %1857 = vmatpush1.bf16.msra.mxu0 0
    %1858 = vmatprep.subr.bf16.mxu0 0
    %1859 = vmatpush1.bf16.msra.mxu0 0
    %1860 = vmatprep.subr.bf16.mxu0 0
    %1861 = vmatpush1.bf16.msra.mxu0 0
    %1862 = vmatprep.subr.bf16.mxu0 0
    %1863 = vmatpush1.bf16.msra.mxu0 0
    %1864 = vmatprep.subr.bf16.mxu0 0
    %1865 = vmatpush1.bf16.msra.mxu0 0
    %1866 = vmatprep.subr.bf16.mxu0 0
    %1867 = vmatpush1.bf16.msra.mxu0 0
    %1868 = vmatprep.subr.bf16.mxu0 0
    %1869 = vmatpush1.bf16.msra.mxu0 0
    %1870 = vmatprep.mubr.bf16.mxu0 0
    %1871 = vmatmul.mubr.bf16.gmra.mrb[0].mxu0 %v1836
    %v1872 = vpop.f32.mrb[0].mxu0
    %v1873 = vadd.f32 0.0, %v1872
    %v1874 = vpop.f32.mrb[0].mxu0
    %v1875 = vpop.f32.mrb[0].mxu0
    %v1876 = vpop.f32.mrb[0].mxu0
    %1877 = vdwg.mxu0
    %v1878 = vadd.f32 %v405, %v1873
    %v1879 = vxor.u32 %v1878, 2147483648
    %v1880 = vmul.f32 %v1879, 1.442695
    %v1881 = vpow.pop %v1880
    %v1882 = vadd.f32 %v1881, 1.0
    %v1883 = vrcp.pop %v1882
    %v1884 = vmul.f32 1.0, %v1883
    %v1885 = vadd.f32 %v1873, %v878
    %1887 = vrot.lane.b32.xlu0 %v1885, 64
    %v1888 = vpop.permute.xlu0 %1887
    %v1890 = vmul.f32 %v1884, %v1888
    %1892 = vrot.lane.b32.xlu0 %v1890, 64
    %v1893 = vpop.permute.xlu0 %1892
    %v1895 = vadd.f32 %v405, %v1893
    %v1896 = vtanh.pop %v1895
    %v1897 = vsub.f32 %v1743, %v1896
    %1899 = vrot.lane.b32.xlu0 %v1897, 96
    %v1900 = vpop.permute.xlu0 %1899
    %v1902 = vmul.f32 %v1884, %v1900
    %1904 = vrot.lane.b32.xlu0 %v1902, 32
    %v1905 = vpop.permute.xlu0 %1904
    %v1907 = vadd.f32 %v1896, %v1905
    %1909 = vrot.lane.b32.xlu0 %v1907, 64
    %v1910 = vpop.permute.xlu0 %1909
    %1912 = vst.msk [vmem:[%s1169] sm:$0xff] %vm108, %v1910
    %v1913 = vpack.c.bf16 %v1825, %v1825
    %1915 = vrot.lane.b32.xlu0 %v1913, 64
    %v1916 = vpop.permute.xlu0 %1915
    %v1918 = vsel %vm108, %v1916, 0
    %1920 = vmatprep.subr.bf16.mxu0 0
    %1921 = vmatpush1.bf16.msra.mxu0 %v916
    %1922 = vmatprep.subr.bf16.mxu0 0
    %1923 = vmatpush1.bf16.msra.mxu0 %v917
    %1924 = vmatprep.subr.bf16.mxu0 0
    %1925 = vmatpush1.bf16.msra.mxu0 0
    %1926 = vmatprep.subr.bf16.mxu0 0
    %1927 = vmatpush1.bf16.msra.mxu0 0
    %1928 = vmatprep.subr.bf16.mxu0 0
    %1929 = vmatpush1.bf16.msra.mxu0 0
    %1930 = vmatprep.subr.bf16.mxu0 0
    %1931 = vmatpush1.bf16.msra.mxu0 0
    %1932 = vmatprep.subr.bf16.mxu0 0
    %1933 = vmatpush1.bf16.msra.mxu0 0
    %1934 = vmatprep.subr.bf16.mxu0 0
    %1935 = vmatpush1.bf16.msra.mxu0 0
    %1936 = vmatprep.subr.bf16.mxu0 0
    %1937 = vmatpush1.bf16.msra.mxu0 0
    %1938 = vmatprep.subr.bf16.mxu0 0
    %1939 = vmatpush1.bf16.msra.mxu0 0
    %1940 = vmatprep.subr.bf16.mxu0 0
    %1941 = vmatpush1.bf16.msra.mxu0 0
    %1942 = vmatprep.subr.bf16.mxu0 0
    %1943 = vmatpush1.bf16.msra.mxu0 0
    %1944 = vmatprep.subr.bf16.mxu0 0
    %1945 = vmatpush1.bf16.msra.mxu0 0
    %1946 = vmatprep.subr.bf16.mxu0 0
    %1947 = vmatpush1.bf16.msra.mxu0 0
    %1948 = vmatprep.subr.bf16.mxu0 0
    %1949 = vmatpush1.bf16.msra.mxu0 0
    %1950 = vmatprep.subr.bf16.mxu0 0
    %1951 = vmatpush1.bf16.msra.mxu0 0
    %1952 = vmatprep.mubr.bf16.mxu0 0
    %1953 = vmatmul.mubr.bf16.gmra.mrb[0].mxu0 %v1918
    %v1954 = vpop.f32.mrb[0].mxu0
    %v1955 = vadd.f32 0.0, %v1954
    %v1956 = vpop.f32.mrb[0].mxu0
    %v1957 = vpop.f32.mrb[0].mxu0
    %v1958 = vpop.f32.mrb[0].mxu0
    %1959 = vdwg.mxu0
    %v1960 = vadd.f32 %v558, %v1955
    %v1961 = vxor.u32 %v1960, 2147483648
    %v1962 = vmul.f32 %v1961, 1.442695
    %v1963 = vpow.pop %v1962
    %v1964 = vadd.f32 %v1963, 1.0
    %v1965 = vrcp.pop %v1964
    %v1966 = vmul.f32 1.0, %v1965
    %v1967 = vadd.f32 %v1955, %v973
    %1969 = vrot.lane.b32.xlu0 %v1967, 64
    %v1970 = vpop.permute.xlu0 %1969
    %v1972 = vmul.f32 %v1966, %v1970
    %1974 = vrot.lane.b32.xlu0 %v1972, 64
    %v1975 = vpop.permute.xlu0 %1974
    %v1977 = vadd.f32 %v558, %v1975
    %v1978 = vtanh.pop %v1977
    %v1979 = vsub.f32 %v1825, %v1978
    %1981 = vrot.lane.b32.xlu0 %v1979, 96
    %v1982 = vpop.permute.xlu0 %1981
    %v1984 = vmul.f32 %v1966, %v1982
    %1986 = vrot.lane.b32.xlu0 %v1984, 32
    %v1987 = vpop.permute.xlu0 %1986
    %v1989 = vadd.f32 %v1978, %v1987
    %1991 = vrot.lane.b32.xlu0 %v1989, 96
    %v1992 = vpop.permute.xlu0 %1991
    %1994 = vst.msk [vmem:[%s1086] sm:$0xff] %vm1003, %v1992
    %v1995 = vpack.c.bf16 %v1907, %v1907
    %1997 = vrot.lane.b32.xlu0 %v1995, 64
    %v1998 = vpop.permute.xlu0 %1997
    %v2000 = vsel %vm108, %v1998, 0
    %2002 = vmatprep.subr.bf16.mxu0 0
    %2003 = vmatpush1.bf16.msra.mxu0 %v818
    %2004 = vmatprep.subr.bf16.mxu0 0
    %2005 = vmatpush1.bf16.msra.mxu0 %v819
    %2006 = vmatprep.subr.bf16.mxu0 0
    %2007 = vmatpush1.bf16.msra.mxu0 0
    %2008 = vmatprep.subr.bf16.mxu0 0
    %2009 = vmatpush1.bf16.msra.mxu0 0
    %2010 = vmatprep.subr.bf16.mxu0 0
    %2011 = vmatpush1.bf16.msra.mxu0 0
    %2012 = vmatprep.subr.bf16.mxu0 0
    %2013 = vmatpush1.bf16.msra.mxu0 0
    %2014 = vmatprep.subr.bf16.mxu0 0
    %2015 = vmatpush1.bf16.msra.mxu0 0
    %2016 = vmatprep.subr.bf16.mxu0 0
    %2017 = vmatpush1.bf16.msra.mxu0 0
    %2018 = vmatprep.subr.bf16.mxu0 0
    %2019 = vmatpush1.bf16.msra.mxu0 0
    %2020 = vmatprep.subr.bf16.mxu0 0
    %2021 = vmatpush1.bf16.msra.mxu0 0
    %2022 = vmatprep.subr.bf16.mxu0 0
    %2023 = vmatpush1.bf16.msra.mxu0 0
    %2024 = vmatprep.subr.bf16.mxu0 0
    %2025 = vmatpush1.bf16.msra.mxu0 0
    %2026 = vmatprep.subr.bf16.mxu0 0
    %2027 = vmatpush1.bf16.msra.mxu0 0
    %2028 = vmatprep.subr.bf16.mxu0 0
    %2029 = vmatpush1.bf16.msra.mxu0 0
    %2030 = vmatprep.subr.bf16.mxu0 0
    %2031 = vmatpush1.bf16.msra.mxu0 0
    %2032 = vmatprep.subr.bf16.mxu0 0
    %2033 = vmatpush1.bf16.msra.mxu0 0
    %2034 = vmatprep.mubr.bf16.mxu0 0
    %2035 = vmatmul.mubr.bf16.gmra.mrb[0].mxu0 %v2000
    %v2036 = vpop.f32.mrb[0].mxu0
    %v2037 = vadd.f32 0.0, %v2036
    %v2038 = vpop.f32.mrb[0].mxu0
    %v2039 = vpop.f32.mrb[0].mxu0
    %v2040 = vpop.f32.mrb[0].mxu0
    %2041 = vdwg.mxu0
    %v2042 = vadd.f32 %v448, %v2037
    %v2043 = vxor.u32 %v2042, 2147483648
    %v2044 = vmul.f32 %v2043, 1.442695
    %v2045 = vpow.pop %v2044
    %v2046 = vadd.f32 %v2045, 1.0
    %v2047 = vrcp.pop %v2046
    %v2048 = vmul.f32 1.0, %v2047
    %v2049 = vadd.f32 %v2037, %v878
    %2051 = vrot.lane.b32.xlu0 %v2049, 64
    %v2052 = vpop.permute.xlu0 %2051
    %v2054 = vmul.f32 %v2048, %v2052
    %2056 = vrot.lane.b32.xlu0 %v2054, 64
    %v2057 = vpop.permute.xlu0 %2056
    %v2059 = vadd.f32 %v448, %v2057
    %v2060 = vtanh.pop %v2059
    %v2061 = vsub.f32 %v1907, %v2060
    %2063 = vrot.lane.b32.xlu0 %v2061, 96
    %v2064 = vpop.permute.xlu0 %2063
    %v2066 = vmul.f32 %v2048, %v2064
    %2068 = vrot.lane.b32.xlu0 %v2066, 32
    %v2069 = vpop.permute.xlu0 %2068
    %v2071 = vadd.f32 %v2060, %v2069
    %2073 = vrot.lane.b32.xlu0 %v2071, 64
    %v2074 = vpop.permute.xlu0 %2073
    %2076 = vst.msk [vmem:[%s1002] sm:$0xff] %vm108, %v2074
    %v2077 = vpack.c.bf16 %v1989, %v1989
    %2079 = vrot.lane.b32.xlu0 %v2077, 64
    %v2080 = vpop.permute.xlu0 %2079
    %v2082 = vsel %vm108, %v2080, 0
    %2084 = vmatprep.subr.bf16.mxu0 0
    %2085 = vmatpush1.bf16.msra.mxu0 %v916
    %2086 = vmatprep.subr.bf16.mxu0 0
    %2087 = vmatpush1.bf16.msra.mxu0 %v917
    %2088 = vmatprep.subr.bf16.mxu0 0
    %2089 = vmatpush1.bf16.msra.mxu0 0
    %2090 = vmatprep.subr.bf16.mxu0 0
    %2091 = vmatpush1.bf16.msra.mxu0 0
    %2092 = vmatprep.subr.bf16.mxu0 0
    %2093 = vmatpush1.bf16.msra.mxu0 0
    %2094 = vmatprep.subr.bf16.mxu0 0
    %2095 = vmatpush1.bf16.msra.mxu0 0
    %2096 = vmatprep.subr.bf16.mxu0 0
    %2097 = vmatpush1.bf16.msra.mxu0 0
    %2098 = vmatprep.subr.bf16.mxu0 0
    %2099 = vmatpush1.bf16.msra.mxu0 0
    %2100 = vmatprep.subr.bf16.mxu0 0
    %2101 = vmatpush1.bf16.msra.mxu0 0
    %2102 = vmatprep.subr.bf16.mxu0 0
    %2103 = vmatpush1.bf16.msra.mxu0 0
    %2104 = vmatprep.subr.bf16.mxu0 0
    %2105 = vmatpush1.bf16.msra.mxu0 0
    %2106 = vmatprep.subr.bf16.mxu0 0
    %2107 = vmatpush1.bf16.msra.mxu0 0
    %2108 = vmatprep.subr.bf16.mxu0 0
    %2109 = vmatpush1.bf16.msra.mxu0 0
    %2110 = vmatprep.subr.bf16.mxu0 0
    %2111 = vmatpush1.bf16.msra.mxu0 0
    %2112 = vmatprep.subr.bf16.mxu0 0
    %2113 = vmatpush1.bf16.msra.mxu0 0
    %2114 = vmatprep.subr.bf16.mxu0 0
    %2115 = vmatpush1.bf16.msra.mxu0 0
    %2116 = vmatprep.mubr.bf16.mxu0 0
    %2117 = vmatmul.mubr.bf16.gmra.mrb[0].mxu0 %v2082
    %v2118 = vpop.f32.mrb[0].mxu0
    %v2119 = vadd.f32 0.0, %v2118
    %v2120 = vpop.f32.mrb[0].mxu0
    %v2121 = vpop.f32.mrb[0].mxu0
    %v2122 = vpop.f32.mrb[0].mxu0
    %2123 = vdwg.mxu0
    %v2124 = vadd.f32 %v518, %v2119
    %v2125 = vxor.u32 %v2124, 2147483648
    %v2126 = vmul.f32 %v2125, 1.442695
    %v2127 = vpow.pop %v2126
    %v2128 = vadd.f32 %v2127, 1.0
    %v2129 = vrcp.pop %v2128
    %v2130 = vmul.f32 1.0, %v2129
    %v2131 = vadd.f32 %v2119, %v973
    %2133 = vrot.lane.b32.xlu0 %v2131, 64
    %v2134 = vpop.permute.xlu0 %2133
    %v2136 = vmul.f32 %v2130, %v2134
    %2138 = vrot.lane.b32.xlu0 %v2136, 64
    %v2139 = vpop.permute.xlu0 %2138
    %v2141 = vadd.f32 %v518, %v2139
    %v2142 = vtanh.pop %v2141
    %v2143 = vsub.f32 %v1989, %v2142
    %2145 = vrot.lane.b32.xlu0 %v2143, 96
    %v2146 = vpop.permute.xlu0 %2145
    %v2148 = vmul.f32 %v2130, %v2146
    %2150 = vrot.lane.b32.xlu0 %v2148, 32
    %v2151 = vpop.permute.xlu0 %2150
    %v2153 = vadd.f32 %v2142, %v2151
    %2155 = vrot.lane.b32.xlu0 %v2153, 96
    %v2156 = vpop.permute.xlu0 %2155
    %2158 = vst.msk [vmem:[%s5] sm:$0xff] %vm1003, %v2156
    // Predicated region
    $region34: #{rnn_encoder_forward.2} parent=1 // pred_check
      _
    $region35: #{rnn_encoder_forward.2} parent=1 // pred_check_branch
      %2160 = sbr.rel (0) target = $region37
    $region36: #{rnn_encoder_forward.2} parent=1 // pred_region
      _
    $region37: #{rnn_encoder_forward.2} parent=1 // pred_fallthru
      _
    // Predicated region
    $region38: #{rnn_encoder_forward.2} parent=1 // pred_check
      _
    $region39: #{rnn_encoder_forward.2} parent=1 // pred_check_branch
      %2162 = sbr.rel (0) target = $region41
    $region40: #{rnn_encoder_forward.2} parent=1 // pred_region
      _
    $region41: #{rnn_encoder_forward.2} parent=1 // pred_fallthru
      _
    %2163 = vsyncpa [#allocation3], 1
    %2164 = vsyncpa [#allocation5], 1

</llo_original>
